<compile_context>
chip_gen: v7x
topology: tpu7x:2x2x1
jax: 0.10.0
libtpu: 0.0.40
codegen_flags: <defaults>
</compile_context>

<pallas_src>
import functools

import numpy as np
import jax
import jax.numpy as jnp
from jax.experimental import pallas as pl
from jax.experimental.pallas import tpu as pltpu

# ----------------------------- model constants ------------------------------
CNN_EMBED_SIZE = 32
LSTM_INPUT_EMBED_SIZE = 32
LSTM_HIDDEN_SIZE = 32
LSTM_OUTPUT_EMBED_SIZE = 32
LINEAR_EMBED_SIZE = 32
CNN_H, CNN_W = 5, 14            # x.view(-1, 1, 5, 14)
SEQ_LEN, FEAT = CNN_H, CNN_W    # LSTM sees x as (B, T=5, F=14)
CONV_CHANNELS = (1, 16, 32, 64, 64)
CONV_STRIDES = (1, 2, 2, 1)     # static Python ints, never traced


# ============================ fused Pallas kernel ============================
def _fused_kernel(xc_ref, xs_ref,
                  m1_ref, c1_ref, m2_ref, c2_ref, m3_ref, c3_ref, m4_ref, c4_ref,
                  gp_ref, gpb_ref,
                  embw_ref, embb_ref, wih_ref, bl_ref, whh_ref,
                  outw_ref, outb_ref,
                  wc_ref, wl_ref, wsum_ref,
                  o_ref, *, batch, seq_len, hidden):
    f32 = jnp.float32

    # ---------------- CNN branch: 4 folded conv GEMMs + ReLU ----------------
    h = xc_ref[...]                                              # (B, 70)
    for m_ref, c_ref in ((m1_ref, c1_ref), (m2_ref, c2_ref),
                         (m3_ref, c3_ref), (m4_ref, c4_ref)):
        h = jnp.dot(h, m_ref[...], preferred_element_type=f32) + c_ref[...]
        h = jnp.maximum(h, 0.0)
    # global-avg-pool + projection folded into one (P*C, 32) matrix
    x_cnn = jnp.dot(h, gp_ref[...], preferred_element_type=f32) + gpb_ref[...]

    # ---------------- LSTM branch (input projection hoisted) ----------------
    xe = jnp.dot(xs_ref[...], embw_ref[...],
                 preferred_element_type=f32) + embb_ref[...]     # (T*B, E)
    gx = jnp.dot(xe, wih_ref[...],
                 preferred_element_type=f32) + bl_ref[...]       # (T*B, 4H)
    hs = jnp.zeros((batch, hidden), f32)
    cs = jnp.zeros((batch, hidden), f32)
    for t in range(seq_len):                                     # static unroll
        gates = gx[t * batch:(t + 1) * batch, :] + jnp.dot(
            hs, whh_ref[...], preferred_element_type=f32)        # (B, 4H=128)
        sig = jax.nn.sigmoid(gates)                              # full-width EUP pass
        th = jnp.tanh(gates)                                     # full-width EUP pass
        i_g = sig[:, 0:hidden]
        f_g = sig[:, hidden:2 * hidden]
        g_g = th[:, 2 * hidden:3 * hidden]
        o_g = sig[:, 3 * hidden:4 * hidden]
        cs = f_g * cs + i_g * g_g
        hs = o_g * jnp.tanh(cs)
    y_lstm = jnp.dot(hs, outw_ref[...],
                     preferred_element_type=f32) + outb_ref[...]  # (B, 32)

    # ------------- head: cat -> mean-center -> linear -> tanh ---------------
    # (feat - mean) @ W.T  ==  cnn @ Wc.T + lstm @ Wl.T - mean * rowsum(W)
    feat_dim = x_cnn.shape[1] + y_lstm.shape[1]
    mean = (jnp.sum(x_cnn, axis=1, keepdims=True)
            + jnp.sum(y_lstm, axis=1, keepdims=True)) * (1.0 / feat_dim)
    out = (jnp.dot(x_cnn, wc_ref[...], preferred_element_type=f32)
           + jnp.dot(y_lstm, wl_ref[...], preferred_element_type=f32)
           - mean * wsum_ref[...])
    o_ref[...] = jnp.tanh(out)


def fused_forward(x, prep):
    """x: (B, T=5, F=14) float32 -> (B, LINEAR_EMBED_SIZE)."""
    B, T, F = x.shape
    x_cnn = x.reshape(B, T * F).astype(jnp.float32)                    # (B, 70)
    x_seq = jnp.transpose(x, (1, 0, 2)).reshape(T * B, F).astype(jnp.float32)
    operands = (x_cnn, x_seq,
                prep["m1"], prep["c1"], prep["m2"], prep["c2"],
                prep["m3"], prep["c3"], prep["m4"], prep["c4"],
                prep["gap_proj"], prep["proj_b"],
                prep["emb_wT"], prep["emb_b"],
                prep["wih_T"], prep["b_lstm"], prep["whh_T"],
                prep["outw_T"], prep["out_b"],
                prep["wc_T"], prep["wl_T"], prep["w_rowsum"])
    kernel = functools.partial(_fused_kernel, batch=B, seq_len=T,
                               hidden=LSTM_HIDDEN_SIZE)
    return pl.pallas_call(
        kernel,
        out_shape=jax.ShapeDtypeStruct((B, LINEAR_EMBED_SIZE), jnp.float32),
        in_specs=[pl.BlockSpec(memory_space=pltpu.MemorySpace.VMEM)
                  for _ in operands],
        out_specs=pl.BlockSpec(memory_space=pltpu.MemorySpace.VMEM),
        compiler_params=pltpu.CompilerParams(vmem_limit_bytes=32 * 1024 * 1024),
    )(*operands)


# ===================== host-side parameter preparation ======================
def _fold_conv(w, b, h_in, w_in, stride):
    """Fold a 3x3/pad-1 conv into a dense matrix acting on activations
    flattened channels-last as index = (h*W + w)*C + c."""
    c_out, c_in, kh, kw = w.shape
    h_out = (h_in + 2 - kh) // stride + 1
    w_out = (w_in + 2 - kw) // stride + 1
    m = np.zeros((h_in * w_in * c_in, h_out * w_out * c_out), np.float32)
    for ho in range(h_out):
        for wo in range(w_out):
            po = ho * w_out + wo
            for dh in range(kh):
                for dw in range(kw):
                    hi = ho * stride + dh - 1
                    wi = wo * stride + dw - 1
                    if 0 <= hi < h_in and 0 <= wi < w_in:
                        pi = hi * w_in + wi
                        m[pi * c_in:(pi + 1) * c_in,
                          po * c_out:(po + 1) * c_out] += w[:, :, dh, dw].T
    bias = np.tile(b, h_out * w_out)[None, :].astype(np.float32)
    return m, bias, h_out, w_out


def prepare_params(params):
    """One-time (outside jit) weight folding / transposition for the kernel."""
    prep = {}
    h, w = CNN_H, CNN_W
    for li, (cw, cb) in enumerate(params["cnn"]["convs"], start=1):
        m, bias, h, w = _fold_conv(np.asarray(cw), np.asarray(cb), h, w,
                                   CONV_STRIDES[li - 1])
        prep[f"m{li}"] = jnp.asarray(m)
        prep[f"c{li}"] = jnp.asarray(bias)
    n_pos = h * w                                             # 2 * 4 = 8
    proj_w = np.asarray(params["cnn"]["proj_w"])              # (32, 64)
    prep["gap_proj"] = jnp.asarray(np.tile(proj_w.T / n_pos, (n_pos, 1)))
    prep["proj_b"] = jnp.asarray(np.asarray(params["cnn"]["proj_b"])[None, :])

    lp = params["lstm"]
    prep["emb_wT"] = jnp.asarray(np.asarray(lp["emb_w"]).T)
    prep["emb_b"] = jnp.asarray(np.asarray(lp["emb_b"])[None, :])
    prep["wih_T"] = jnp.asarray(np.asarray(lp["w_ih"]).T)
    prep["b_lstm"] = jnp.asarray(np.asarray(lp["b_lstm"])[None, :])
    prep["whh_T"] = jnp.asarray(np.asarray(lp["w_hh"]).T)
    prep["outw_T"] = jnp.asarray(np.asarray(lp["out_w"]).T)
    prep["out_b"] = jnp.asarray(np.asarray(lp["out_b"])[None, :])

    lw = np.asarray(params["linear_weight"])                  # (32, 64)
    prep["wc_T"] = jnp.asarray(lw[:, :CNN_EMBED_SIZE].T)      # cnn columns
    prep["wl_T"] = jnp.asarray(lw[:, CNN_EMBED_SIZE:].T)      # lstm columns
    prep["w_rowsum"] = jnp.asarray(lw.sum(axis=1)[None, :])
    return prep


# ============================ synthetic parameters ===========================
def init_params(key):
    ks = iter(jax.random.split(key, 20))

    def u(shape, scale):
        return jax.random.uniform(next(ks), shape, jnp.float32, -scale, scale)

    convs = []
    for li in range(4):
        cin, cout = CONV_CHANNELS[li], CONV_CHANNELS[li + 1]
        s = (cin * 9) ** -0.5
        convs.append((u((cout, cin, 3, 3), s), u((cout,), s)))

    cnn_p = {"convs": convs,
             "proj_w": u((CNN_EMBED_SIZE, CONV_CHANNELS[-1]),
                         CONV_CHANNELS[-1] ** -0.5),
             "proj_b": u((CNN_EMBED_SIZE,), CONV_CHANNELS[-1] ** -0.5)}

    E, H = LSTM_INPUT_EMBED_SIZE, LSTM_HIDDEN_SIZE
    lstm_p = {"emb_w": u((E, FEAT), FEAT ** -0.5),
              "emb_b": u((E,), FEAT ** -0.5),
              "w_ih": u((4 * H, E), H ** -0.5),
              "w_hh": u((4 * H, H), H ** -0.5),
              # single combined bias (== torch's b_ih + b_hh pre-summed)
              "b_lstm": u((4 * H,), H ** -0.5),
              "out_w": u((LSTM_OUTPUT_EMBED_SIZE, H), H ** -0.5),
              "out_b": u((LSTM_OUTPUT_EMBED_SIZE,), H ** -0.5)}

    # Parameter(torch.rand(LINEAR_EMBED, LSTM_OUT + CNN_EMBED)) -> U[0,1)
    linear_weight = jax.random.uniform(
        next(ks), (LINEAR_EMBED_SIZE, LSTM_OUTPUT_EMBED_SIZE + CNN_EMBED_SIZE),
        jnp.float32, 0.0, 1.0)

    return {"cnn": cnn_p, "lstm": lstm_p, "linear_weight": linear_weight}


# =========================== pure-JAX reference ==============================
def reference_forward(x, params):
    """Non-Pallas reference of the same synthetic forward pass (run eagerly)."""
    B, T, _ = x.shape
    h = x.reshape(B, 1, CNN_H, CNN_W)
    for (cw, cb), s in zip(params["cnn"]["convs"], CONV_STRIDES):
        h = jax.lax.conv_general_dilated(
            h, cw, window_strides=(s, s), padding=((1, 1), (1, 1)),
            dimension_numbers=("NCHW", "OIHW", "NCHW"))
        h = jnp.maximum(h + cb[None, :, None, None], 0.0)
    pooled = h.mean(axis=(2, 3))
    x_cnn = pooled @ params["cnn"]["proj_w"].T + params["cnn"]["proj_b"]

    lp = params["lstm"]
    xe = x @ lp["emb_w"].T + lp["emb_b"]
    Hh = LSTM_HIDDEN_SIZE
    hs = jnp.zeros((B, Hh), jnp.float32)
    cs = jnp.zeros((B, Hh), jnp.float32)
    for t in range(T):
        g = xe[:, t] @ lp["w_ih"].T + hs @ lp["w_hh"].T + lp["b_lstm"]
        i_g = jax.nn.sigmoid(g[:, :Hh])
        f_g = jax.nn.sigmoid(g[:, Hh:2 * Hh])
        g_g = jnp.tanh(g[:, 2 * Hh:3 * Hh])
        o_g = jax.nn.sigmoid(g[:, 3 * Hh:])
        cs = f_g * cs + i_g * g_g
        hs = o_g * jnp.tanh(cs)
    y_lstm = hs @ lp["out_w"].T + lp["out_b"]

    feat = jnp.concatenate([x_cnn, y_lstm], axis=1)
    feat = feat - feat.mean(axis=1, keepdims=True)
    return jnp.tanh(feat @ params["linear_weight"].T)


# ==================================== main ===================================
if __name__ == "__main__":
    key = jax.random.PRNGKey(0)
    k_x, k_p = jax.random.split(key)
    B = 4
    x = jax.random.uniform(k_x, (B, SEQ_LEN, FEAT), jnp.float32)   # (4, 5, 14)

    params = init_params(k_p)
    prep = prepare_params(params)        # one-time host-side weight folding

    out = jax.block_until_ready(jax.jit(fused_forward)(x, prep))

    assert out.shape == (B, LINEAR_EMBED_SIZE)
    assert bool(jnp.all(jnp.isfinite(out)))

    ref = reference_forward(x, params)   # eager pure-JAX check
    assert bool(jnp.allclose(out, ref, atol=5e-2)), \
        f"max abs diff {float(jnp.max(jnp.abs(out - ref)))}"

    print("KERNEL_OK")
</pallas_src>

<mosaic_0001>
module attributes {stable_mosaic.version = 11 : i64} {
  func.func @_fused_kernel(%arg0: memref<4x70xf32, #tpu.memory_space<vmem>>, %arg1: memref<20x14xf32, #tpu.memory_space<vmem>>, %arg2: memref<70x1120xf32, #tpu.memory_space<vmem>>, %arg3: memref<1x1120xf32, #tpu.memory_space<vmem>>, %arg4: memref<1120x672xf32, #tpu.memory_space<vmem>>, %arg5: memref<1x672xf32, #tpu.memory_space<vmem>>, %arg6: memref<672x512xf32, #tpu.memory_space<vmem>>, %arg7: memref<1x512xf32, #tpu.memory_space<vmem>>, %arg8: memref<512x512xf32, #tpu.memory_space<vmem>>, %arg9: memref<1x512xf32, #tpu.memory_space<vmem>>, %arg10: memref<512x32xf32, #tpu.memory_space<vmem>>, %arg11: memref<1x32xf32, #tpu.memory_space<vmem>>, %arg12: memref<14x32xf32, #tpu.memory_space<vmem>>, %arg13: memref<1x32xf32, #tpu.memory_space<vmem>>, %arg14: memref<32x128xf32, #tpu.memory_space<vmem>>, %arg15: memref<1x128xf32, #tpu.memory_space<vmem>>, %arg16: memref<32x128xf32, #tpu.memory_space<vmem>>, %arg17: memref<32x32xf32, #tpu.memory_space<vmem>>, %arg18: memref<1x32xf32, #tpu.memory_space<vmem>>, %arg19: memref<32x32xf32, #tpu.memory_space<vmem>>, %arg20: memref<32x32xf32, #tpu.memory_space<vmem>>, %arg21: memref<1x32xf32, #tpu.memory_space<vmem>>, %arg22: memref<4x32xf32, #tpu.memory_space<vmem>>) attributes {dimension_semantics = [], scalar_prefetch = 0 : i64, scratch_operands = 0 : i64, tpu.core_type = #tpu.core_type<tc>} {
    %c0 = arith.constant 0 : index
    %c0_0 = arith.constant 0 : index
    %0 = vector.load %arg0[%c0, %c0_0] : memref<4x70xf32, #tpu.memory_space<vmem>>, vector<4x70xf32>
    %c0_1 = arith.constant 0 : index
    %c0_2 = arith.constant 0 : index
    %1 = vector.load %arg2[%c0_1, %c0_2] : memref<70x1120xf32, #tpu.memory_space<vmem>>, vector<70x1120xf32>
    %cst = arith.constant dense<0.000000e+00> : vector<4x1120xf32>
    %2 = tpu.matmul %0, %1, %cst {dimension_numbers = #tpu.dot_dimension_numbers<[1], [0], [0], [1], [0, 0, 1, 1], [], []>} : vector<4x70xf32>, vector<70x1120xf32>, vector<4x1120xf32> -> vector<4x1120xf32>
    %c0_3 = arith.constant 0 : index
    %c0_4 = arith.constant 0 : index
    %3 = vector.load %arg3[%c0_3, %c0_4] : memref<1x1120xf32, #tpu.memory_space<vmem>>, vector<1x1120xf32>
    %4 = vector.broadcast %3 : vector<1x1120xf32> to vector<4x1120xf32>
    %5 = arith.addf %2, %4 : vector<4x1120xf32>
    %cst_5 = arith.constant 0.000000e+00 : f32
    %6 = vector.broadcast %cst_5 : f32 to vector<4x1120xf32>
    %7 = arith.maximumf %5, %6 : vector<4x1120xf32>
    %c0_6 = arith.constant 0 : index
    %c0_7 = arith.constant 0 : index
    %8 = vector.load %arg4[%c0_6, %c0_7] : memref<1120x672xf32, #tpu.memory_space<vmem>>, vector<1120x672xf32>
    %cst_8 = arith.constant dense<0.000000e+00> : vector<4x672xf32>
    %9 = tpu.matmul %7, %8, %cst_8 {dimension_numbers = #tpu.dot_dimension_numbers<[1], [0], [0], [1], [0, 0, 1, 1], [], []>} : vector<4x1120xf32>, vector<1120x672xf32>, vector<4x672xf32> -> vector<4x672xf32>
    %c0_9 = arith.constant 0 : index
    %c0_10 = arith.constant 0 : index
    %10 = vector.load %arg5[%c0_9, %c0_10] : memref<1x672xf32, #tpu.memory_space<vmem>>, vector<1x672xf32>
    %11 = vector.broadcast %10 : vector<1x672xf32> to vector<4x672xf32>
    %12 = arith.addf %9, %11 : vector<4x672xf32>
    %cst_11 = arith.constant 0.000000e+00 : f32
    %13 = vector.broadcast %cst_11 : f32 to vector<4x672xf32>
    %14 = arith.maximumf %12, %13 : vector<4x672xf32>
    %c0_12 = arith.constant 0 : index
    %c0_13 = arith.constant 0 : index
    %15 = vector.load %arg6[%c0_12, %c0_13] : memref<672x512xf32, #tpu.memory_space<vmem>>, vector<672x512xf32>
    %cst_14 = arith.constant dense<0.000000e+00> : vector<4x512xf32>
    %16 = tpu.matmul %14, %15, %cst_14 {dimension_numbers = #tpu.dot_dimension_numbers<[1], [0], [0], [1], [0, 0, 1, 1], [], []>} : vector<4x672xf32>, vector<672x512xf32>, vector<4x512xf32> -> vector<4x512xf32>
    %c0_15 = arith.constant 0 : index
    %c0_16 = arith.constant 0 : index
    %17 = vector.load %arg7[%c0_15, %c0_16] : memref<1x512xf32, #tpu.memory_space<vmem>>, vector<1x512xf32>
    %18 = vector.broadcast %17 : vector<1x512xf32> to vector<4x512xf32>
    %19 = arith.addf %16, %18 : vector<4x512xf32>
    %cst_17 = arith.constant 0.000000e+00 : f32
    %20 = vector.broadcast %cst_17 : f32 to vector<4x512xf32>
    %21 = arith.maximumf %19, %20 : vector<4x512xf32>
    %c0_18 = arith.constant 0 : index
    %c0_19 = arith.constant 0 : index
    %22 = vector.load %arg8[%c0_18, %c0_19] : memref<512x512xf32, #tpu.memory_space<vmem>>, vector<512x512xf32>
    %cst_20 = arith.constant dense<0.000000e+00> : vector<4x512xf32>
    %23 = tpu.matmul %21, %22, %cst_20 {dimension_numbers = #tpu.dot_dimension_numbers<[1], [0], [0], [1], [0, 0, 1, 1], [], []>} : vector<4x512xf32>, vector<512x512xf32>, vector<4x512xf32> -> vector<4x512xf32>
    %c0_21 = arith.constant 0 : index
    %c0_22 = arith.constant 0 : index
    %24 = vector.load %arg9[%c0_21, %c0_22] : memref<1x512xf32, #tpu.memory_space<vmem>>, vector<1x512xf32>
    %25 = vector.broadcast %24 : vector<1x512xf32> to vector<4x512xf32>
    %26 = arith.addf %23, %25 : vector<4x512xf32>
    %cst_23 = arith.constant 0.000000e+00 : f32
    %27 = vector.broadcast %cst_23 : f32 to vector<4x512xf32>
    %28 = arith.maximumf %26, %27 : vector<4x512xf32>
    %c0_24 = arith.constant 0 : index
    %c0_25 = arith.constant 0 : index
    %29 = vector.load %arg10[%c0_24, %c0_25] : memref<512x32xf32, #tpu.memory_space<vmem>>, vector<512x32xf32>
    %cst_26 = arith.constant dense<0.000000e+00> : vector<4x32xf32>
    %30 = tpu.matmul %28, %29, %cst_26 {dimension_numbers = #tpu.dot_dimension_numbers<[1], [0], [0], [1], [0, 0, 1, 1], [], []>} : vector<4x512xf32>, vector<512x32xf32>, vector<4x32xf32> -> vector<4x32xf32>
    %c0_27 = arith.constant 0 : index
    %c0_28 = arith.constant 0 : index
    %31 = vector.load %arg11[%c0_27, %c0_28] : memref<1x32xf32, #tpu.memory_space<vmem>>, vector<1x32xf32>
    %32 = vector.broadcast %31 : vector<1x32xf32> to vector<4x32xf32>
    %33 = arith.addf %30, %32 : vector<4x32xf32>
    %c0_29 = arith.constant 0 : index
    %c0_30 = arith.constant 0 : index
    %34 = vector.load %arg1[%c0_29, %c0_30] : memref<20x14xf32, #tpu.memory_space<vmem>>, vector<20x14xf32>
    %c0_31 = arith.constant 0 : index
    %c0_32 = arith.constant 0 : index
    %35 = vector.load %arg12[%c0_31, %c0_32] : memref<14x32xf32, #tpu.memory_space<vmem>>, vector<14x32xf32>
    %cst_33 = arith.constant dense<0.000000e+00> : vector<20x32xf32>
    %36 = tpu.matmul %34, %35, %cst_33 {dimension_numbers = #tpu.dot_dimension_numbers<[1], [0], [0], [1], [0, 0, 1, 1], [], []>} : vector<20x14xf32>, vector<14x32xf32>, vector<20x32xf32> -> vector<20x32xf32>
    %c0_34 = arith.constant 0 : index
    %c0_35 = arith.constant 0 : index
    %37 = vector.load %arg13[%c0_34, %c0_35] : memref<1x32xf32, #tpu.memory_space<vmem>>, vector<1x32xf32>
    %38 = vector.broadcast %37 : vector<1x32xf32> to vector<20x32xf32>
    %39 = arith.addf %36, %38 : vector<20x32xf32>
    %c0_36 = arith.constant 0 : index
    %c0_37 = arith.constant 0 : index
    %40 = vector.load %arg14[%c0_36, %c0_37] : memref<32x128xf32, #tpu.memory_space<vmem>>, vector<32x128xf32>
    %cst_38 = arith.constant dense<0.000000e+00> : vector<20x128xf32>
    %41 = tpu.matmul %39, %40, %cst_38 {dimension_numbers = #tpu.dot_dimension_numbers<[1], [0], [0], [1], [0, 0, 1, 1], [], []>} : vector<20x32xf32>, vector<32x128xf32>, vector<20x128xf32> -> vector<20x128xf32>
    %c0_39 = arith.constant 0 : index
    %c0_40 = arith.constant 0 : index
    %42 = vector.load %arg15[%c0_39, %c0_40] : memref<1x128xf32, #tpu.memory_space<vmem>>, vector<1x128xf32>
    %43 = vector.broadcast %42 : vector<1x128xf32> to vector<20x128xf32>
    %44 = arith.addf %41, %43 : vector<20x128xf32>
    %cst_41 = arith.constant 0.000000e+00 : f32
    %45 = vector.broadcast %cst_41 : f32 to vector<4x32xf32>
    %cst_42 = arith.constant 0.000000e+00 : f32
    %46 = vector.broadcast %cst_42 : f32 to vector<4x32xf32>
    %47 = vector.extract_strided_slice %44 {offsets = [0, 0], sizes = [4, 128], strides = [1, 1]} : vector<20x128xf32> to vector<4x128xf32>
    %c0_43 = arith.constant 0 : index
    %c0_44 = arith.constant 0 : index
    %48 = vector.load %arg16[%c0_43, %c0_44] : memref<32x128xf32, #tpu.memory_space<vmem>>, vector<32x128xf32>
    %cst_45 = arith.constant dense<0.000000e+00> : vector<4x128xf32>
    %49 = tpu.matmul %45, %48, %cst_45 {dimension_numbers = #tpu.dot_dimension_numbers<[1], [0], [0], [1], [0, 0, 1, 1], [], []>} : vector<4x32xf32>, vector<32x128xf32>, vector<4x128xf32> -> vector<4x128xf32>
    %50 = arith.addf %47, %49 : vector<4x128xf32>
    %51 = arith.negf %50 : vector<4x128xf32>
    %52 = math.exp %51 : vector<4x128xf32>
    %cst_46 = arith.constant 1.000000e+00 : f32
    %53 = vector.broadcast %cst_46 : f32 to vector<4x128xf32>
    %54 = arith.addf %53, %52 : vector<4x128xf32>
    %55 = arith.divf %53, %54 : vector<4x128xf32>
    %56 = math.tanh %50 : vector<4x128xf32>
    %57 = vector.extract_strided_slice %55 {offsets = [0, 0], sizes = [4, 32], strides = [1, 1]} : vector<4x128xf32> to vector<4x32xf32>
    %58 = vector.extract_strided_slice %55 {offsets = [0, 32], sizes = [4, 32], strides = [1, 1]} : vector<4x128xf32> to vector<4x32xf32>
    %59 = vector.extract_strided_slice %56 {offsets = [0, 64], sizes = [4, 32], strides = [1, 1]} : vector<4x128xf32> to vector<4x32xf32>
    %60 = vector.extract_strided_slice %55 {offsets = [0, 96], sizes = [4, 32], strides = [1, 1]} : vector<4x128xf32> to vector<4x32xf32>
    %61 = arith.mulf %58, %46 : vector<4x32xf32>
    %62 = arith.mulf %57, %59 : vector<4x32xf32>
    %63 = arith.addf %61, %62 : vector<4x32xf32>
    %64 = math.tanh %63 : vector<4x32xf32>
    %65 = arith.mulf %60, %64 : vector<4x32xf32>
    %66 = vector.extract_strided_slice %44 {offsets = [4, 0], sizes = [4, 128], strides = [1, 1]} : vector<20x128xf32> to vector<4x128xf32>
    %c0_47 = arith.constant 0 : index
    %c0_48 = arith.constant 0 : index
    %67 = vector.load %arg16[%c0_47, %c0_48] : memref<32x128xf32, #tpu.memory_space<vmem>>, vector<32x128xf32>
    %cst_49 = arith.constant dense<0.000000e+00> : vector<4x128xf32>
    %68 = tpu.matmul %65, %67, %cst_49 {dimension_numbers = #tpu.dot_dimension_numbers<[1], [0], [0], [1], [0, 0, 1, 1], [], []>} : vector<4x32xf32>, vector<32x128xf32>, vector<4x128xf32> -> vector<4x128xf32>
    %69 = arith.addf %66, %68 : vector<4x128xf32>
    %70 = arith.negf %69 : vector<4x128xf32>
    %71 = math.exp %70 : vector<4x128xf32>
    %cst_50 = arith.constant 1.000000e+00 : f32
    %72 = vector.broadcast %cst_50 : f32 to vector<4x128xf32>
    %73 = arith.addf %72, %71 : vector<4x128xf32>
    %74 = arith.divf %72, %73 : vector<4x128xf32>
    %75 = math.tanh %69 : vector<4x128xf32>
    %76 = vector.extract_strided_slice %74 {offsets = [0, 0], sizes = [4, 32], strides = [1, 1]} : vector<4x128xf32> to vector<4x32xf32>
    %77 = vector.extract_strided_slice %74 {offsets = [0, 32], sizes = [4, 32], strides = [1, 1]} : vector<4x128xf32> to vector<4x32xf32>
    %78 = vector.extract_strided_slice %75 {offsets = [0, 64], sizes = [4, 32], strides = [1, 1]} : vector<4x128xf32> to vector<4x32xf32>
    %79 = vector.extract_strided_slice %74 {offsets = [0, 96], sizes = [4, 32], strides = [1, 1]} : vector<4x128xf32> to vector<4x32xf32>
    %80 = arith.mulf %77, %63 : vector<4x32xf32>
    %81 = arith.mulf %76, %78 : vector<4x32xf32>
    %82 = arith.addf %80, %81 : vector<4x32xf32>
    %83 = math.tanh %82 : vector<4x32xf32>
    %84 = arith.mulf %79, %83 : vector<4x32xf32>
    %85 = vector.extract_strided_slice %44 {offsets = [8, 0], sizes = [4, 128], strides = [1, 1]} : vector<20x128xf32> to vector<4x128xf32>
    %c0_51 = arith.constant 0 : index
    %c0_52 = arith.constant 0 : index
    %86 = vector.load %arg16[%c0_51, %c0_52] : memref<32x128xf32, #tpu.memory_space<vmem>>, vector<32x128xf32>
    %cst_53 = arith.constant dense<0.000000e+00> : vector<4x128xf32>
    %87 = tpu.matmul %84, %86, %cst_53 {dimension_numbers = #tpu.dot_dimension_numbers<[1], [0], [0], [1], [0, 0, 1, 1], [], []>} : vector<4x32xf32>, vector<32x128xf32>, vector<4x128xf32> -> vector<4x128xf32>
    %88 = arith.addf %85, %87 : vector<4x128xf32>
    %89 = arith.negf %88 : vector<4x128xf32>
    %90 = math.exp %89 : vector<4x128xf32>
    %cst_54 = arith.constant 1.000000e+00 : f32
    %91 = vector.broadcast %cst_54 : f32 to vector<4x128xf32>
    %92 = arith.addf %91, %90 : vector<4x128xf32>
    %93 = arith.divf %91, %92 : vector<4x128xf32>
    %94 = math.tanh %88 : vector<4x128xf32>
    %95 = vector.extract_strided_slice %93 {offsets = [0, 0], sizes = [4, 32], strides = [1, 1]} : vector<4x128xf32> to vector<4x32xf32>
    %96 = vector.extract_strided_slice %93 {offsets = [0, 32], sizes = [4, 32], strides = [1, 1]} : vector<4x128xf32> to vector<4x32xf32>
    %97 = vector.extract_strided_slice %94 {offsets = [0, 64], sizes = [4, 32], strides = [1, 1]} : vector<4x128xf32> to vector<4x32xf32>
    %98 = vector.extract_strided_slice %93 {offsets = [0, 96], sizes = [4, 32], strides = [1, 1]} : vector<4x128xf32> to vector<4x32xf32>
    %99 = arith.mulf %96, %82 : vector<4x32xf32>
    %100 = arith.mulf %95, %97 : vector<4x32xf32>
    %101 = arith.addf %99, %100 : vector<4x32xf32>
    %102 = math.tanh %101 : vector<4x32xf32>
    %103 = arith.mulf %98, %102 : vector<4x32xf32>
    %104 = vector.extract_strided_slice %44 {offsets = [12, 0], sizes = [4, 128], strides = [1, 1]} : vector<20x128xf32> to vector<4x128xf32>
    %c0_55 = arith.constant 0 : index
    %c0_56 = arith.constant 0 : index
    %105 = vector.load %arg16[%c0_55, %c0_56] : memref<32x128xf32, #tpu.memory_space<vmem>>, vector<32x128xf32>
    %cst_57 = arith.constant dense<0.000000e+00> : vector<4x128xf32>
    %106 = tpu.matmul %103, %105, %cst_57 {dimension_numbers = #tpu.dot_dimension_numbers<[1], [0], [0], [1], [0, 0, 1, 1], [], []>} : vector<4x32xf32>, vector<32x128xf32>, vector<4x128xf32> -> vector<4x128xf32>
    %107 = arith.addf %104, %106 : vector<4x128xf32>
    %108 = arith.negf %107 : vector<4x128xf32>
    %109 = math.exp %108 : vector<4x128xf32>
    %cst_58 = arith.constant 1.000000e+00 : f32
    %110 = vector.broadcast %cst_58 : f32 to vector<4x128xf32>
    %111 = arith.addf %110, %109 : vector<4x128xf32>
    %112 = arith.divf %110, %111 : vector<4x128xf32>
    %113 = math.tanh %107 : vector<4x128xf32>
    %114 = vector.extract_strided_slice %112 {offsets = [0, 0], sizes = [4, 32], strides = [1, 1]} : vector<4x128xf32> to vector<4x32xf32>
    %115 = vector.extract_strided_slice %112 {offsets = [0, 32], sizes = [4, 32], strides = [1, 1]} : vector<4x128xf32> to vector<4x32xf32>
    %116 = vector.extract_strided_slice %113 {offsets = [0, 64], sizes = [4, 32], strides = [1, 1]} : vector<4x128xf32> to vector<4x32xf32>
    %117 = vector.extract_strided_slice %112 {offsets = [0, 96], sizes = [4, 32], strides = [1, 1]} : vector<4x128xf32> to vector<4x32xf32>
    %118 = arith.mulf %115, %101 : vector<4x32xf32>
    %119 = arith.mulf %114, %116 : vector<4x32xf32>
    %120 = arith.addf %118, %119 : vector<4x32xf32>
    %121 = math.tanh %120 : vector<4x32xf32>
    %122 = arith.mulf %117, %121 : vector<4x32xf32>
    %123 = vector.extract_strided_slice %44 {offsets = [16, 0], sizes = [4, 128], strides = [1, 1]} : vector<20x128xf32> to vector<4x128xf32>
    %c0_59 = arith.constant 0 : index
    %c0_60 = arith.constant 0 : index
    %124 = vector.load %arg16[%c0_59, %c0_60] : memref<32x128xf32, #tpu.memory_space<vmem>>, vector<32x128xf32>
    %cst_61 = arith.constant dense<0.000000e+00> : vector<4x128xf32>
    %125 = tpu.matmul %122, %124, %cst_61 {dimension_numbers = #tpu.dot_dimension_numbers<[1], [0], [0], [1], [0, 0, 1, 1], [], []>} : vector<4x32xf32>, vector<32x128xf32>, vector<4x128xf32> -> vector<4x128xf32>
    %126 = arith.addf %123, %125 : vector<4x128xf32>
    %127 = arith.negf %126 : vector<4x128xf32>
    %128 = math.exp %127 : vector<4x128xf32>
    %cst_62 = arith.constant 1.000000e+00 : f32
    %129 = vector.broadcast %cst_62 : f32 to vector<4x128xf32>
    %130 = arith.addf %129, %128 : vector<4x128xf32>
    %131 = arith.divf %129, %130 : vector<4x128xf32>
    %132 = math.tanh %126 : vector<4x128xf32>
    %133 = vector.extract_strided_slice %131 {offsets = [0, 0], sizes = [4, 32], strides = [1, 1]} : vector<4x128xf32> to vector<4x32xf32>
    %134 = vector.extract_strided_slice %131 {offsets = [0, 32], sizes = [4, 32], strides = [1, 1]} : vector<4x128xf32> to vector<4x32xf32>
    %135 = vector.extract_strided_slice %132 {offsets = [0, 64], sizes = [4, 32], strides = [1, 1]} : vector<4x128xf32> to vector<4x32xf32>
    %136 = vector.extract_strided_slice %131 {offsets = [0, 96], sizes = [4, 32], strides = [1, 1]} : vector<4x128xf32> to vector<4x32xf32>
    %137 = arith.mulf %134, %120 : vector<4x32xf32>
    %138 = arith.mulf %133, %135 : vector<4x32xf32>
    %139 = arith.addf %137, %138 : vector<4x32xf32>
    %140 = math.tanh %139 : vector<4x32xf32>
    %141 = arith.mulf %136, %140 : vector<4x32xf32>
    %c0_63 = arith.constant 0 : index
    %c0_64 = arith.constant 0 : index
    %142 = vector.load %arg17[%c0_63, %c0_64] : memref<32x32xf32, #tpu.memory_space<vmem>>, vector<32x32xf32>
    %cst_65 = arith.constant dense<0.000000e+00> : vector<4x32xf32>
    %143 = tpu.matmul %141, %142, %cst_65 {dimension_numbers = #tpu.dot_dimension_numbers<[1], [0], [0], [1], [0, 0, 1, 1], [], []>} : vector<4x32xf32>, vector<32x32xf32>, vector<4x32xf32> -> vector<4x32xf32>
    %c0_66 = arith.constant 0 : index
    %c0_67 = arith.constant 0 : index
    %144 = vector.load %arg18[%c0_66, %c0_67] : memref<1x32xf32, #tpu.memory_space<vmem>>, vector<1x32xf32>
    %145 = vector.broadcast %144 : vector<1x32xf32> to vector<4x32xf32>
    %146 = arith.addf %143, %145 : vector<4x32xf32>
    %cst_68 = arith.constant dense<0.000000e+00> : vector<4xf32>
    %147 = vector.multi_reduction <add>, %33, %cst_68 [1] : vector<4x32xf32> to vector<4xf32>
    %148 = vector.shape_cast %147 : vector<4xf32> to vector<4x1xf32>
    %cst_69 = arith.constant dense<0.000000e+00> : vector<4xf32>
    %149 = vector.multi_reduction <add>, %146, %cst_69 [1] : vector<4x32xf32> to vector<4xf32>
    %150 = vector.shape_cast %149 : vector<4xf32> to vector<4x1xf32>
    %151 = arith.addf %148, %150 : vector<4x1xf32>
    %cst_70 = arith.constant 1.562500e-02 : f32
    %152 = vector.broadcast %cst_70 : f32 to vector<4x1xf32>
    %153 = arith.mulf %151, %152 : vector<4x1xf32>
    %c0_71 = arith.constant 0 : index
    %c0_72 = arith.constant 0 : index
    %154 = vector.load %arg19[%c0_71, %c0_72] : memref<32x32xf32, #tpu.memory_space<vmem>>, vector<32x32xf32>
    %cst_73 = arith.constant dense<0.000000e+00> : vector<4x32xf32>
    %155 = tpu.matmul %33, %154, %cst_73 {dimension_numbers = #tpu.dot_dimension_numbers<[1], [0], [0], [1], [0, 0, 1, 1], [], []>} : vector<4x32xf32>, vector<32x32xf32>, vector<4x32xf32> -> vector<4x32xf32>
    %c0_74 = arith.constant 0 : index
    %c0_75 = arith.constant 0 : index
    %156 = vector.load %arg20[%c0_74, %c0_75] : memref<32x32xf32, #tpu.memory_space<vmem>>, vector<32x32xf32>
    %cst_76 = arith.constant dense<0.000000e+00> : vector<4x32xf32>
    %157 = tpu.matmul %146, %156, %cst_76 {dimension_numbers = #tpu.dot_dimension_numbers<[1], [0], [0], [1], [0, 0, 1, 1], [], []>} : vector<4x32xf32>, vector<32x32xf32>, vector<4x32xf32> -> vector<4x32xf32>
    %158 = arith.addf %155, %157 : vector<4x32xf32>
    %c0_77 = arith.constant 0 : index
    %c0_78 = arith.constant 0 : index
    %159 = vector.load %arg21[%c0_77, %c0_78] : memref<1x32xf32, #tpu.memory_space<vmem>>, vector<1x32xf32>
    %160 = vector.broadcast %153 : vector<4x1xf32> to vector<4x32xf32>
    %161 = vector.broadcast %159 : vector<1x32xf32> to vector<4x32xf32>
    %162 = arith.mulf %160, %161 : vector<4x32xf32>
    %163 = arith.subf %158, %162 : vector<4x32xf32>
    %164 = math.tanh %163 : vector<4x32xf32>
    %c0_79 = arith.constant 0 : index
    %c0_80 = arith.constant 0 : index
    %165 = vector.load %arg22[%c0_79, %c0_80] : memref<4x32xf32, #tpu.memory_space<vmem>>, vector<4x32xf32>
    tpu.vector_store %arg22[%c0_79, %c0_80], %164 {strides = array<i32>} : memref<4x32xf32, #tpu.memory_space<vmem>>, vector<4x32xf32>,
    return
  }
}

</mosaic_0001>

<llo_original>
// kernel: fused_forward.1
$region0: #{fused_forward.1}
  #allocation0 [shape = 'u32[]', space=smem, size = 0x4, offset = 0x4, fixed_abs, tag = 'smem constant byte address 0x4 - core index']
  #allocation1 [shape = 'u32[144,128]{1,0:T(1,128)}', space=vmem, size = 0x12000, scoped, tag = 'internal scratch']
  %s0 = inlined_call_operand.vmem [shape: f32[4,70], index: 0, kind: input, shape index: {}]
  %s1 = inlined_call_operand.vmem [shape: f32[20,14], index: 1, kind: input, shape index: {}]
  %s2 = inlined_call_operand.vmem [shape: f32[70,1120], index: 2, kind: input, shape index: {}]
  %s3 = inlined_call_operand.vmem [shape: f32[1,1120], index: 3, kind: input, shape index: {}]
  %s4 = inlined_call_operand.vmem [shape: f32[1120,672], index: 4, kind: input, shape index: {}]
  %s5 = inlined_call_operand.vmem [shape: f32[1,672], index: 5, kind: input, shape index: {}]
  %s6 = inlined_call_operand.vmem [shape: f32[672,512], index: 6, kind: input, shape index: {}]
  %s7 = inlined_call_operand.vmem [shape: f32[1,512], index: 7, kind: input, shape index: {}]
  %s8 = inlined_call_operand.vmem [shape: f32[512,512], index: 8, kind: input, shape index: {}]
  %s9 = inlined_call_operand.vmem [shape: f32[1,512], index: 9, kind: input, shape index: {}]
  %s10 = inlined_call_operand.vmem [shape: f32[512,32], index: 10, kind: input, shape index: {}]
  %s11 = inlined_call_operand.vmem [shape: f32[1,32], index: 11, kind: input, shape index: {}]
  %s12 = inlined_call_operand.vmem [shape: f32[14,32], index: 12, kind: input, shape index: {}]
  %s13 = inlined_call_operand.vmem [shape: f32[1,32], index: 13, kind: input, shape index: {}]
  %s14 = inlined_call_operand.vmem [shape: f32[32,128], index: 14, kind: input, shape index: {}]
  %s15 = inlined_call_operand.vmem [shape: f32[1,128], index: 15, kind: input, shape index: {}]
  %s16 = inlined_call_operand.vmem [shape: f32[32,128], index: 16, kind: input, shape index: {}]
  %s17 = inlined_call_operand.vmem [shape: f32[32,32], index: 17, kind: input, shape index: {}]
  %s18 = inlined_call_operand.vmem [shape: f32[1,32], index: 18, kind: input, shape index: {}]
  %s19 = inlined_call_operand.vmem [shape: f32[32,32], index: 19, kind: input, shape index: {}]
  %s20 = inlined_call_operand.vmem [shape: f32[32,32], index: 20, kind: input, shape index: {}]
  %s21 = inlined_call_operand.vmem [shape: f32[1,32], index: 21, kind: input, shape index: {}]
  %s22 = inlined_call_operand.hbm [shape: f32[4,32], index: 22, kind: output, shape index: {}]
  %s23 = sld [smem:[#allocation0]]
  $region98: #{fused_forward.1} parent=0
    _
  %s25 = ssub.s32 1, %s23
  %s26 = scalar_select 0, %s25, %s23
  $region1: #{fused_forward.1} parent=0
    #allocation2 [shape = 'u8[2048]{0}', space=vmem, size = 0x800, scoped, tag = 'output window, operand 0, single buffered']
    #allocation3 [shape = 's32[1]{0}', space=sflag, size = 0x4, scoped, tag = 'scoped memory for fused_forward.1']
    %27 = vsyncpa [#allocation3], 0
    // Predicated region
    $region2: #{fused_forward.1} parent=1 // pred_check
      _
    $region3: #{fused_forward.1} parent=1 // pred_check_branch
      %29 = sbr.rel (0) target = $region5
    $region4: #{fused_forward.1} parent=1 // pred_region
      _
    $region5: #{fused_forward.1} parent=1 // pred_fallthru
      _
    // Predicated region
    $region6: #{fused_forward.1} parent=1 // pred_check
      _
    $region7: #{fused_forward.1} parent=1 // pred_check_branch
      %31 = sbr.rel (0) target = $region9
    $region8: #{fused_forward.1} parent=1 // pred_region
      _
    $region9: #{fused_forward.1} parent=1 // pred_fallthru
      _
    // Predicated region
    $region10: #{fused_forward.1} parent=1 // pred_check
      _
    $region11: #{fused_forward.1} parent=1 // pred_check_branch
      %33 = sbr.rel (0) target = $region13
    $region12: #{fused_forward.1} parent=1 // pred_region
      _
    $region13: #{fused_forward.1} parent=1 // pred_fallthru
      _
    // Predicated region
    $region14: #{fused_forward.1} parent=1 // pred_check
      _
    $region15: #{fused_forward.1} parent=1 // pred_check_branch
      %35 = sbr.rel (0) target = $region17
    $region16: #{fused_forward.1} parent=1 // pred_region
      _
    $region17: #{fused_forward.1} parent=1 // pred_fallthru
      _
    // Predicated region
    $region18: #{fused_forward.1} parent=1 // pred_check
      _
    $region19: #{fused_forward.1} parent=1 // pred_check_branch
      %37 = sbr.rel (0) target = $region21
    $region20: #{fused_forward.1} parent=1 // pred_region
      _
    $region21: #{fused_forward.1} parent=1 // pred_fallthru
      _
    // Predicated region
    $region22: #{fused_forward.1} parent=1 // pred_check
      _
    $region23: #{fused_forward.1} parent=1 // pred_check_branch
      %39 = sbr.rel (0) target = $region25
    $region24: #{fused_forward.1} parent=1 // pred_region
      _
    $region25: #{fused_forward.1} parent=1 // pred_fallthru
      _
    // Predicated region
    $region26: #{fused_forward.1} parent=1 // pred_check
      _
    $region27: #{fused_forward.1} parent=1 // pred_check_branch
      %41 = sbr.rel (0) target = $region29
    $region28: #{fused_forward.1} parent=1 // pred_region
      _
    $region29: #{fused_forward.1} parent=1 // pred_fallthru
      _
    // Predicated region
    $region30: #{fused_forward.1} parent=1 // pred_check
      _
    $region31: #{fused_forward.1} parent=1 // pred_check_branch
      %43 = sbr.rel (0) target = $region33
    $region32: #{fused_forward.1} parent=1 // pred_region
      _
    $region33: #{fused_forward.1} parent=1 // pred_fallthru
      _
    // Predicated region
    $region34: #{fused_forward.1} parent=1 // pred_check
      _
    $region35: #{fused_forward.1} parent=1 // pred_check_branch
      %45 = sbr.rel (0) target = $region37
    $region36: #{fused_forward.1} parent=1 // pred_region
      _
    $region37: #{fused_forward.1} parent=1 // pred_fallthru
      _
    // Predicated region
    $region38: #{fused_forward.1} parent=1 // pred_check
      _
    $region39: #{fused_forward.1} parent=1 // pred_check_branch
      %47 = sbr.rel (0) target = $region41
    $region40: #{fused_forward.1} parent=1 // pred_region
      _
    $region41: #{fused_forward.1} parent=1 // pred_fallthru
      _
    // Predicated region
    $region42: #{fused_forward.1} parent=1 // pred_check
      _
    $region43: #{fused_forward.1} parent=1 // pred_check_branch
      %49 = sbr.rel (0) target = $region45
    $region44: #{fused_forward.1} parent=1 // pred_region
      _
    $region45: #{fused_forward.1} parent=1 // pred_fallthru
      _
    // Predicated region
    $region46: #{fused_forward.1} parent=1 // pred_check
      _
    $region47: #{fused_forward.1} parent=1 // pred_check_branch
      %51 = sbr.rel (0) target = $region49
    $region48: #{fused_forward.1} parent=1 // pred_region
      _
    $region49: #{fused_forward.1} parent=1 // pred_fallthru
      _
    // Predicated region
    $region50: #{fused_forward.1} parent=1 // pred_check
      _
    $region51: #{fused_forward.1} parent=1 // pred_check_branch
      %53 = sbr.rel (0) target = $region53
    $region52: #{fused_forward.1} parent=1 // pred_region
      _
    $region53: #{fused_forward.1} parent=1 // pred_fallthru
      _
    // Predicated region
    $region54: #{fused_forward.1} parent=1 // pred_check
      _
    $region55: #{fused_forward.1} parent=1 // pred_check_branch
      %55 = sbr.rel (0) target = $region57
    $region56: #{fused_forward.1} parent=1 // pred_region
      _
    $region57: #{fused_forward.1} parent=1 // pred_fallthru
      _
    // Predicated region
    $region58: #{fused_forward.1} parent=1 // pred_check
      _
    $region59: #{fused_forward.1} parent=1 // pred_check_branch
      %57 = sbr.rel (0) target = $region61
    $region60: #{fused_forward.1} parent=1 // pred_region
      _
    $region61: #{fused_forward.1} parent=1 // pred_fallthru
      _
    // Predicated region
    $region62: #{fused_forward.1} parent=1 // pred_check
      _
    $region63: #{fused_forward.1} parent=1 // pred_check_branch
      %59 = sbr.rel (0) target = $region65
    $region64: #{fused_forward.1} parent=1 // pred_region
      _
    $region65: #{fused_forward.1} parent=1 // pred_fallthru
      _
    // Predicated region
    $region66: #{fused_forward.1} parent=1 // pred_check
      _
    $region67: #{fused_forward.1} parent=1 // pred_check_branch
      %61 = sbr.rel (0) target = $region69
    $region68: #{fused_forward.1} parent=1 // pred_region
      _
    $region69: #{fused_forward.1} parent=1 // pred_fallthru
      _
    // Predicated region
    $region70: #{fused_forward.1} parent=1 // pred_check
      _
    $region71: #{fused_forward.1} parent=1 // pred_check_branch
      %63 = sbr.rel (0) target = $region73
    $region72: #{fused_forward.1} parent=1 // pred_region
      _
    $region73: #{fused_forward.1} parent=1 // pred_fallthru
      _
    // Predicated region
    $region74: #{fused_forward.1} parent=1 // pred_check
      _
    $region75: #{fused_forward.1} parent=1 // pred_check_branch
      %65 = sbr.rel (0) target = $region77
    $region76: #{fused_forward.1} parent=1 // pred_region
      _
    $region77: #{fused_forward.1} parent=1 // pred_fallthru
      _
    // Predicated region
    $region78: #{fused_forward.1} parent=1 // pred_check
      _
    $region79: #{fused_forward.1} parent=1 // pred_check_branch
      %67 = sbr.rel (0) target = $region81
    $region80: #{fused_forward.1} parent=1 // pred_region
      _
    $region81: #{fused_forward.1} parent=1 // pred_fallthru
      _
    // Predicated region
    $region82: #{fused_forward.1} parent=1 // pred_check
      _
    $region83: #{fused_forward.1} parent=1 // pred_check_branch
      %69 = sbr.rel (0) target = $region85
    $region84: #{fused_forward.1} parent=1 // pred_region
      _
    $region85: #{fused_forward.1} parent=1 // pred_fallthru
      _
    // Predicated region
    $region86: #{fused_forward.1} parent=1 // pred_check
      _
    $region87: #{fused_forward.1} parent=1 // pred_check_branch
      %71 = sbr.rel (0) target = $region89
    $region88: #{fused_forward.1} parent=1 // pred_region
      _
    $region89: #{fused_forward.1} parent=1 // pred_fallthru
      _
    %v72 = vld [vmem:[%s0] sm:$0xf]
    %v73 = vld [vmem:[%s2] sm:$0xff]
    %v74 = vld [vmem:[%s2 + $0x8] sm:$0xff]
    %v75 = vld [vmem:[%s2 + $0x10] sm:$0xff]
    %v76 = vld [vmem:[%s2 + $0x18] sm:$0xff]
    %v77 = vld [vmem:[%s2 + $0x20] sm:$0xff]
    %v78 = vld [vmem:[%s2 + $0x28] sm:$0xff]
    %v79 = vld [vmem:[%s2 + $0x30] sm:$0xff]
    %v80 = vld [vmem:[%s2 + $0x38] sm:$0xff]
    %v81 = vld [vmem:[%s2 + $0x40] sm:$0xff]
    %v82 = vld [vmem:[%s2 + $0x48] sm:$0xff]
    %v83 = vld [vmem:[%s2 + $0x50] sm:$0xff]
    %v84 = vld [vmem:[%s2 + $0x58] sm:$0xff]
    %v85 = vld [vmem:[%s2 + $0x60] sm:$0xff]
    %v86 = vld [vmem:[%s2 + $0x68] sm:$0xff]
    %v87 = vld [vmem:[%s2 + $0x70] sm:$0xff]
    %v88 = vld [vmem:[%s2 + $0x78] sm:$0xff]
    %v89 = vld [vmem:[%s2 + $0x80] sm:$0xff]
    %v90 = vld [vmem:[%s2 + $0x88] sm:$0xff]
    %v91 = vld [vmem:[%s2 + $0x90] sm:$0xff]
    %v92 = vld [vmem:[%s2 + $0x98] sm:$0xff]
    %v93 = vld [vmem:[%s2 + $0xa0] sm:$0xff]
    %v94 = vld [vmem:[%s2 + $0xa8] sm:$0xff]
    %v95 = vld [vmem:[%s2 + $0xb0] sm:$0xff]
    %v96 = vld [vmem:[%s2 + $0xb8] sm:$0xff]
    %v97 = vld [vmem:[%s2 + $0xc0] sm:$0xff]
    %v98 = vld [vmem:[%s2 + $0xc8] sm:$0xff]
    %v99 = vld [vmem:[%s2 + $0xd0] sm:$0xff]
    %v100 = vld [vmem:[%s2 + $0xd8] sm:$0xff]
    %v101 = vld [vmem:[%s2 + $0xe0] sm:$0xff]
    %v102 = vld [vmem:[%s2 + $0xe8] sm:$0xff]
    %v103 = vld [vmem:[%s2 + $0xf0] sm:$0xff]
    %v104 = vld [vmem:[%s2 + $0xf8] sm:$0xff]
    %v105 = vld [vmem:[%s2 + $0x100] sm:$0xff]
    %v106 = vld [vmem:[%s2 + $0x108] sm:$0xff]
    %v107 = vld [vmem:[%s2 + $0x110] sm:$0xff]
    %v108 = vld [vmem:[%s2 + $0x118] sm:$0xff]
    %v109 = vld [vmem:[%s2 + $0x120] sm:$0xff]
    %v110 = vld [vmem:[%s2 + $0x128] sm:$0xff]
    %v111 = vld [vmem:[%s2 + $0x130] sm:$0xff]
    %v112 = vld [vmem:[%s2 + $0x138] sm:$0xff]
    %v113 = vld [vmem:[%s2 + $0x140] sm:$0xff]
    %v114 = vld [vmem:[%s2 + $0x148] sm:$0xff]
    %v115 = vld [vmem:[%s2 + $0x150] sm:$0xff]
    %v116 = vld [vmem:[%s2 + $0x158] sm:$0xff]
    %v117 = vld [vmem:[%s2 + $0x160] sm:$0xff]
    %v118 = vld [vmem:[%s2 + $0x168] sm:$0xff]
    %v119 = vld [vmem:[%s2 + $0x170] sm:$0xff]
    %v120 = vld [vmem:[%s2 + $0x178] sm:$0xff]
    %v121 = vld [vmem:[%s2 + $0x180] sm:$0xff]
    %v122 = vld [vmem:[%s2 + $0x188] sm:$0xff]
    %v123 = vld [vmem:[%s2 + $0x190] sm:$0xff]
    %v124 = vld [vmem:[%s2 + $0x198] sm:$0xff]
    %v125 = vld [vmem:[%s2 + $0x1a0] sm:$0xff]
    %v126 = vld [vmem:[%s2 + $0x1a8] sm:$0xff]
    %v127 = vld [vmem:[%s2 + $0x1b0] sm:$0xff]
    %v128 = vld [vmem:[%s2 + $0x1b8] sm:$0xff]
    %v129 = vld [vmem:[%s2 + $0x1c0] sm:$0xff]
    %v130 = vld [vmem:[%s2 + $0x1c8] sm:$0xff]
    %v131 = vld [vmem:[%s2 + $0x1d0] sm:$0xff]
    %v132 = vld [vmem:[%s2 + $0x1d8] sm:$0xff]
    %v133 = vld [vmem:[%s2 + $0x1e0] sm:$0xff]
    %v134 = vld [vmem:[%s2 + $0x1e8] sm:$0xff]
    %v135 = vld [vmem:[%s2 + $0x1f0] sm:$0xff]
    %v136 = vld [vmem:[%s2 + $0x1f8] sm:$0xff]
    %v137 = vld [vmem:[%s2 + $0x200] sm:$0xff]
    %v138 = vld [vmem:[%s2 + $0x208] sm:$0xff]
    %v139 = vld [vmem:[%s2 + $0x210] sm:$0xff]
    %v140 = vld [vmem:[%s2 + $0x218] sm:$0xff]
    %v141 = vld [vmem:[%s2 + $0x220] sm:$0xff]
    %v142 = vld [vmem:[%s2 + $0x228] sm:$0xff]
    %v143 = vld [vmem:[%s2 + $0x230] sm:$0xff]
    %v144 = vld [vmem:[%s2 + $0x238] sm:$0xff]
    %v145 = vld [vmem:[%s2 + $0x240] sm:$0x3f]
    %v146 = vld [vmem:[%s2 + $0x248] sm:$0x3f]
    %v147 = vld [vmem:[%s2 + $0x250] sm:$0x3f]
    %v148 = vld [vmem:[%s2 + $0x258] sm:$0x3f]
    %v149 = vld [vmem:[%s2 + $0x260] sm:$0x3f]
    %v150 = vld [vmem:[%s2 + $0x268] sm:$0x3f]
    %v151 = vld [vmem:[%s2 + $0x270] sm:$0x3f]
    %v152 = vld [vmem:[%s2 + $0x278] sm:$0x3f]
    %v153 = vld [vmem:[%s2 + $0x280] sm:$0x3f]
    %v154 = vld [vmem:[%s3] sm:$0xff]
    %v155 = vld [vmem:[%s3 + $0x8] sm:$0x1]
    %v158 = vlaneseq
    %v159 = vshrl.u32 %v158, 7
    %v160 = vsub.s32 0, %v159
    %v161 = vrot.slane %v154, %v160
    %v162 = vlaneseq
    %v163 = vshrl.u32 %v162, 7
    %v164 = vsub.s32 1, %v163
    %v165 = vrot.slane %v154, %v164
    %v166 = vlaneseq
    %v167 = vshrl.u32 %v166, 7
    %v168 = vsub.s32 2, %v167
    %v169 = vrot.slane %v154, %v168
    %v170 = vlaneseq
    %v171 = vshrl.u32 %v170, 7
    %v172 = vsub.s32 3, %v171
    %v173 = vrot.slane %v154, %v172
    %v174 = vlaneseq
    %v175 = vshrl.u32 %v174, 7
    %v176 = vsub.s32 4, %v175
    %v177 = vrot.slane %v154, %v176
    %v178 = vlaneseq
    %v179 = vshrl.u32 %v178, 7
    %v180 = vsub.s32 5, %v179
    %v181 = vrot.slane %v154, %v180
    %v182 = vlaneseq
    %v183 = vshrl.u32 %v182, 7
    %v184 = vsub.s32 6, %v183
    %v185 = vrot.slane %v154, %v184
    %v186 = vlaneseq
    %v187 = vshrl.u32 %v186, 7
    %v188 = vsub.s32 7, %v187
    %v189 = vrot.slane %v154, %v188
    %v190 = vlaneseq
    %v191 = vshrl.u32 %v190, 7
    %v192 = vsub.s32 0, %v191
    %v193 = vrot.slane %v155, %v192
    %vm203 = vcmask 572416
    %v205 = vsel %vm203, %v72, 0
    %vm207 = vcmask 1045504
    %v209 = vsel %vm207, %v145, 0
    %v212 = vsel %vm207, %v146, 0
    %v215 = vsel %vm207, %v147, 0
    %v218 = vsel %vm207, %v148, 0
    %v221 = vsel %vm207, %v149, 0
    %v224 = vsel %vm207, %v150, 0
    %v227 = vsel %vm207, %v151, 0
    %v230 = vsel %vm207, %v152, 0
    %v233 = vsel %vm207, %v153, 0
    %235 = vmatprep.subr.mxu0 %v74
    %236 = vmatpush1.msra.mxu0 %v73
    %237 = vmatprep.subr.mxu0 %v83
    %238 = vmatpush1.msra.mxu0 %v82
    %239 = vmatprep.subr.mxu0 %v92
    %240 = vmatpush1.msra.mxu0 %v91
    %241 = vmatprep.subr.mxu0 %v101
    %242 = vmatpush1.msra.mxu0 %v100
    %243 = vmatprep.subr.mxu0 %v110
    %244 = vmatpush1.msra.mxu0 %v109
    %245 = vmatprep.subr.mxu0 %v119
    %246 = vmatpush1.msra.mxu0 %v118
    %247 = vmatprep.subr.mxu0 %v128
    %248 = vmatpush1.msra.mxu0 %v127
    %249 = vmatprep.subr.mxu0 %v137
    %250 = vmatpush1.msra.mxu0 %v136
    %251 = vmatprep.subr.mxu0 %v212
    %252 = vmatpush1.msra.mxu0 %v209
    %253 = vmatprep.subr.mxu0 0.0
    %254 = vmatpush1.msra.mxu0 0.0
    %255 = vmatprep.subr.mxu0 0.0
    %256 = vmatpush1.msra.mxu0 0.0
    %257 = vmatprep.subr.mxu0 0.0
    %258 = vmatpush1.msra.mxu0 0.0
    %259 = vmatprep.subr.mxu0 0.0
    %260 = vmatpush1.msra.mxu0 0.0
    %261 = vmatprep.subr.mxu0 0.0
    %262 = vmatpush1.msra.mxu0 0.0
    %263 = vmatprep.subr.mxu0 0.0
    %264 = vmatpush1.msra.mxu0 0.0
    %265 = vmatprep.subr.mxu0 0.0
    %266 = vmatpush1.msra.mxu0 0.0
    %267 = vmatprep.subr.mxu0 0.0
    %268 = vmatpush1.msra.mxu0 0.0
    %269 = vmatprep.subr.mxu0 0.0
    %270 = vmatpush1.msra.mxu0 0.0
    %271 = vmatprep.subr.mxu0 0.0
    %272 = vmatpush1.msra.mxu0 0.0
    %273 = vmatprep.subr.mxu0 0.0
    %274 = vmatpush1.msra.mxu0 0.0
    %275 = vmatprep.subr.mxu0 0.0
    %276 = vmatpush1.msra.mxu0 0.0
    %277 = vmatprep.subr.mxu0 0.0
    %278 = vmatpush1.msra.mxu0 0.0
    %279 = vmatprep.subr.mxu0 0.0
    %280 = vmatpush1.msra.mxu0 0.0
    %281 = vmatprep.subr.mxu0 0.0
    %282 = vmatpush1.msra.mxu0 0.0
    %283 = vmatprep.subr.mxu0 0.0
    %284 = vmatpush1.msra.mxu0 0.0
    %285 = vmatprep.subr.mxu0 0.0
    %286 = vmatpush1.msra.mxu0 0.0
    %287 = vmatprep.subr.mxu0 0.0
    %288 = vmatpush1.msra.mxu0 0.0
    %289 = vmatprep.subr.mxu0 0.0
    %290 = vmatpush1.msra.mxu0 0.0
    %291 = vmatprep.subr.mxu0 0.0
    %292 = vmatpush1.msra.mxu0 0.0
    %293 = vmatprep.subr.mxu0 0.0
    %294 = vmatpush1.msra.mxu0 0.0
    %295 = vmatprep.subr.mxu0 0.0
    %296 = vmatpush1.msra.mxu0 0.0
    %297 = vmatprep.subr.mxu0 0.0
    %298 = vmatpush1.msra.mxu0 0.0
    %299 = vmatprep.mubr.f32.mxu0 0.0
    %300 = vmatmul.mubr.f32.gmra.mrb[0].mxu0 %v205
    %v301 = vpop.f32.mrb[0].mxu0
    %v302 = vadd.f32 %v161, %v301
    %v303 = vpop.f32.mrb[0].mxu0
    %v304 = vadd.f32 %v165, %v303
    %305 = vdwg.mxu0
    %306 = vmatprep.subr.mxu0 %v76
    %307 = vmatpush1.msra.mxu0 %v75
    %308 = vmatprep.subr.mxu0 %v85
    %309 = vmatpush1.msra.mxu0 %v84
    %310 = vmatprep.subr.mxu0 %v94
    %311 = vmatpush1.msra.mxu0 %v93
    %312 = vmatprep.subr.mxu0 %v103
    %313 = vmatpush1.msra.mxu0 %v102
    %314 = vmatprep.subr.mxu0 %v112
    %315 = vmatpush1.msra.mxu0 %v111
    %316 = vmatprep.subr.mxu0 %v121
    %317 = vmatpush1.msra.mxu0 %v120
    %318 = vmatprep.subr.mxu0 %v130
    %319 = vmatpush1.msra.mxu0 %v129
    %320 = vmatprep.subr.mxu0 %v139
    %321 = vmatpush1.msra.mxu0 %v138
    %322 = vmatprep.subr.mxu0 %v218
    %323 = vmatpush1.msra.mxu0 %v215
    %324 = vmatprep.subr.mxu0 0.0
    %325 = vmatpush1.msra.mxu0 0.0
    %326 = vmatprep.subr.mxu0 0.0
    %327 = vmatpush1.msra.mxu0 0.0
    %328 = vmatprep.subr.mxu0 0.0
    %329 = vmatpush1.msra.mxu0 0.0
    %330 = vmatprep.subr.mxu0 0.0
    %331 = vmatpush1.msra.mxu0 0.0
    %332 = vmatprep.subr.mxu0 0.0
    %333 = vmatpush1.msra.mxu0 0.0
    %334 = vmatprep.subr.mxu0 0.0
    %335 = vmatpush1.msra.mxu0 0.0
    %336 = vmatprep.subr.mxu0 0.0
    %337 = vmatpush1.msra.mxu0 0.0
    %338 = vmatprep.subr.mxu0 0.0
    %339 = vmatpush1.msra.mxu0 0.0
    %340 = vmatprep.subr.mxu0 0.0
    %341 = vmatpush1.msra.mxu0 0.0
    %342 = vmatprep.subr.mxu0 0.0
    %343 = vmatpush1.msra.mxu0 0.0
    %344 = vmatprep.subr.mxu0 0.0
    %345 = vmatpush1.msra.mxu0 0.0
    %346 = vmatprep.subr.mxu0 0.0
    %347 = vmatpush1.msra.mxu0 0.0
    %348 = vmatprep.subr.mxu0 0.0
    %349 = vmatpush1.msra.mxu0 0.0
    %350 = vmatprep.subr.mxu0 0.0
    %351 = vmatpush1.msra.mxu0 0.0
    %352 = vmatprep.subr.mxu0 0.0
    %353 = vmatpush1.msra.mxu0 0.0
    %354 = vmatprep.subr.mxu0 0.0
    %355 = vmatpush1.msra.mxu0 0.0
    %356 = vmatprep.subr.mxu0 0.0
    %357 = vmatpush1.msra.mxu0 0.0
    %358 = vmatprep.subr.mxu0 0.0
    %359 = vmatpush1.msra.mxu0 0.0
    %360 = vmatprep.subr.mxu0 0.0
    %361 = vmatpush1.msra.mxu0 0.0
    %362 = vmatprep.subr.mxu0 0.0
    %363 = vmatpush1.msra.mxu0 0.0
    %364 = vmatprep.subr.mxu0 0.0
    %365 = vmatpush1.msra.mxu0 0.0
    %366 = vmatprep.subr.mxu0 0.0
    %367 = vmatpush1.msra.mxu0 0.0
    %368 = vmatprep.subr.mxu0 0.0
    %369 = vmatpush1.msra.mxu0 0.0
    %370 = vmatprep.mubr.f32.mxu0 0.0
    %371 = vmatmul.mubr.f32.gmra.mrb[0].mxu0 %v205
    %v372 = vpop.f32.mrb[0].mxu0
    %v373 = vadd.f32 %v169, %v372
    %v374 = vpop.f32.mrb[0].mxu0
    %v375 = vadd.f32 %v173, %v374
    %376 = vdwg.mxu0
    %377 = vmatprep.subr.mxu0 %v78
    %378 = vmatpush1.msra.mxu0 %v77
    %379 = vmatprep.subr.mxu0 %v87
    %380 = vmatpush1.msra.mxu0 %v86
    %381 = vmatprep.subr.mxu0 %v96
    %382 = vmatpush1.msra.mxu0 %v95
    %383 = vmatprep.subr.mxu0 %v105
    %384 = vmatpush1.msra.mxu0 %v104
    %385 = vmatprep.subr.mxu0 %v114
    %386 = vmatpush1.msra.mxu0 %v113
    %387 = vmatprep.subr.mxu0 %v123
    %388 = vmatpush1.msra.mxu0 %v122
    %389 = vmatprep.subr.mxu0 %v132
    %390 = vmatpush1.msra.mxu0 %v131
    %391 = vmatprep.subr.mxu0 %v141
    %392 = vmatpush1.msra.mxu0 %v140
    %393 = vmatprep.subr.mxu0 %v224
    %394 = vmatpush1.msra.mxu0 %v221
    %395 = vmatprep.subr.mxu0 0.0
    %396 = vmatpush1.msra.mxu0 0.0
    %397 = vmatprep.subr.mxu0 0.0
    %398 = vmatpush1.msra.mxu0 0.0
    %399 = vmatprep.subr.mxu0 0.0
    %400 = vmatpush1.msra.mxu0 0.0
    %401 = vmatprep.subr.mxu0 0.0
    %402 = vmatpush1.msra.mxu0 0.0
    %403 = vmatprep.subr.mxu0 0.0
    %404 = vmatpush1.msra.mxu0 0.0
    %405 = vmatprep.subr.mxu0 0.0
    %406 = vmatpush1.msra.mxu0 0.0
    %407 = vmatprep.subr.mxu0 0.0
    %408 = vmatpush1.msra.mxu0 0.0
    %409 = vmatprep.subr.mxu0 0.0
    %410 = vmatpush1.msra.mxu0 0.0
    %411 = vmatprep.subr.mxu0 0.0
    %412 = vmatpush1.msra.mxu0 0.0
    %413 = vmatprep.subr.mxu0 0.0
    %414 = vmatpush1.msra.mxu0 0.0
    %415 = vmatprep.subr.mxu0 0.0
    %416 = vmatpush1.msra.mxu0 0.0
    %417 = vmatprep.subr.mxu0 0.0
    %418 = vmatpush1.msra.mxu0 0.0
    %419 = vmatprep.subr.mxu0 0.0
    %420 = vmatpush1.msra.mxu0 0.0
    %421 = vmatprep.subr.mxu0 0.0
    %422 = vmatpush1.msra.mxu0 0.0
    %423 = vmatprep.subr.mxu0 0.0
    %424 = vmatpush1.msra.mxu0 0.0
    %425 = vmatprep.subr.mxu0 0.0
    %426 = vmatpush1.msra.mxu0 0.0
    %427 = vmatprep.subr.mxu0 0.0
    %428 = vmatpush1.msra.mxu0 0.0
    %429 = vmatprep.subr.mxu0 0.0
    %430 = vmatpush1.msra.mxu0 0.0
    %431 = vmatprep.subr.mxu0 0.0
    %432 = vmatpush1.msra.mxu0 0.0
    %433 = vmatprep.subr.mxu0 0.0
    %434 = vmatpush1.msra.mxu0 0.0
    %435 = vmatprep.subr.mxu0 0.0
    %436 = vmatpush1.msra.mxu0 0.0
    %437 = vmatprep.subr.mxu0 0.0
    %438 = vmatpush1.msra.mxu0 0.0
    %439 = vmatprep.subr.mxu0 0.0
    %440 = vmatpush1.msra.mxu0 0.0
    %441 = vmatprep.mubr.f32.mxu0 0.0
    %442 = vmatmul.mubr.f32.gmra.mrb[0].mxu0 %v205
    %v443 = vpop.f32.mrb[0].mxu0
    %v444 = vadd.f32 %v177, %v443
    %v445 = vpop.f32.mrb[0].mxu0
    %v446 = vadd.f32 %v181, %v445
    %447 = vdwg.mxu0
    %448 = vmatprep.subr.mxu0 %v80
    %449 = vmatpush1.msra.mxu0 %v79
    %450 = vmatprep.subr.mxu0 %v89
    %451 = vmatpush1.msra.mxu0 %v88
    %452 = vmatprep.subr.mxu0 %v98
    %453 = vmatpush1.msra.mxu0 %v97
    %454 = vmatprep.subr.mxu0 %v107
    %455 = vmatpush1.msra.mxu0 %v106
    %456 = vmatprep.subr.mxu0 %v116
    %457 = vmatpush1.msra.mxu0 %v115
    %458 = vmatprep.subr.mxu0 %v125
    %459 = vmatpush1.msra.mxu0 %v124
    %460 = vmatprep.subr.mxu0 %v134
    %461 = vmatpush1.msra.mxu0 %v133
    %462 = vmatprep.subr.mxu0 %v143
    %463 = vmatpush1.msra.mxu0 %v142
    %464 = vmatprep.subr.mxu0 %v230
    %465 = vmatpush1.msra.mxu0 %v227
    %466 = vmatprep.subr.mxu0 0.0
    %467 = vmatpush1.msra.mxu0 0.0
    %468 = vmatprep.subr.mxu0 0.0
    %469 = vmatpush1.msra.mxu0 0.0
    %470 = vmatprep.subr.mxu0 0.0
    %471 = vmatpush1.msra.mxu0 0.0
    %472 = vmatprep.subr.mxu0 0.0
    %473 = vmatpush1.msra.mxu0 0.0
    %474 = vmatprep.subr.mxu0 0.0
    %475 = vmatpush1.msra.mxu0 0.0
    %476 = vmatprep.subr.mxu0 0.0
    %477 = vmatpush1.msra.mxu0 0.0
    %478 = vmatprep.subr.mxu0 0.0
    %479 = vmatpush1.msra.mxu0 0.0
    %480 = vmatprep.subr.mxu0 0.0
    %481 = vmatpush1.msra.mxu0 0.0
    %482 = vmatprep.subr.mxu0 0.0
    %483 = vmatpush1.msra.mxu0 0.0
    %484 = vmatprep.subr.mxu0 0.0
    %485 = vmatpush1.msra.mxu0 0.0
    %486 = vmatprep.subr.mxu0 0.0
    %487 = vmatpush1.msra.mxu0 0.0
    %488 = vmatprep.subr.mxu0 0.0
    %489 = vmatpush1.msra.mxu0 0.0
    %490 = vmatprep.subr.mxu0 0.0
    %491 = vmatpush1.msra.mxu0 0.0
    %492 = vmatprep.subr.mxu0 0.0
    %493 = vmatpush1.msra.mxu0 0.0
    %494 = vmatprep.subr.mxu0 0.0
    %495 = vmatpush1.msra.mxu0 0.0
    %496 = vmatprep.subr.mxu0 0.0
    %497 = vmatpush1.msra.mxu0 0.0
    %498 = vmatprep.subr.mxu0 0.0
    %499 = vmatpush1.msra.mxu0 0.0
    %500 = vmatprep.subr.mxu0 0.0
    %501 = vmatpush1.msra.mxu0 0.0
    %502 = vmatprep.subr.mxu0 0.0
    %503 = vmatpush1.msra.mxu0 0.0
    %504 = vmatprep.subr.mxu0 0.0
    %505 = vmatpush1.msra.mxu0 0.0
    %506 = vmatprep.subr.mxu0 0.0
    %507 = vmatpush1.msra.mxu0 0.0
    %508 = vmatprep.subr.mxu0 0.0
    %509 = vmatpush1.msra.mxu0 0.0
    %510 = vmatprep.subr.mxu0 0.0
    %511 = vmatpush1.msra.mxu0 0.0
    %512 = vmatprep.mubr.f32.mxu0 0.0
    %513 = vmatmul.mubr.f32.gmra.mrb[0].mxu0 %v205
    %v514 = vpop.f32.mrb[0].mxu0
    %v515 = vadd.f32 %v185, %v514
    %v516 = vpop.f32.mrb[0].mxu0
    %v517 = vadd.f32 %v189, %v516
    %518 = vdwg.mxu0
    %519 = vmatprep.subr.mxu0 0.0
    %520 = vmatpush1.msra.mxu0 %v81
    %521 = vmatprep.subr.mxu0 0.0
    %522 = vmatpush1.msra.mxu0 %v90
    %523 = vmatprep.subr.mxu0 0.0
    %524 = vmatpush1.msra.mxu0 %v99
    %525 = vmatprep.subr.mxu0 0.0
    %526 = vmatpush1.msra.mxu0 %v108
    %527 = vmatprep.subr.mxu0 0.0
    %528 = vmatpush1.msra.mxu0 %v117
    %529 = vmatprep.subr.mxu0 0.0
    %530 = vmatpush1.msra.mxu0 %v126
    %531 = vmatprep.subr.mxu0 0.0
    %532 = vmatpush1.msra.mxu0 %v135
    %533 = vmatprep.subr.mxu0 0.0
    %534 = vmatpush1.msra.mxu0 %v144
    %535 = vmatprep.subr.mxu0 0.0
    %536 = vmatpush1.msra.mxu0 %v233
    %537 = vmatprep.subr.mxu0 0.0
    %538 = vmatpush1.msra.mxu0 0.0
    %539 = vmatprep.subr.mxu0 0.0
    %540 = vmatpush1.msra.mxu0 0.0
    %541 = vmatprep.subr.mxu0 0.0
    %542 = vmatpush1.msra.mxu0 0.0
    %543 = vmatprep.subr.mxu0 0.0
    %544 = vmatpush1.msra.mxu0 0.0
    %545 = vmatprep.subr.mxu0 0.0
    %546 = vmatpush1.msra.mxu0 0.0
    %547 = vmatprep.subr.mxu0 0.0
    %548 = vmatpush1.msra.mxu0 0.0
    %549 = vmatprep.subr.mxu0 0.0
    %550 = vmatpush1.msra.mxu0 0.0
    %551 = vmatprep.subr.mxu0 0.0
    %552 = vmatpush1.msra.mxu0 0.0
    %553 = vmatprep.subr.mxu0 0.0
    %554 = vmatpush1.msra.mxu0 0.0
    %555 = vmatprep.subr.mxu0 0.0
    %556 = vmatpush1.msra.mxu0 0.0
    %557 = vmatprep.subr.mxu0 0.0
    %558 = vmatpush1.msra.mxu0 0.0
    %559 = vmatprep.subr.mxu0 0.0
    %560 = vmatpush1.msra.mxu0 0.0
    %561 = vmatprep.subr.mxu0 0.0
    %562 = vmatpush1.msra.mxu0 0.0
    %563 = vmatprep.subr.mxu0 0.0
    %564 = vmatpush1.msra.mxu0 0.0
    %565 = vmatprep.subr.mxu0 0.0
    %566 = vmatpush1.msra.mxu0 0.0
    %567 = vmatprep.subr.mxu0 0.0
    %568 = vmatpush1.msra.mxu0 0.0
    %569 = vmatprep.subr.mxu0 0.0
    %570 = vmatpush1.msra.mxu0 0.0
    %571 = vmatprep.subr.mxu0 0.0
    %572 = vmatpush1.msra.mxu0 0.0
    %573 = vmatprep.subr.mxu0 0.0
    %574 = vmatpush1.msra.mxu0 0.0
    %575 = vmatprep.subr.mxu0 0.0
    %576 = vmatpush1.msra.mxu0 0.0
    %577 = vmatprep.subr.mxu0 0.0
    %578 = vmatpush1.msra.mxu0 0.0
    %579 = vmatprep.subr.mxu0 0.0
    %580 = vmatpush1.msra.mxu0 0.0
    %581 = vmatprep.subr.mxu0 0.0
    %582 = vmatpush1.msra.mxu0 0.0
    %583 = vmatprep.mubr.f32.mxu0 0.0
    %584 = vmatmul.mubr.f32.gmra.mrb[0].mxu0 %v205
    %v585 = vpop.f32.mrb[0].mxu0
    %v586 = vadd.f32 %v193, %v585
    %v587 = vpop.f32.mrb[0].mxu0
    %588 = vdwg.mxu0
    %v589 = vmax.f32 %v302, 0.0
    %v590 = vmax.f32 %v304, 0.0
    %v591 = vmax.f32 %v373, 0.0
    %v592 = vmax.f32 %v375, 0.0
    %v593 = vmax.f32 %v444, 0.0
    %v594 = vmax.f32 %v446, 0.0
    %v595 = vmax.f32 %v515, 0.0
    %v596 = vmax.f32 %v517, 0.0
    %v597 = vmax.f32 %v586, 0.0
    %v598 = vld [vmem:[%s4] sm:$0xff]
    %v599 = vld [vmem:[%s4 + $0x8] sm:$0xff]
    %v600 = vld [vmem:[%s4 + $0x10] sm:$0xff]
    %v601 = vld [vmem:[%s4 + $0x18] sm:$0xff]
    %v602 = vld [vmem:[%s4 + $0x20] sm:$0xff]
    %v603 = vld [vmem:[%s4 + $0x28] sm:$0xff]
    %v604 = vld [vmem:[%s4 + $0x30] sm:$0xff]
    %v605 = vld [vmem:[%s4 + $0x38] sm:$0xff]
    %v606 = vld [vmem:[%s4 + $0x40] sm:$0xff]
    %v607 = vld [vmem:[%s4 + $0x48] sm:$0xff]
    %v608 = vld [vmem:[%s4 + $0x50] sm:$0xff]
    %v609 = vld [vmem:[%s4 + $0x58] sm:$0xff]
    %v610 = vld [vmem:[%s4 + $0x60] sm:$0xff]
    %v611 = vld [vmem:[%s4 + $0x68] sm:$0xff]
    %v612 = vld [vmem:[%s4 + $0x70] sm:$0xff]
    %v613 = vld [vmem:[%s4 + $0x78] sm:$0xff]
    %v614 = vld [vmem:[%s4 + $0x80] sm:$0xff]
    %v615 = vld [vmem:[%s4 + $0x88] sm:$0xff]
    %v616 = vld [vmem:[%s4 + $0x90] sm:$0xff]
    %v617 = vld [vmem:[%s4 + $0x98] sm:$0xff]
    %v618 = vld [vmem:[%s4 + $0xa0] sm:$0xff]
    %v619 = vld [vmem:[%s4 + $0xa8] sm:$0xff]
    %v620 = vld [vmem:[%s4 + $0xb0] sm:$0xff]
    %v621 = vld [vmem:[%s4 + $0xb8] sm:$0xff]
    %v622 = vld [vmem:[%s4 + $0xc0] sm:$0xff]
    %v623 = vld [vmem:[%s4 + $0xc8] sm:$0xff]
    %v624 = vld [vmem:[%s4 + $0xd0] sm:$0xff]
    %v625 = vld [vmem:[%s4 + $0xd8] sm:$0xff]
    %v626 = vld [vmem:[%s4 + $0xe0] sm:$0xff]
    %v627 = vld [vmem:[%s4 + $0xe8] sm:$0xff]
    %v628 = vld [vmem:[%s4 + $0xf0] sm:$0xff]
    %v629 = vld [vmem:[%s4 + $0xf8] sm:$0xff]
    %v630 = vld [vmem:[%s4 + $0x100] sm:$0xff]
    %v631 = vld [vmem:[%s4 + $0x108] sm:$0xff]
    %v632 = vld [vmem:[%s4 + $0x110] sm:$0xff]
    %v633 = vld [vmem:[%s4 + $0x118] sm:$0xff]
    %v634 = vld [vmem:[%s4 + $0x120] sm:$0xff]
    %v635 = vld [vmem:[%s4 + $0x128] sm:$0xff]
    %v636 = vld [vmem:[%s4 + $0x130] sm:$0xff]
    %v637 = vld [vmem:[%s4 + $0x138] sm:$0xff]
    %v638 = vld [vmem:[%s4 + $0x140] sm:$0xff]
    %v639 = vld [vmem:[%s4 + $0x148] sm:$0xff]
    %v640 = vld [vmem:[%s4 + $0x150] sm:$0xff]
    %v641 = vld [vmem:[%s4 + $0x158] sm:$0xff]
    %v642 = vld [vmem:[%s4 + $0x160] sm:$0xff]
    %v643 = vld [vmem:[%s4 + $0x168] sm:$0xff]
    %v644 = vld [vmem:[%s4 + $0x170] sm:$0xff]
    %v645 = vld [vmem:[%s4 + $0x178] sm:$0xff]
    %v646 = vld [vmem:[%s4 + $0x180] sm:$0xff]
    %v647 = vld [vmem:[%s4 + $0x188] sm:$0xff]
    %v648 = vld [vmem:[%s4 + $0x190] sm:$0xff]
    %v649 = vld [vmem:[%s4 + $0x198] sm:$0xff]
    %v650 = vld [vmem:[%s4 + $0x1a0] sm:$0xff]
    %v651 = vld [vmem:[%s4 + $0x1a8] sm:$0xff]
    %v652 = vld [vmem:[%s4 + $0x1b0] sm:$0xff]
    %v653 = vld [vmem:[%s4 + $0x1b8] sm:$0xff]
    %v654 = vld [vmem:[%s4 + $0x1c0] sm:$0xff]
    %v655 = vld [vmem:[%s4 + $0x1c8] sm:$0xff]
    %v656 = vld [vmem:[%s4 + $0x1d0] sm:$0xff]
    %v657 = vld [vmem:[%s4 + $0x1d8] sm:$0xff]
    %v658 = vld [vmem:[%s4 + $0x1e0] sm:$0xff]
    %v659 = vld [vmem:[%s4 + $0x1e8] sm:$0xff]
    %v660 = vld [vmem:[%s4 + $0x1f0] sm:$0xff]
    %v661 = vld [vmem:[%s4 + $0x1f8] sm:$0xff]
    %v662 = vld [vmem:[%s4 + $0x200] sm:$0xff]
    %v663 = vld [vmem:[%s4 + $0x208] sm:$0xff]
    %v664 = vld [vmem:[%s4 + $0x210] sm:$0xff]
    %v665 = vld [vmem:[%s4 + $0x218] sm:$0xff]
    %v666 = vld [vmem:[%s4 + $0x220] sm:$0xff]
    %v667 = vld [vmem:[%s4 + $0x228] sm:$0xff]
    %v668 = vld [vmem:[%s4 + $0x230] sm:$0xff]
    %v669 = vld [vmem:[%s4 + $0x238] sm:$0xff]
    %v670 = vld [vmem:[%s4 + $0x240] sm:$0xff]
    %v671 = vld [vmem:[%s4 + $0x248] sm:$0xff]
    %v672 = vld [vmem:[%s4 + $0x250] sm:$0xff]
    %v673 = vld [vmem:[%s4 + $0x258] sm:$0xff]
    %v674 = vld [vmem:[%s4 + $0x260] sm:$0xff]
    %v675 = vld [vmem:[%s4 + $0x268] sm:$0xff]
    %v676 = vld [vmem:[%s4 + $0x270] sm:$0xff]
    %v677 = vld [vmem:[%s4 + $0x278] sm:$0xff]
    %v678 = vld [vmem:[%s4 + $0x280] sm:$0xff]
    %v679 = vld [vmem:[%s4 + $0x288] sm:$0xff]
    %v680 = vld [vmem:[%s4 + $0x290] sm:$0xff]
    %v681 = vld [vmem:[%s4 + $0x298] sm:$0xff]
    %v682 = vld [vmem:[%s4 + $0x2a0] sm:$0xff]
    %v683 = vld [vmem:[%s4 + $0x2a8] sm:$0xff]
    %v684 = vld [vmem:[%s4 + $0x2b0] sm:$0xff]
    %v685 = vld [vmem:[%s4 + $0x2b8] sm:$0xff]
    %v686 = vld [vmem:[%s4 + $0x2c0] sm:$0xff]
    %v687 = vld [vmem:[%s4 + $0x2c8] sm:$0xff]
    %v688 = vld [vmem:[%s4 + $0x2d0] sm:$0xff]
    %v689 = vld [vmem:[%s4 + $0x2d8] sm:$0xff]
    %v690 = vld [vmem:[%s4 + $0x2e0] sm:$0xff]
    %v691 = vld [vmem:[%s4 + $0x2e8] sm:$0xff]
    %v692 = vld [vmem:[%s4 + $0x2f0] sm:$0xff]
    %v693 = vld [vmem:[%s4 + $0x2f8] sm:$0xff]
    %v694 = vld [vmem:[%s4 + $0x300] sm:$0xff]
    %v695 = vld [vmem:[%s4 + $0x308] sm:$0xff]
    %v696 = vld [vmem:[%s4 + $0x310] sm:$0xff]
    %v697 = vld [vmem:[%s4 + $0x318] sm:$0xff]
    %v698 = vld [vmem:[%s4 + $0x320] sm:$0xff]
    %v699 = vld [vmem:[%s4 + $0x328] sm:$0xff]
    %v700 = vld [vmem:[%s4 + $0x330] sm:$0xff]
    %v701 = vld [vmem:[%s4 + $0x338] sm:$0xff]
    %v702 = vld [vmem:[%s4 + $0x340] sm:$0xff]
    %v703 = vld [vmem:[%s4 + $0x348] sm:$0xff]
    %v704 = vld [vmem:[%s4 + $0x350] sm:$0xff]
    %v705 = vld [vmem:[%s4 + $0x358] sm:$0xff]
    %v706 = vld [vmem:[%s4 + $0x360] sm:$0xff]
    %v707 = vld [vmem:[%s4 + $0x368] sm:$0xff]
    %v708 = vld [vmem:[%s4 + $0x370] sm:$0xff]
    %v709 = vld [vmem:[%s4 + $0x378] sm:$0xff]
    %v710 = vld [vmem:[%s4 + $0x380] sm:$0xff]
    %v711 = vld [vmem:[%s4 + $0x388] sm:$0xff]
    %v712 = vld [vmem:[%s4 + $0x390] sm:$0xff]
    %v713 = vld [vmem:[%s4 + $0x398] sm:$0xff]
    %v714 = vld [vmem:[%s4 + $0x3a0] sm:$0xff]
    %v715 = vld [vmem:[%s4 + $0x3a8] sm:$0xff]
    %v716 = vld [vmem:[%s4 + $0x3b0] sm:$0xff]
    %v717 = vld [vmem:[%s4 + $0x3b8] sm:$0xff]
    %v718 = vld [vmem:[%s4 + $0x3c0] sm:$0xff]
    %v719 = vld [vmem:[%s4 + $0x3c8] sm:$0xff]
    %v720 = vld [vmem:[%s4 + $0x3d0] sm:$0xff]
    %v721 = vld [vmem:[%s4 + $0x3d8] sm:$0xff]
    %v722 = vld [vmem:[%s4 + $0x3e0] sm:$0xff]
    %v723 = vld [vmem:[%s4 + $0x3e8] sm:$0xff]
    %v724 = vld [vmem:[%s4 + $0x3f0] sm:$0xff]
    %v725 = vld [vmem:[%s4 + $0x3f8] sm:$0xff]
    %v726 = vld [vmem:[%s4 + $0x400] sm:$0xff]
    %v727 = vld [vmem:[%s4 + $0x408] sm:$0xff]
    %v728 = vld [vmem:[%s4 + $0x410] sm:$0xff]
    %v729 = vld [vmem:[%s4 + $0x418] sm:$0xff]
    %v730 = vld [vmem:[%s4 + $0x420] sm:$0xff]
    %v731 = vld [vmem:[%s4 + $0x428] sm:$0xff]
    %v732 = vld [vmem:[%s4 + $0x430] sm:$0xff]
    %v733 = vld [vmem:[%s4 + $0x438] sm:$0xff]
    %v734 = vld [vmem:[%s4 + $0x440] sm:$0xff]
    %v735 = vld [vmem:[%s4 + $0x448] sm:$0xff]
    %v736 = vld [vmem:[%s4 + $0x450] sm:$0xff]
    %v737 = vld [vmem:[%s4 + $0x458] sm:$0xff]
    %v738 = vld [vmem:[%s4 + $0x460] sm:$0xff]
    %v739 = vld [vmem:[%s4 + $0x468] sm:$0xff]
    %v740 = vld [vmem:[%s4 + $0x470] sm:$0xff]
    %v741 = vld [vmem:[%s4 + $0x478] sm:$0xff]
    %v742 = vld [vmem:[%s4 + $0x480] sm:$0xff]
    %v743 = vld [vmem:[%s4 + $0x488] sm:$0xff]
    %v744 = vld [vmem:[%s4 + $0x490] sm:$0xff]
    %v745 = vld [vmem:[%s4 + $0x498] sm:$0xff]
    %v746 = vld [vmem:[%s4 + $0x4a0] sm:$0xff]
    %v747 = vld [vmem:[%s4 + $0x4a8] sm:$0xff]
    %v748 = vld [vmem:[%s4 + $0x4b0] sm:$0xff]
    %v749 = vld [vmem:[%s4 + $0x4b8] sm:$0xff]
    %v750 = vld [vmem:[%s4 + $0x4c0] sm:$0xff]
    %v751 = vld [vmem:[%s4 + $0x4c8] sm:$0xff]
    %v752 = vld [vmem:[%s4 + $0x4d0] sm:$0xff]
    %v753 = vld [vmem:[%s4 + $0x4d8] sm:$0xff]
    %v754 = vld [vmem:[%s4 + $0x4e0] sm:$0xff]
    %v755 = vld [vmem:[%s4 + $0x4e8] sm:$0xff]
    %v756 = vld [vmem:[%s4 + $0x4f0] sm:$0xff]
    %v757 = vld [vmem:[%s4 + $0x4f8] sm:$0xff]
    %v758 = vld [vmem:[%s4 + $0x500] sm:$0xff]
    %v759 = vld [vmem:[%s4 + $0x508] sm:$0xff]
    %v760 = vld [vmem:[%s4 + $0x510] sm:$0xff]
    %v761 = vld [vmem:[%s4 + $0x518] sm:$0xff]
    %v762 = vld [vmem:[%s4 + $0x520] sm:$0xff]
    %v763 = vld [vmem:[%s4 + $0x528] sm:$0xff]
    %v764 = vld [vmem:[%s4 + $0x530] sm:$0xff]
    %v765 = vld [vmem:[%s4 + $0x538] sm:$0xff]
    %v766 = vld [vmem:[%s4 + $0x540] sm:$0xff]
    %v767 = vld [vmem:[%s4 + $0x548] sm:$0xff]
    %v768 = vld [vmem:[%s4 + $0x550] sm:$0xff]
    %v769 = vld [vmem:[%s4 + $0x558] sm:$0xff]
    %v770 = vld [vmem:[%s4 + $0x560] sm:$0xff]
    %v771 = vld [vmem:[%s4 + $0x568] sm:$0xff]
    %v772 = vld [vmem:[%s4 + $0x570] sm:$0xff]
    %v773 = vld [vmem:[%s4 + $0x578] sm:$0xff]
    %v774 = vld [vmem:[%s4 + $0x580] sm:$0xff]
    %v775 = vld [vmem:[%s4 + $0x588] sm:$0xff]
    %v776 = vld [vmem:[%s4 + $0x590] sm:$0xff]
    %v777 = vld [vmem:[%s4 + $0x598] sm:$0xff]
    %v778 = vld [vmem:[%s4 + $0x5a0] sm:$0xff]
    %v779 = vld [vmem:[%s4 + $0x5a8] sm:$0xff]
    %v780 = vld [vmem:[%s4 + $0x5b0] sm:$0xff]
    %v781 = vld [vmem:[%s4 + $0x5b8] sm:$0xff]
    %v782 = vld [vmem:[%s4 + $0x5c0] sm:$0xff]
    %v783 = vld [vmem:[%s4 + $0x5c8] sm:$0xff]
    %v784 = vld [vmem:[%s4 + $0x5d0] sm:$0xff]
    %v785 = vld [vmem:[%s4 + $0x5d8] sm:$0xff]
    %v786 = vld [vmem:[%s4 + $0x5e0] sm:$0xff]
    %v787 = vld [vmem:[%s4 + $0x5e8] sm:$0xff]
    %v788 = vld [vmem:[%s4 + $0x5f0] sm:$0xff]
    %v789 = vld [vmem:[%s4 + $0x5f8] sm:$0xff]
    %v790 = vld [vmem:[%s4 + $0x600] sm:$0xff]
    %v791 = vld [vmem:[%s4 + $0x608] sm:$0xff]
    %v792 = vld [vmem:[%s4 + $0x610] sm:$0xff]
    %v793 = vld [vmem:[%s4 + $0x618] sm:$0xff]
    %v794 = vld [vmem:[%s4 + $0x620] sm:$0xff]
    %v795 = vld [vmem:[%s4 + $0x628] sm:$0xff]
    %v796 = vld [vmem:[%s4 + $0x630] sm:$0xff]
    %v797 = vld [vmem:[%s4 + $0x638] sm:$0xff]
    %v798 = vld [vmem:[%s4 + $0x640] sm:$0xff]
    %v799 = vld [vmem:[%s4 + $0x648] sm:$0xff]
    %v800 = vld [vmem:[%s4 + $0x650] sm:$0xff]
    %v801 = vld [vmem:[%s4 + $0x658] sm:$0xff]
    %v802 = vld [vmem:[%s4 + $0x660] sm:$0xff]
    %v803 = vld [vmem:[%s4 + $0x668] sm:$0xff]
    %v804 = vld [vmem:[%s4 + $0x670] sm:$0xff]
    %v805 = vld [vmem:[%s4 + $0x678] sm:$0xff]
    %v806 = vld [vmem:[%s4 + $0x680] sm:$0xff]
    %v807 = vld [vmem:[%s4 + $0x688] sm:$0xff]
    %v808 = vld [vmem:[%s4 + $0x690] sm:$0xff]
    %v809 = vld [vmem:[%s4 + $0x698] sm:$0xff]
    %v810 = vld [vmem:[%s4 + $0x6a0] sm:$0xff]
    %v811 = vld [vmem:[%s4 + $0x6a8] sm:$0xff]
    %v812 = vld [vmem:[%s4 + $0x6b0] sm:$0xff]
    %v813 = vld [vmem:[%s4 + $0x6b8] sm:$0xff]
    %v814 = vld [vmem:[%s4 + $0x6c0] sm:$0xff]
    %v815 = vld [vmem:[%s4 + $0x6c8] sm:$0xff]
    %v816 = vld [vmem:[%s4 + $0x6d0] sm:$0xff]
    %v817 = vld [vmem:[%s4 + $0x6d8] sm:$0xff]
    %v818 = vld [vmem:[%s4 + $0x6e0] sm:$0xff]
    %v819 = vld [vmem:[%s4 + $0x6e8] sm:$0xff]
    %v820 = vld [vmem:[%s4 + $0x6f0] sm:$0xff]
    %v821 = vld [vmem:[%s4 + $0x6f8] sm:$0xff]
    %v822 = vld [vmem:[%s4 + $0x700] sm:$0xff]
    %v823 = vld [vmem:[%s4 + $0x708] sm:$0xff]
    %v824 = vld [vmem:[%s4 + $0x710] sm:$0xff]
    %v825 = vld [vmem:[%s4 + $0x718] sm:$0xff]
    %v826 = vld [vmem:[%s4 + $0x720] sm:$0xff]
    %v827 = vld [vmem:[%s4 + $0x728] sm:$0xff]
    %v828 = vld [vmem:[%s4 + $0x730] sm:$0xff]
    %v829 = vld [vmem:[%s4 + $0x738] sm:$0xff]
    %v830 = vld [vmem:[%s4 + $0x740] sm:$0xff]
    %v831 = vld [vmem:[%s4 + $0x748] sm:$0xff]
    %v832 = vld [vmem:[%s4 + $0x750] sm:$0xff]
    %v833 = vld [vmem:[%s4 + $0x758] sm:$0xff]
    %v834 = vld [vmem:[%s4 + $0x760] sm:$0xff]
    %v835 = vld [vmem:[%s4 + $0x768] sm:$0xff]
    %v836 = vld [vmem:[%s4 + $0x770] sm:$0xff]
    %v837 = vld [vmem:[%s4 + $0x778] sm:$0xff]
    %v838 = vld [vmem:[%s4 + $0x780] sm:$0xff]
    %v839 = vld [vmem:[%s4 + $0x788] sm:$0xff]
    %v840 = vld [vmem:[%s4 + $0x790] sm:$0xff]
    %v841 = vld [vmem:[%s4 + $0x798] sm:$0xff]
    %v842 = vld [vmem:[%s4 + $0x7a0] sm:$0xff]
    %v843 = vld [vmem:[%s4 + $0x7a8] sm:$0xff]
    %v844 = vld [vmem:[%s4 + $0x7b0] sm:$0xff]
    %v845 = vld [vmem:[%s4 + $0x7b8] sm:$0xff]
    %v846 = vld [vmem:[%s4 + $0x7c0] sm:$0xff]
    %v847 = vld [vmem:[%s4 + $0x7c8] sm:$0xff]
    %v848 = vld [vmem:[%s4 + $0x7d0] sm:$0xff]
    %v849 = vld [vmem:[%s4 + $0x7d8] sm:$0xff]
    %v850 = vld [vmem:[%s4 + $0x7e0] sm:$0xff]
    %v851 = vld [vmem:[%s4 + $0x7e8] sm:$0xff]
    %v852 = vld [vmem:[%s4 + $0x7f0] sm:$0xff]
    %v853 = vld [vmem:[%s4 + $0x7f8] sm:$0xff]
    %v854 = vld [vmem:[%s4 + $0x800] sm:$0xff]
    %v855 = vld [vmem:[%s4 + $0x808] sm:$0xff]
    %v856 = vld [vmem:[%s4 + $0x810] sm:$0xff]
    %v857 = vld [vmem:[%s4 + $0x818] sm:$0xff]
    %v858 = vld [vmem:[%s4 + $0x820] sm:$0xff]
    %v859 = vld [vmem:[%s4 + $0x828] sm:$0xff]
    %v860 = vld [vmem:[%s4 + $0x830] sm:$0xff]
    %v861 = vld [vmem:[%s4 + $0x838] sm:$0xff]
    %v862 = vld [vmem:[%s4 + $0x840] sm:$0xff]
    %v863 = vld [vmem:[%s4 + $0x848] sm:$0xff]
    %v864 = vld [vmem:[%s4 + $0x850] sm:$0xff]
    %v865 = vld [vmem:[%s4 + $0x858] sm:$0xff]
    %v866 = vld [vmem:[%s4 + $0x860] sm:$0xff]
    %v867 = vld [vmem:[%s4 + $0x868] sm:$0xff]
    %v868 = vld [vmem:[%s4 + $0x870] sm:$0xff]
    %v869 = vld [vmem:[%s4 + $0x878] sm:$0xff]
    %v870 = vld [vmem:[%s4 + $0x880] sm:$0xff]
    %v871 = vld [vmem:[%s4 + $0x888] sm:$0xff]
    %v872 = vld [vmem:[%s4 + $0x890] sm:$0xff]
    %v873 = vld [vmem:[%s4 + $0x898] sm:$0xff]
    %v874 = vld [vmem:[%s4 + $0x8a0] sm:$0xff]
    %v875 = vld [vmem:[%s4 + $0x8a8] sm:$0xff]
    %v876 = vld [vmem:[%s4 + $0x8b0] sm:$0xff]
    %v877 = vld [vmem:[%s4 + $0x8b8] sm:$0xff]
    %v878 = vld [vmem:[%s4 + $0x8c0] sm:$0xff]
    %v879 = vld [vmem:[%s4 + $0x8c8] sm:$0xff]
    %v880 = vld [vmem:[%s4 + $0x8d0] sm:$0xff]
    %v881 = vld [vmem:[%s4 + $0x8d8] sm:$0xff]
    %v882 = vld [vmem:[%s4 + $0x8e0] sm:$0xff]
    %v883 = vld [vmem:[%s4 + $0x8e8] sm:$0xff]
    %v884 = vld [vmem:[%s4 + $0x8f0] sm:$0xff]
    %v885 = vld [vmem:[%s4 + $0x8f8] sm:$0xff]
    %v886 = vld [vmem:[%s4 + $0x900] sm:$0xff]
    %v887 = vld [vmem:[%s4 + $0x908] sm:$0xff]
    %v888 = vld [vmem:[%s4 + $0x910] sm:$0xff]
    %v889 = vld [vmem:[%s4 + $0x918] sm:$0xff]
    %v890 = vld [vmem:[%s4 + $0x920] sm:$0xff]
    %v891 = vld [vmem:[%s4 + $0x928] sm:$0xff]
    %v892 = vld [vmem:[%s4 + $0x930] sm:$0xff]
    %v893 = vld [vmem:[%s4 + $0x938] sm:$0xff]
    %v894 = vld [vmem:[%s4 + $0x940] sm:$0xff]
    %v895 = vld [vmem:[%s4 + $0x948] sm:$0xff]
    %v896 = vld [vmem:[%s4 + $0x950] sm:$0xff]
    %v897 = vld [vmem:[%s4 + $0x958] sm:$0xff]
    %v898 = vld [vmem:[%s4 + $0x960] sm:$0xff]
    %v899 = vld [vmem:[%s4 + $0x968] sm:$0xff]
    %v900 = vld [vmem:[%s4 + $0x970] sm:$0xff]
    %v901 = vld [vmem:[%s4 + $0x978] sm:$0xff]
    %v902 = vld [vmem:[%s4 + $0x980] sm:$0xff]
    %v903 = vld [vmem:[%s4 + $0x988] sm:$0xff]
    %v904 = vld [vmem:[%s4 + $0x990] sm:$0xff]
    %v905 = vld [vmem:[%s4 + $0x998] sm:$0xff]
    %v906 = vld [vmem:[%s4 + $0x9a0] sm:$0xff]
    %v907 = vld [vmem:[%s4 + $0x9a8] sm:$0xff]
    %v908 = vld [vmem:[%s4 + $0x9b0] sm:$0xff]
    %v909 = vld [vmem:[%s4 + $0x9b8] sm:$0xff]
    %v910 = vld [vmem:[%s4 + $0x9c0] sm:$0xff]
    %v911 = vld [vmem:[%s4 + $0x9c8] sm:$0xff]
    %v912 = vld [vmem:[%s4 + $0x9d0] sm:$0xff]
    %v913 = vld [vmem:[%s4 + $0x9d8] sm:$0xff]
    %v914 = vld [vmem:[%s4 + $0x9e0] sm:$0xff]
    %v915 = vld [vmem:[%s4 + $0x9e8] sm:$0xff]
    %v916 = vld [vmem:[%s4 + $0x9f0] sm:$0xff]
    %v917 = vld [vmem:[%s4 + $0x9f8] sm:$0xff]
    %v918 = vld [vmem:[%s4 + $0xa00] sm:$0xff]
    %v919 = vld [vmem:[%s4 + $0xa08] sm:$0xff]
    %v920 = vld [vmem:[%s4 + $0xa10] sm:$0xff]
    %v921 = vld [vmem:[%s4 + $0xa18] sm:$0xff]
    %v922 = vld [vmem:[%s4 + $0xa20] sm:$0xff]
    %v923 = vld [vmem:[%s4 + $0xa28] sm:$0xff]
    %v924 = vld [vmem:[%s4 + $0xa30] sm:$0xff]
    %v925 = vld [vmem:[%s4 + $0xa38] sm:$0xff]
    %v926 = vld [vmem:[%s4 + $0xa40] sm:$0xff]
    %v927 = vld [vmem:[%s4 + $0xa48] sm:$0xff]
    %v928 = vld [vmem:[%s4 + $0xa50] sm:$0xff]
    %v929 = vld [vmem:[%s4 + $0xa58] sm:$0xff]
    %v930 = vld [vmem:[%s4 + $0xa60] sm:$0xff]
    %v931 = vld [vmem:[%s4 + $0xa68] sm:$0xff]
    %v932 = vld [vmem:[%s4 + $0xa70] sm:$0xff]
    %v933 = vld [vmem:[%s4 + $0xa78] sm:$0xff]
    %v934 = vld [vmem:[%s4 + $0xa80] sm:$0xff]
    %v935 = vld [vmem:[%s4 + $0xa88] sm:$0xff]
    %v936 = vld [vmem:[%s4 + $0xa90] sm:$0xff]
    %v937 = vld [vmem:[%s4 + $0xa98] sm:$0xff]
    %v938 = vld [vmem:[%s4 + $0xaa0] sm:$0xff]
    %v939 = vld [vmem:[%s4 + $0xaa8] sm:$0xff]
    %v940 = vld [vmem:[%s4 + $0xab0] sm:$0xff]
    %v941 = vld [vmem:[%s4 + $0xab8] sm:$0xff]
    %v942 = vld [vmem:[%s4 + $0xac0] sm:$0xff]
    %v943 = vld [vmem:[%s4 + $0xac8] sm:$0xff]
    %v944 = vld [vmem:[%s4 + $0xad0] sm:$0xff]
    %v945 = vld [vmem:[%s4 + $0xad8] sm:$0xff]
    %v946 = vld [vmem:[%s4 + $0xae0] sm:$0xff]
    %v947 = vld [vmem:[%s4 + $0xae8] sm:$0xff]
    %v948 = vld [vmem:[%s4 + $0xaf0] sm:$0xff]
    %v949 = vld [vmem:[%s4 + $0xaf8] sm:$0xff]
    %v950 = vld [vmem:[%s4 + $0xb00] sm:$0xff]
    %v951 = vld [vmem:[%s4 + $0xb08] sm:$0xff]
    %v952 = vld [vmem:[%s4 + $0xb10] sm:$0xff]
    %v953 = vld [vmem:[%s4 + $0xb18] sm:$0xff]
    %v954 = vld [vmem:[%s4 + $0xb20] sm:$0xff]
    %v955 = vld [vmem:[%s4 + $0xb28] sm:$0xff]
    %v956 = vld [vmem:[%s4 + $0xb30] sm:$0xff]
    %v957 = vld [vmem:[%s4 + $0xb38] sm:$0xff]
    %v958 = vld [vmem:[%s4 + $0xb40] sm:$0xff]
    %v959 = vld [vmem:[%s4 + $0xb48] sm:$0xff]
    %v960 = vld [vmem:[%s4 + $0xb50] sm:$0xff]
    %v961 = vld [vmem:[%s4 + $0xb58] sm:$0xff]
    %v962 = vld [vmem:[%s4 + $0xb60] sm:$0xff]
    %v963 = vld [vmem:[%s4 + $0xb68] sm:$0xff]
    %v964 = vld [vmem:[%s4 + $0xb70] sm:$0xff]
    %v965 = vld [vmem:[%s4 + $0xb78] sm:$0xff]
    %v966 = vld [vmem:[%s4 + $0xb80] sm:$0xff]
    %v967 = vld [vmem:[%s4 + $0xb88] sm:$0xff]
    %v968 = vld [vmem:[%s4 + $0xb90] sm:$0xff]
    %v969 = vld [vmem:[%s4 + $0xb98] sm:$0xff]
    %v970 = vld [vmem:[%s4 + $0xba0] sm:$0xff]
    %v971 = vld [vmem:[%s4 + $0xba8] sm:$0xff]
    %v972 = vld [vmem:[%s4 + $0xbb0] sm:$0xff]
    %v973 = vld [vmem:[%s4 + $0xbb8] sm:$0xff]
    %v974 = vld [vmem:[%s4 + $0xbc0] sm:$0xff]
    %v975 = vld [vmem:[%s4 + $0xbc8] sm:$0xff]
    %v976 = vld [vmem:[%s4 + $0xbd0] sm:$0xff]
    %v977 = vld [vmem:[%s4 + $0xbd8] sm:$0xff]
    %v978 = vld [vmem:[%s4 + $0xbe0] sm:$0xff]
    %v979 = vld [vmem:[%s4 + $0xbe8] sm:$0xff]
    %v980 = vld [vmem:[%s4 + $0xbf0] sm:$0xff]
    %v981 = vld [vmem:[%s4 + $0xbf8] sm:$0xff]
    %v982 = vld [vmem:[%s4 + $0xc00] sm:$0xff]
    %v983 = vld [vmem:[%s4 + $0xc08] sm:$0xff]
    %v984 = vld [vmem:[%s4 + $0xc10] sm:$0xff]
    %v985 = vld [vmem:[%s4 + $0xc18] sm:$0xff]
    %v986 = vld [vmem:[%s4 + $0xc20] sm:$0xff]
    %v987 = vld [vmem:[%s4 + $0xc28] sm:$0xff]
    %v988 = vld [vmem:[%s4 + $0xc30] sm:$0xff]
    %v989 = vld [vmem:[%s4 + $0xc38] sm:$0xff]
    %v990 = vld [vmem:[%s4 + $0xc40] sm:$0xff]
    %v991 = vld [vmem:[%s4 + $0xc48] sm:$0xff]
    %v992 = vld [vmem:[%s4 + $0xc50] sm:$0xff]
    %v993 = vld [vmem:[%s4 + $0xc58] sm:$0xff]
    %v994 = vld [vmem:[%s4 + $0xc60] sm:$0xff]
    %v995 = vld [vmem:[%s4 + $0xc68] sm:$0xff]
    %v996 = vld [vmem:[%s4 + $0xc70] sm:$0xff]
    %v997 = vld [vmem:[%s4 + $0xc78] sm:$0xff]
    %v998 = vld [vmem:[%s4 + $0xc80] sm:$0xff]
    %v999 = vld [vmem:[%s4 + $0xc88] sm:$0xff]
    %v1000 = vld [vmem:[%s4 + $0xc90] sm:$0xff]
    %v1001 = vld [vmem:[%s4 + $0xc98] sm:$0xff]
    %v1002 = vld [vmem:[%s4 + $0xca0] sm:$0xff]
    %v1003 = vld [vmem:[%s4 + $0xca8] sm:$0xff]
    %v1004 = vld [vmem:[%s4 + $0xcb0] sm:$0xff]
    %v1005 = vld [vmem:[%s4 + $0xcb8] sm:$0xff]
    %v1006 = vld [vmem:[%s4 + $0xcc0] sm:$0xff]
    %v1007 = vld [vmem:[%s4 + $0xcc8] sm:$0xff]
    %v1008 = vld [vmem:[%s4 + $0xcd0] sm:$0xff]
    %v1009 = vld [vmem:[%s4 + $0xcd8] sm:$0xff]
    %v1010 = vld [vmem:[%s4 + $0xce0] sm:$0xff]
    %v1011 = vld [vmem:[%s4 + $0xce8] sm:$0xff]
    %v1012 = vld [vmem:[%s4 + $0xcf0] sm:$0xff]
    %v1013 = vld [vmem:[%s4 + $0xcf8] sm:$0xff]
    %v1014 = vld [vmem:[%s4 + $0xd00] sm:$0xff]
    %v1015 = vld [vmem:[%s4 + $0xd08] sm:$0xff]
    %v1016 = vld [vmem:[%s4 + $0xd10] sm:$0xff]
    %v1017 = vld [vmem:[%s4 + $0xd18] sm:$0xff]
    %v1018 = vld [vmem:[%s4 + $0xd20] sm:$0xff]
    %v1019 = vld [vmem:[%s4 + $0xd28] sm:$0xff]
    %v1020 = vld [vmem:[%s4 + $0xd30] sm:$0xff]
    %v1021 = vld [vmem:[%s4 + $0xd38] sm:$0xff]
    %v1022 = vld [vmem:[%s4 + $0xd40] sm:$0xff]
    %v1023 = vld [vmem:[%s4 + $0xd48] sm:$0xff]
    %v1024 = vld [vmem:[%s4 + $0xd50] sm:$0xff]
    %v1025 = vld [vmem:[%s4 + $0xd58] sm:$0xff]
    %v1026 = vld [vmem:[%s4 + $0xd60] sm:$0xff]
    %v1027 = vld [vmem:[%s4 + $0xd68] sm:$0xff]
    %v1028 = vld [vmem:[%s4 + $0xd70] sm:$0xff]
    %v1029 = vld [vmem:[%s4 + $0xd78] sm:$0xff]
    %v1030 = vld [vmem:[%s4 + $0xd80] sm:$0xff]
    %v1031 = vld [vmem:[%s4 + $0xd88] sm:$0xff]
    %v1032 = vld [vmem:[%s4 + $0xd90] sm:$0xff]
    %v1033 = vld [vmem:[%s4 + $0xd98] sm:$0xff]
    %v1034 = vld [vmem:[%s4 + $0xda0] sm:$0xff]
    %v1035 = vld [vmem:[%s4 + $0xda8] sm:$0xff]
    %v1036 = vld [vmem:[%s4 + $0xdb0] sm:$0xff]
    %v1037 = vld [vmem:[%s4 + $0xdb8] sm:$0xff]
    %v1038 = vld [vmem:[%s4 + $0xdc0] sm:$0xff]
    %v1039 = vld [vmem:[%s4 + $0xdc8] sm:$0xff]
    %v1040 = vld [vmem:[%s4 + $0xdd0] sm:$0xff]
    %v1041 = vld [vmem:[%s4 + $0xdd8] sm:$0xff]
    %v1042 = vld [vmem:[%s4 + $0xde0] sm:$0xff]
    %v1043 = vld [vmem:[%s4 + $0xde8] sm:$0xff]
    %v1044 = vld [vmem:[%s4 + $0xdf0] sm:$0xff]
    %v1045 = vld [vmem:[%s4 + $0xdf8] sm:$0xff]
    %v1046 = vld [vmem:[%s4 + $0xe00] sm:$0xff]
    %v1047 = vld [vmem:[%s4 + $0xe08] sm:$0xff]
    %v1048 = vld [vmem:[%s4 + $0xe10] sm:$0xff]
    %v1049 = vld [vmem:[%s4 + $0xe18] sm:$0xff]
    %v1050 = vld [vmem:[%s4 + $0xe20] sm:$0xff]
    %v1051 = vld [vmem:[%s4 + $0xe28] sm:$0xff]
    %v1052 = vld [vmem:[%s4 + $0xe30] sm:$0xff]
    %v1053 = vld [vmem:[%s4 + $0xe38] sm:$0xff]
    %v1054 = vld [vmem:[%s4 + $0xe40] sm:$0xff]
    %v1055 = vld [vmem:[%s4 + $0xe48] sm:$0xff]
    %v1056 = vld [vmem:[%s4 + $0xe50] sm:$0xff]
    %v1057 = vld [vmem:[%s4 + $0xe58] sm:$0xff]
    %v1058 = vld [vmem:[%s4 + $0xe60] sm:$0xff]
    %v1059 = vld [vmem:[%s4 + $0xe68] sm:$0xff]
    %v1060 = vld [vmem:[%s4 + $0xe70] sm:$0xff]
    %v1061 = vld [vmem:[%s4 + $0xe78] sm:$0xff]
    %v1062 = vld [vmem:[%s4 + $0xe80] sm:$0xff]
    %v1063 = vld [vmem:[%s4 + $0xe88] sm:$0xff]
    %v1064 = vld [vmem:[%s4 + $0xe90] sm:$0xff]
    %v1065 = vld [vmem:[%s4 + $0xe98] sm:$0xff]
    %v1066 = vld [vmem:[%s4 + $0xea0] sm:$0xff]
    %v1067 = vld [vmem:[%s4 + $0xea8] sm:$0xff]
    %v1068 = vld [vmem:[%s4 + $0xeb0] sm:$0xff]
    %v1069 = vld [vmem:[%s4 + $0xeb8] sm:$0xff]
    %v1070 = vld [vmem:[%s4 + $0xec0] sm:$0xff]
    %v1071 = vld [vmem:[%s4 + $0xec8] sm:$0xff]
    %v1072 = vld [vmem:[%s4 + $0xed0] sm:$0xff]
    %v1073 = vld [vmem:[%s4 + $0xed8] sm:$0xff]
    %v1074 = vld [vmem:[%s4 + $0xee0] sm:$0xff]
    %v1075 = vld [vmem:[%s4 + $0xee8] sm:$0xff]
    %v1076 = vld [vmem:[%s4 + $0xef0] sm:$0xff]
    %v1077 = vld [vmem:[%s4 + $0xef8] sm:$0xff]
    %v1078 = vld [vmem:[%s4 + $0xf00] sm:$0xff]
    %v1079 = vld [vmem:[%s4 + $0xf08] sm:$0xff]
    %v1080 = vld [vmem:[%s4 + $0xf10] sm:$0xff]
    %v1081 = vld [vmem:[%s4 + $0xf18] sm:$0xff]
    %v1082 = vld [vmem:[%s4 + $0xf20] sm:$0xff]
    %v1083 = vld [vmem:[%s4 + $0xf28] sm:$0xff]
    %v1084 = vld [vmem:[%s4 + $0xf30] sm:$0xff]
    %v1085 = vld [vmem:[%s4 + $0xf38] sm:$0xff]
    %v1086 = vld [vmem:[%s4 + $0xf40] sm:$0xff]
    %v1087 = vld [vmem:[%s4 + $0xf48] sm:$0xff]
    %v1088 = vld [vmem:[%s4 + $0xf50] sm:$0xff]
    %v1089 = vld [vmem:[%s4 + $0xf58] sm:$0xff]
    %v1090 = vld [vmem:[%s4 + $0xf60] sm:$0xff]
    %v1091 = vld [vmem:[%s4 + $0xf68] sm:$0xff]
    %v1092 = vld [vmem:[%s4 + $0xf70] sm:$0xff]
    %v1093 = vld [vmem:[%s4 + $0xf78] sm:$0xff]
    %v1094 = vld [vmem:[%s4 + $0xf80] sm:$0xff]
    %v1095 = vld [vmem:[%s4 + $0xf88] sm:$0xff]
    %v1096 = vld [vmem:[%s4 + $0xf90] sm:$0xff]
    %v1097 = vld [vmem:[%s4 + $0xf98] sm:$0xff]
    %v1098 = vld [vmem:[%s4 + $0xfa0] sm:$0xff]
    %v1099 = vld [vmem:[%s4 + $0xfa8] sm:$0xff]
    %v1100 = vld [vmem:[%s4 + $0xfb0] sm:$0xff]
    %v1101 = vld [vmem:[%s4 + $0xfb8] sm:$0xff]
    %v1102 = vld [vmem:[%s4 + $0xfc0] sm:$0xff]
    %v1103 = vld [vmem:[%s4 + $0xfc8] sm:$0xff]
    %v1104 = vld [vmem:[%s4 + $0xfd0] sm:$0xff]
    %v1105 = vld [vmem:[%s4 + $0xfd8] sm:$0xff]
    %v1106 = vld [vmem:[%s4 + $0xfe0] sm:$0xff]
    %v1107 = vld [vmem:[%s4 + $0xfe8] sm:$0xff]
    %v1108 = vld [vmem:[%s4 + $0xff0] sm:$0xff]
    %v1109 = vld [vmem:[%s4 + $0xff8] sm:$0xff]
    %v1110 = vld [vmem:[%s4 + $0x1000] sm:$0xff]
    %v1111 = vld [vmem:[%s4 + $0x1008] sm:$0xff]
    %v1112 = vld [vmem:[%s4 + $0x1010] sm:$0xff]
    %v1113 = vld [vmem:[%s4 + $0x1018] sm:$0xff]
    %v1114 = vld [vmem:[%s4 + $0x1020] sm:$0xff]
    %v1115 = vld [vmem:[%s4 + $0x1028] sm:$0xff]
    %v1116 = vld [vmem:[%s4 + $0x1030] sm:$0xff]
    %v1117 = vld [vmem:[%s4 + $0x1038] sm:$0xff]
    %v1118 = vld [vmem:[%s4 + $0x1040] sm:$0xff]
    %v1119 = vld [vmem:[%s4 + $0x1048] sm:$0xff]
    %v1120 = vld [vmem:[%s4 + $0x1050] sm:$0xff]
    %v1121 = vld [vmem:[%s4 + $0x1058] sm:$0xff]
    %v1122 = vld [vmem:[%s4 + $0x1060] sm:$0xff]
    %v1123 = vld [vmem:[%s4 + $0x1068] sm:$0xff]
    %v1124 = vld [vmem:[%s4 + $0x1070] sm:$0xff]
    %v1125 = vld [vmem:[%s4 + $0x1078] sm:$0xff]
    %v1126 = vld [vmem:[%s4 + $0x1080] sm:$0xff]
    %v1127 = vld [vmem:[%s4 + $0x1088] sm:$0xff]
    %v1128 = vld [vmem:[%s4 + $0x1090] sm:$0xff]
    %v1129 = vld [vmem:[%s4 + $0x1098] sm:$0xff]
    %v1130 = vld [vmem:[%s4 + $0x10a0] sm:$0xff]
    %v1131 = vld [vmem:[%s4 + $0x10a8] sm:$0xff]
    %v1132 = vld [vmem:[%s4 + $0x10b0] sm:$0xff]
    %v1133 = vld [vmem:[%s4 + $0x10b8] sm:$0xff]
    %v1134 = vld [vmem:[%s4 + $0x10c0] sm:$0xff]
    %v1135 = vld [vmem:[%s4 + $0x10c8] sm:$0xff]
    %v1136 = vld [vmem:[%s4 + $0x10d0] sm:$0xff]
    %v1137 = vld [vmem:[%s4 + $0x10d8] sm:$0xff]
    %v1138 = vld [vmem:[%s4 + $0x10e0] sm:$0xff]
    %v1139 = vld [vmem:[%s4 + $0x10e8] sm:$0xff]
    %v1140 = vld [vmem:[%s4 + $0x10f0] sm:$0xff]
    %v1141 = vld [vmem:[%s4 + $0x10f8] sm:$0xff]
    %v1142 = vld [vmem:[%s4 + $0x1100] sm:$0xff]
    %v1143 = vld [vmem:[%s4 + $0x1108] sm:$0xff]
    %v1144 = vld [vmem:[%s4 + $0x1110] sm:$0xff]
    %v1145 = vld [vmem:[%s4 + $0x1118] sm:$0xff]
    %v1146 = vld [vmem:[%s4 + $0x1120] sm:$0xff]
    %v1147 = vld [vmem:[%s4 + $0x1128] sm:$0xff]
    %v1148 = vld [vmem:[%s4 + $0x1130] sm:$0xff]
    %v1149 = vld [vmem:[%s4 + $0x1138] sm:$0xff]
    %v1150 = vld [vmem:[%s4 + $0x1140] sm:$0xff]
    %v1151 = vld [vmem:[%s4 + $0x1148] sm:$0xff]
    %v1152 = vld [vmem:[%s4 + $0x1150] sm:$0xff]
    %v1153 = vld [vmem:[%s4 + $0x1158] sm:$0xff]
    %v1154 = vld [vmem:[%s4 + $0x1160] sm:$0xff]
    %v1155 = vld [vmem:[%s4 + $0x1168] sm:$0xff]
    %v1156 = vld [vmem:[%s4 + $0x1170] sm:$0xff]
    %v1157 = vld [vmem:[%s4 + $0x1178] sm:$0xff]
    %v1158 = vld [vmem:[%s4 + $0x1180] sm:$0xff]
    %v1159 = vld [vmem:[%s4 + $0x1188] sm:$0xff]
    %v1160 = vld [vmem:[%s4 + $0x1190] sm:$0xff]
    %v1161 = vld [vmem:[%s4 + $0x1198] sm:$0xff]
    %v1162 = vld [vmem:[%s4 + $0x11a0] sm:$0xff]
    %v1163 = vld [vmem:[%s4 + $0x11a8] sm:$0xff]
    %v1164 = vld [vmem:[%s4 + $0x11b0] sm:$0xff]
    %v1165 = vld [vmem:[%s4 + $0x11b8] sm:$0xff]
    %v1166 = vld [vmem:[%s4 + $0x11c0] sm:$0xff]
    %v1167 = vld [vmem:[%s4 + $0x11c8] sm:$0xff]
    %v1168 = vld [vmem:[%s4 + $0x11d0] sm:$0xff]
    %v1169 = vld [vmem:[%s4 + $0x11d8] sm:$0xff]
    %v1170 = vld [vmem:[%s4 + $0x11e0] sm:$0xff]
    %v1171 = vld [vmem:[%s4 + $0x11e8] sm:$0xff]
    %v1172 = vld [vmem:[%s4 + $0x11f0] sm:$0xff]
    %v1173 = vld [vmem:[%s4 + $0x11f8] sm:$0xff]
    %v1174 = vld [vmem:[%s4 + $0x1200] sm:$0xff]
    %v1175 = vld [vmem:[%s4 + $0x1208] sm:$0xff]
    %v1176 = vld [vmem:[%s4 + $0x1210] sm:$0xff]
    %v1177 = vld [vmem:[%s4 + $0x1218] sm:$0xff]
    %v1178 = vld [vmem:[%s4 + $0x1220] sm:$0xff]
    %v1179 = vld [vmem:[%s4 + $0x1228] sm:$0xff]
    %v1180 = vld [vmem:[%s4 + $0x1230] sm:$0xff]
    %v1181 = vld [vmem:[%s4 + $0x1238] sm:$0xff]
    %v1182 = vld [vmem:[%s4 + $0x1240] sm:$0xff]
    %v1183 = vld [vmem:[%s4 + $0x1248] sm:$0xff]
    %v1184 = vld [vmem:[%s4 + $0x1250] sm:$0xff]
    %v1185 = vld [vmem:[%s4 + $0x1258] sm:$0xff]
    %v1186 = vld [vmem:[%s4 + $0x1260] sm:$0xff]
    %v1187 = vld [vmem:[%s4 + $0x1268] sm:$0xff]
    %v1188 = vld [vmem:[%s4 + $0x1270] sm:$0xff]
    %v1189 = vld [vmem:[%s4 + $0x1278] sm:$0xff]
    %v1190 = vld [vmem:[%s4 + $0x1280] sm:$0xff]
    %v1191 = vld [vmem:[%s4 + $0x1288] sm:$0xff]
    %v1192 = vld [vmem:[%s4 + $0x1290] sm:$0xff]
    %v1193 = vld [vmem:[%s4 + $0x1298] sm:$0xff]
    %v1194 = vld [vmem:[%s4 + $0x12a0] sm:$0xff]
    %v1195 = vld [vmem:[%s4 + $0x12a8] sm:$0xff]
    %v1196 = vld [vmem:[%s4 + $0x12b0] sm:$0xff]
    %v1197 = vld [vmem:[%s4 + $0x12b8] sm:$0xff]
    %v1198 = vld [vmem:[%s4 + $0x12c0] sm:$0xff]
    %v1199 = vld [vmem:[%s4 + $0x12c8] sm:$0xff]
    %v1200 = vld [vmem:[%s4 + $0x12d0] sm:$0xff]
    %v1201 = vld [vmem:[%s4 + $0x12d8] sm:$0xff]
    %v1202 = vld [vmem:[%s4 + $0x12e0] sm:$0xff]
    %v1203 = vld [vmem:[%s4 + $0x12e8] sm:$0xff]
    %v1204 = vld [vmem:[%s4 + $0x12f0] sm:$0xff]
    %v1205 = vld [vmem:[%s4 + $0x12f8] sm:$0xff]
    %v1206 = vld [vmem:[%s4 + $0x1300] sm:$0xff]
    %v1207 = vld [vmem:[%s4 + $0x1308] sm:$0xff]
    %v1208 = vld [vmem:[%s4 + $0x1310] sm:$0xff]
    %v1209 = vld [vmem:[%s4 + $0x1318] sm:$0xff]
    %v1210 = vld [vmem:[%s4 + $0x1320] sm:$0xff]
    %v1211 = vld [vmem:[%s4 + $0x1328] sm:$0xff]
    %v1212 = vld [vmem:[%s4 + $0x1330] sm:$0xff]
    %v1213 = vld [vmem:[%s4 + $0x1338] sm:$0xff]
    %v1214 = vld [vmem:[%s4 + $0x1340] sm:$0xff]
    %v1215 = vld [vmem:[%s4 + $0x1348] sm:$0xff]
    %v1216 = vld [vmem:[%s4 + $0x1350] sm:$0xff]
    %v1217 = vld [vmem:[%s4 + $0x1358] sm:$0xff]
    %v1218 = vld [vmem:[%s4 + $0x1360] sm:$0xff]
    %v1219 = vld [vmem:[%s4 + $0x1368] sm:$0xff]
    %v1220 = vld [vmem:[%s4 + $0x1370] sm:$0xff]
    %v1221 = vld [vmem:[%s4 + $0x1378] sm:$0xff]
    %v1222 = vld [vmem:[%s4 + $0x1380] sm:$0xff]
    %v1223 = vld [vmem:[%s4 + $0x1388] sm:$0xff]
    %v1224 = vld [vmem:[%s4 + $0x1390] sm:$0xff]
    %v1225 = vld [vmem:[%s4 + $0x1398] sm:$0xff]
    %v1226 = vld [vmem:[%s4 + $0x13a0] sm:$0xff]
    %v1227 = vld [vmem:[%s4 + $0x13a8] sm:$0xff]
    %v1228 = vld [vmem:[%s4 + $0x13b0] sm:$0xff]
    %v1229 = vld [vmem:[%s4 + $0x13b8] sm:$0xff]
    %v1230 = vld [vmem:[%s4 + $0x13c0] sm:$0xff]
    %v1231 = vld [vmem:[%s4 + $0x13c8] sm:$0xff]
    %v1232 = vld [vmem:[%s4 + $0x13d0] sm:$0xff]
    %v1233 = vld [vmem:[%s4 + $0x13d8] sm:$0xff]
    %v1234 = vld [vmem:[%s4 + $0x13e0] sm:$0xff]
    %v1235 = vld [vmem:[%s4 + $0x13e8] sm:$0xff]
    %v1236 = vld [vmem:[%s4 + $0x13f0] sm:$0xff]
    %v1237 = vld [vmem:[%s4 + $0x13f8] sm:$0xff]
    %v1238 = vld [vmem:[%s4 + $0x1400] sm:$0xff]
    %v1239 = vld [vmem:[%s4 + $0x1408] sm:$0xff]
    %v1240 = vld [vmem:[%s4 + $0x1410] sm:$0xff]
    %v1241 = vld [vmem:[%s4 + $0x1418] sm:$0xff]
    %v1242 = vld [vmem:[%s4 + $0x1420] sm:$0xff]
    %v1243 = vld [vmem:[%s4 + $0x1428] sm:$0xff]
    %v1244 = vld [vmem:[%s4 + $0x1430] sm:$0xff]
    %v1245 = vld [vmem:[%s4 + $0x1438] sm:$0xff]
    %v1246 = vld [vmem:[%s4 + $0x1440] sm:$0xff]
    %v1247 = vld [vmem:[%s4 + $0x1448] sm:$0xff]
    %v1248 = vld [vmem:[%s4 + $0x1450] sm:$0xff]
    %v1249 = vld [vmem:[%s4 + $0x1458] sm:$0xff]
    %v1250 = vld [vmem:[%s4 + $0x1460] sm:$0xff]
    %v1251 = vld [vmem:[%s4 + $0x1468] sm:$0xff]
    %v1252 = vld [vmem:[%s4 + $0x1470] sm:$0xff]
    %v1253 = vld [vmem:[%s4 + $0x1478] sm:$0xff]
    %v1254 = vld [vmem:[%s4 + $0x1480] sm:$0xff]
    %v1255 = vld [vmem:[%s4 + $0x1488] sm:$0xff]
    %v1256 = vld [vmem:[%s4 + $0x1490] sm:$0xff]
    %v1257 = vld [vmem:[%s4 + $0x1498] sm:$0xff]
    %v1258 = vld [vmem:[%s4 + $0x14a0] sm:$0xff]
    %v1259 = vld [vmem:[%s4 + $0x14a8] sm:$0xff]
    %v1260 = vld [vmem:[%s4 + $0x14b0] sm:$0xff]
    %v1261 = vld [vmem:[%s4 + $0x14b8] sm:$0xff]
    %v1262 = vld [vmem:[%s4 + $0x14c0] sm:$0xff]
    %v1263 = vld [vmem:[%s4 + $0x14c8] sm:$0xff]
    %v1264 = vld [vmem:[%s4 + $0x14d0] sm:$0xff]
    %v1265 = vld [vmem:[%s4 + $0x14d8] sm:$0xff]
    %v1266 = vld [vmem:[%s4 + $0x14e0] sm:$0xff]
    %v1267 = vld [vmem:[%s4 + $0x14e8] sm:$0xff]
    %v1268 = vld [vmem:[%s4 + $0x14f0] sm:$0xff]
    %v1269 = vld [vmem:[%s4 + $0x14f8] sm:$0xff]
    %v1270 = vld [vmem:[%s4 + $0x1500] sm:$0xff]
    %v1271 = vld [vmem:[%s4 + $0x1508] sm:$0xff]
    %v1272 = vld [vmem:[%s4 + $0x1510] sm:$0xff]
    %v1273 = vld [vmem:[%s4 + $0x1518] sm:$0xff]
    %v1274 = vld [vmem:[%s4 + $0x1520] sm:$0xff]
    %v1275 = vld [vmem:[%s4 + $0x1528] sm:$0xff]
    %v1276 = vld [vmem:[%s4 + $0x1530] sm:$0xff]
    %v1277 = vld [vmem:[%s4 + $0x1538] sm:$0xff]
    %v1278 = vld [vmem:[%s4 + $0x1540] sm:$0xff]
    %v1279 = vld [vmem:[%s4 + $0x1548] sm:$0xff]
    %v1280 = vld [vmem:[%s4 + $0x1550] sm:$0xff]
    %v1281 = vld [vmem:[%s4 + $0x1558] sm:$0xff]
    %v1282 = vld [vmem:[%s4 + $0x1560] sm:$0xff]
    %v1283 = vld [vmem:[%s4 + $0x1568] sm:$0xff]
    %v1284 = vld [vmem:[%s4 + $0x1570] sm:$0xff]
    %v1285 = vld [vmem:[%s4 + $0x1578] sm:$0xff]
    %v1286 = vld [vmem:[%s4 + $0x1580] sm:$0xff]
    %v1287 = vld [vmem:[%s4 + $0x1588] sm:$0xff]
    %v1288 = vld [vmem:[%s4 + $0x1590] sm:$0xff]
    %v1289 = vld [vmem:[%s4 + $0x1598] sm:$0xff]
    %v1290 = vld [vmem:[%s4 + $0x15a0] sm:$0xff]
    %v1291 = vld [vmem:[%s4 + $0x15a8] sm:$0xff]
    %v1292 = vld [vmem:[%s4 + $0x15b0] sm:$0xff]
    %v1293 = vld [vmem:[%s4 + $0x15b8] sm:$0xff]
    %v1294 = vld [vmem:[%s4 + $0x15c0] sm:$0xff]
    %v1295 = vld [vmem:[%s4 + $0x15c8] sm:$0xff]
    %v1296 = vld [vmem:[%s4 + $0x15d0] sm:$0xff]
    %v1297 = vld [vmem:[%s4 + $0x15d8] sm:$0xff]
    %v1298 = vld [vmem:[%s4 + $0x15e0] sm:$0xff]
    %v1299 = vld [vmem:[%s4 + $0x15e8] sm:$0xff]
    %v1300 = vld [vmem:[%s4 + $0x15f0] sm:$0xff]
    %v1301 = vld [vmem:[%s4 + $0x15f8] sm:$0xff]
    %v1302 = vld [vmem:[%s4 + $0x1600] sm:$0xff]
    %v1303 = vld [vmem:[%s4 + $0x1608] sm:$0xff]
    %v1304 = vld [vmem:[%s4 + $0x1610] sm:$0xff]
    %v1305 = vld [vmem:[%s4 + $0x1618] sm:$0xff]
    %v1306 = vld [vmem:[%s4 + $0x1620] sm:$0xff]
    %v1307 = vld [vmem:[%s4 + $0x1628] sm:$0xff]
    %v1308 = vld [vmem:[%s4 + $0x1630] sm:$0xff]
    %v1309 = vld [vmem:[%s4 + $0x1638] sm:$0xff]
    %v1310 = vld [vmem:[%s4 + $0x1640] sm:$0xff]
    %v1311 = vld [vmem:[%s4 + $0x1648] sm:$0xff]
    %v1312 = vld [vmem:[%s4 + $0x1650] sm:$0xff]
    %v1313 = vld [vmem:[%s4 + $0x1658] sm:$0xff]
    %v1314 = vld [vmem:[%s4 + $0x1660] sm:$0xff]
    %v1315 = vld [vmem:[%s4 + $0x1668] sm:$0xff]
    %v1316 = vld [vmem:[%s4 + $0x1670] sm:$0xff]
    %v1317 = vld [vmem:[%s4 + $0x1678] sm:$0xff]
    %v1318 = vld [vmem:[%s4 + $0x1680] sm:$0xff]
    %v1319 = vld [vmem:[%s4 + $0x1688] sm:$0xff]
    %v1320 = vld [vmem:[%s4 + $0x1690] sm:$0xff]
    %v1321 = vld [vmem:[%s4 + $0x1698] sm:$0xff]
    %v1322 = vld [vmem:[%s4 + $0x16a0] sm:$0xff]
    %v1323 = vld [vmem:[%s4 + $0x16a8] sm:$0xff]
    %v1324 = vld [vmem:[%s4 + $0x16b0] sm:$0xff]
    %v1325 = vld [vmem:[%s4 + $0x16b8] sm:$0xff]
    %v1326 = vld [vmem:[%s4 + $0x16c0] sm:$0xff]
    %v1327 = vld [vmem:[%s4 + $0x16c8] sm:$0xff]
    %v1328 = vld [vmem:[%s4 + $0x16d0] sm:$0xff]
    %v1329 = vld [vmem:[%s4 + $0x16d8] sm:$0xff]
    %v1330 = vld [vmem:[%s4 + $0x16e0] sm:$0xff]
    %v1331 = vld [vmem:[%s4 + $0x16e8] sm:$0xff]
    %v1332 = vld [vmem:[%s4 + $0x16f0] sm:$0xff]
    %v1333 = vld [vmem:[%s4 + $0x16f8] sm:$0xff]
    %v1334 = vld [vmem:[%s4 + $0x1700] sm:$0xff]
    %v1335 = vld [vmem:[%s4 + $0x1708] sm:$0xff]
    %v1336 = vld [vmem:[%s4 + $0x1710] sm:$0xff]
    %v1337 = vld [vmem:[%s4 + $0x1718] sm:$0xff]
    %v1338 = vld [vmem:[%s4 + $0x1720] sm:$0xff]
    %v1339 = vld [vmem:[%s4 + $0x1728] sm:$0xff]
    %v1340 = vld [vmem:[%s4 + $0x1730] sm:$0xff]
    %v1341 = vld [vmem:[%s4 + $0x1738] sm:$0xff]
    %v1342 = vld [vmem:[%s4 + $0x1740] sm:$0xff]
    %v1343 = vld [vmem:[%s4 + $0x1748] sm:$0xff]
    %v1344 = vld [vmem:[%s4 + $0x1750] sm:$0xff]
    %v1345 = vld [vmem:[%s4 + $0x1758] sm:$0xff]
    %v1346 = vld [vmem:[%s4 + $0x1760] sm:$0xff]
    %v1347 = vld [vmem:[%s4 + $0x1768] sm:$0xff]
    %v1348 = vld [vmem:[%s4 + $0x1770] sm:$0xff]
    %v1349 = vld [vmem:[%s4 + $0x1778] sm:$0xff]
    %v1350 = vld [vmem:[%s4 + $0x1780] sm:$0xff]
    %v1351 = vld [vmem:[%s4 + $0x1788] sm:$0xff]
    %v1352 = vld [vmem:[%s4 + $0x1790] sm:$0xff]
    %v1353 = vld [vmem:[%s4 + $0x1798] sm:$0xff]
    %v1354 = vld [vmem:[%s4 + $0x17a0] sm:$0xff]
    %v1355 = vld [vmem:[%s4 + $0x17a8] sm:$0xff]
    %v1356 = vld [vmem:[%s4 + $0x17b0] sm:$0xff]
    %v1357 = vld [vmem:[%s4 + $0x17b8] sm:$0xff]
    %v1358 = vld [vmem:[%s4 + $0x17c0] sm:$0xff]
    %v1359 = vld [vmem:[%s4 + $0x17c8] sm:$0xff]
    %v1360 = vld [vmem:[%s4 + $0x17d0] sm:$0xff]
    %v1361 = vld [vmem:[%s4 + $0x17d8] sm:$0xff]
    %v1362 = vld [vmem:[%s4 + $0x17e0] sm:$0xff]
    %v1363 = vld [vmem:[%s4 + $0x17e8] sm:$0xff]
    %v1364 = vld [vmem:[%s4 + $0x17f0] sm:$0xff]
    %v1365 = vld [vmem:[%s4 + $0x17f8] sm:$0xff]
    %v1366 = vld [vmem:[%s4 + $0x1800] sm:$0xff]
    %v1367 = vld [vmem:[%s4 + $0x1808] sm:$0xff]
    %v1368 = vld [vmem:[%s4 + $0x1810] sm:$0xff]
    %v1369 = vld [vmem:[%s4 + $0x1818] sm:$0xff]
    %v1370 = vld [vmem:[%s4 + $0x1820] sm:$0xff]
    %v1371 = vld [vmem:[%s4 + $0x1828] sm:$0xff]
    %v1372 = vld [vmem:[%s4 + $0x1830] sm:$0xff]
    %v1373 = vld [vmem:[%s4 + $0x1838] sm:$0xff]
    %v1374 = vld [vmem:[%s4 + $0x1840] sm:$0xff]
    %v1375 = vld [vmem:[%s4 + $0x1848] sm:$0xff]
    %v1376 = vld [vmem:[%s4 + $0x1850] sm:$0xff]
    %v1377 = vld [vmem:[%s4 + $0x1858] sm:$0xff]
    %v1378 = vld [vmem:[%s4 + $0x1860] sm:$0xff]
    %v1379 = vld [vmem:[%s4 + $0x1868] sm:$0xff]
    %v1380 = vld [vmem:[%s4 + $0x1870] sm:$0xff]
    %v1381 = vld [vmem:[%s4 + $0x1878] sm:$0xff]
    %v1382 = vld [vmem:[%s4 + $0x1880] sm:$0xff]
    %v1383 = vld [vmem:[%s4 + $0x1888] sm:$0xff]
    %v1384 = vld [vmem:[%s4 + $0x1890] sm:$0xff]
    %v1385 = vld [vmem:[%s4 + $0x1898] sm:$0xff]
    %v1386 = vld [vmem:[%s4 + $0x18a0] sm:$0xff]
    %v1387 = vld [vmem:[%s4 + $0x18a8] sm:$0xff]
    %v1388 = vld [vmem:[%s4 + $0x18b0] sm:$0xff]
    %v1389 = vld [vmem:[%s4 + $0x18b8] sm:$0xff]
    %v1390 = vld [vmem:[%s4 + $0x18c0] sm:$0xff]
    %v1391 = vld [vmem:[%s4 + $0x18c8] sm:$0xff]
    %v1392 = vld [vmem:[%s4 + $0x18d0] sm:$0xff]
    %v1393 = vld [vmem:[%s4 + $0x18d8] sm:$0xff]
    %v1394 = vld [vmem:[%s4 + $0x18e0] sm:$0xff]
    %v1395 = vld [vmem:[%s4 + $0x18e8] sm:$0xff]
    %v1396 = vld [vmem:[%s4 + $0x18f0] sm:$0xff]
    %v1397 = vld [vmem:[%s4 + $0x18f8] sm:$0xff]
    %v1398 = vld [vmem:[%s4 + $0x1900] sm:$0xff]
    %v1399 = vld [vmem:[%s4 + $0x1908] sm:$0xff]
    %v1400 = vld [vmem:[%s4 + $0x1910] sm:$0xff]
    %v1401 = vld [vmem:[%s4 + $0x1918] sm:$0xff]
    %v1402 = vld [vmem:[%s4 + $0x1920] sm:$0xff]
    %v1403 = vld [vmem:[%s4 + $0x1928] sm:$0xff]
    %v1404 = vld [vmem:[%s4 + $0x1930] sm:$0xff]
    %v1405 = vld [vmem:[%s4 + $0x1938] sm:$0xff]
    %v1406 = vld [vmem:[%s4 + $0x1940] sm:$0xff]
    %v1407 = vld [vmem:[%s4 + $0x1948] sm:$0xff]
    %v1408 = vld [vmem:[%s4 + $0x1950] sm:$0xff]
    %v1409 = vld [vmem:[%s4 + $0x1958] sm:$0xff]
    %v1410 = vld [vmem:[%s4 + $0x1960] sm:$0xff]
    %v1411 = vld [vmem:[%s4 + $0x1968] sm:$0xff]
    %v1412 = vld [vmem:[%s4 + $0x1970] sm:$0xff]
    %v1413 = vld [vmem:[%s4 + $0x1978] sm:$0xff]
    %v1414 = vld [vmem:[%s4 + $0x1980] sm:$0xff]
    %v1415 = vld [vmem:[%s4 + $0x1988] sm:$0xff]
    %v1416 = vld [vmem:[%s4 + $0x1990] sm:$0xff]
    %v1417 = vld [vmem:[%s4 + $0x1998] sm:$0xff]
    %v1418 = vld [vmem:[%s4 + $0x19a0] sm:$0xff]
    %v1419 = vld [vmem:[%s4 + $0x19a8] sm:$0xff]
    %v1420 = vld [vmem:[%s4 + $0x19b0] sm:$0xff]
    %v1421 = vld [vmem:[%s4 + $0x19b8] sm:$0xff]
    %v1422 = vld [vmem:[%s4 + $0x19c0] sm:$0xff]
    %v1423 = vld [vmem:[%s4 + $0x19c8] sm:$0xff]
    %v1424 = vld [vmem:[%s4 + $0x19d0] sm:$0xff]
    %v1425 = vld [vmem:[%s4 + $0x19d8] sm:$0xff]
    %v1426 = vld [vmem:[%s4 + $0x19e0] sm:$0xff]
    %v1427 = vld [vmem:[%s4 + $0x19e8] sm:$0xff]
    %v1428 = vld [vmem:[%s4 + $0x19f0] sm:$0xff]
    %v1429 = vld [vmem:[%s4 + $0x19f8] sm:$0xff]
    %v1430 = vld [vmem:[%s4 + $0x1a00] sm:$0xff]
    %v1431 = vld [vmem:[%s4 + $0x1a08] sm:$0xff]
    %v1432 = vld [vmem:[%s4 + $0x1a10] sm:$0xff]
    %v1433 = vld [vmem:[%s4 + $0x1a18] sm:$0xff]
    %v1434 = vld [vmem:[%s4 + $0x1a20] sm:$0xff]
    %v1435 = vld [vmem:[%s4 + $0x1a28] sm:$0xff]
    %v1436 = vld [vmem:[%s4 + $0x1a30] sm:$0xff]
    %v1437 = vld [vmem:[%s4 + $0x1a38] sm:$0xff]
    %v1438 = vld [vmem:[%s5] sm:$0x3f]
    %v1440 = vlaneseq
    %v1441 = vshrl.u32 %v1440, 7
    %v1442 = vsub.s32 0, %v1441
    %v1443 = vrot.slane %v1438, %v1442
    %v1444 = vlaneseq
    %v1445 = vshrl.u32 %v1444, 7
    %v1446 = vsub.s32 1, %v1445
    %v1447 = vrot.slane %v1438, %v1446
    %v1448 = vlaneseq
    %v1449 = vshrl.u32 %v1448, 7
    %v1450 = vsub.s32 2, %v1449
    %v1451 = vrot.slane %v1438, %v1450
    %v1452 = vlaneseq
    %v1453 = vshrl.u32 %v1452, 7
    %v1454 = vsub.s32 3, %v1453
    %v1455 = vrot.slane %v1438, %v1454
    %v1456 = vlaneseq
    %v1457 = vshrl.u32 %v1456, 7
    %v1458 = vsub.s32 4, %v1457
    %v1459 = vrot.slane %v1438, %v1458
    %v1460 = vlaneseq
    %v1461 = vshrl.u32 %v1460, 7
    %v1462 = vsub.s32 5, %v1461
    %v1463 = vrot.slane %v1438, %v1462
    %vm1470 = vcmask 785408
    %v1472 = vsel %vm1470, %v597, 0
    %1474 = vmatprep.subr.mxu0 %v599
    %1475 = vmatpush1.msra.mxu0 %v598
    %1476 = vmatprep.subr.mxu0 %v605
    %1477 = vmatpush1.msra.mxu0 %v604
    %1478 = vmatprep.subr.mxu0 %v611
    %1479 = vmatpush1.msra.mxu0 %v610
    %1480 = vmatprep.subr.mxu0 %v617
    %1481 = vmatpush1.msra.mxu0 %v616
    %1482 = vmatprep.subr.mxu0 %v623
    %1483 = vmatpush1.msra.mxu0 %v622
    %1484 = vmatprep.subr.mxu0 %v629
    %1485 = vmatpush1.msra.mxu0 %v628
    %1486 = vmatprep.subr.mxu0 %v635
    %1487 = vmatpush1.msra.mxu0 %v634
    %1488 = vmatprep.subr.mxu0 %v641
    %1489 = vmatpush1.msra.mxu0 %v640
    %1490 = vmatprep.subr.mxu0 %v647
    %1491 = vmatpush1.msra.mxu0 %v646
    %1492 = vmatprep.subr.mxu0 %v653
    %1493 = vmatpush1.msra.mxu0 %v652
    %1494 = vmatprep.subr.mxu0 %v659
    %1495 = vmatpush1.msra.mxu0 %v658
    %1496 = vmatprep.subr.mxu0 %v665
    %1497 = vmatpush1.msra.mxu0 %v664
    %1498 = vmatprep.subr.mxu0 %v671
    %1499 = vmatpush1.msra.mxu0 %v670
    %1500 = vmatprep.subr.mxu0 %v677
    %1501 = vmatpush1.msra.mxu0 %v676
    %1502 = vmatprep.subr.mxu0 %v683
    %1503 = vmatpush1.msra.mxu0 %v682
    %1504 = vmatprep.subr.mxu0 %v689
    %1505 = vmatpush1.msra.mxu0 %v688
    %1506 = vmatprep.subr.mxu0 %v695
    %1507 = vmatpush1.msra.mxu0 %v694
    %1508 = vmatprep.subr.mxu0 %v701
    %1509 = vmatpush1.msra.mxu0 %v700
    %1510 = vmatprep.subr.mxu0 %v707
    %1511 = vmatpush1.msra.mxu0 %v706
    %1512 = vmatprep.subr.mxu0 %v713
    %1513 = vmatpush1.msra.mxu0 %v712
    %1514 = vmatprep.subr.mxu0 %v719
    %1515 = vmatpush1.msra.mxu0 %v718
    %1516 = vmatprep.subr.mxu0 %v725
    %1517 = vmatpush1.msra.mxu0 %v724
    %1518 = vmatprep.subr.mxu0 %v731
    %1519 = vmatpush1.msra.mxu0 %v730
    %1520 = vmatprep.subr.mxu0 %v737
    %1521 = vmatpush1.msra.mxu0 %v736
    %1522 = vmatprep.subr.mxu0 %v743
    %1523 = vmatpush1.msra.mxu0 %v742
    %1524 = vmatprep.subr.mxu0 %v749
    %1525 = vmatpush1.msra.mxu0 %v748
    %1526 = vmatprep.subr.mxu0 %v755
    %1527 = vmatpush1.msra.mxu0 %v754
    %1528 = vmatprep.subr.mxu0 %v761
    %1529 = vmatpush1.msra.mxu0 %v760
    %1530 = vmatprep.subr.mxu0 %v767
    %1531 = vmatpush1.msra.mxu0 %v766
    %1532 = vmatprep.subr.mxu0 %v773
    %1533 = vmatpush1.msra.mxu0 %v772
    %1534 = vmatprep.subr.mxu0 %v779
    %1535 = vmatpush1.msra.mxu0 %v778
    %1536 = vmatprep.subr.mxu0 %v785
    %1537 = vmatpush1.msra.mxu0 %v784
    %1538 = vmatprep.mubr.f32.mxu0 %v590
    %1539 = vmatmul.mubr.f32.gmra.mrb[0].mxu0 %v589
    %v1540 = vpop.f32.mrb[0].mxu0
    %v1541 = vadd.f32 %v1443, %v1540
    %v1542 = vpop.f32.mrb[0].mxu0
    %v1543 = vadd.f32 %v1447, %v1542
    %1544 = vdwg.mxu0
    %1545 = vmatprep.subr.mxu0 %v791
    %1546 = vmatpush1.msra.mxu0 %v790
    %1547 = vmatprep.subr.mxu0 %v797
    %1548 = vmatpush1.msra.mxu0 %v796
    %1549 = vmatprep.subr.mxu0 %v803
    %1550 = vmatpush1.msra.mxu0 %v802
    %1551 = vmatprep.subr.mxu0 %v809
    %1552 = vmatpush1.msra.mxu0 %v808
    %1553 = vmatprep.subr.mxu0 %v815
    %1554 = vmatpush1.msra.mxu0 %v814
    %1555 = vmatprep.subr.mxu0 %v821
    %1556 = vmatpush1.msra.mxu0 %v820
    %1557 = vmatprep.subr.mxu0 %v827
    %1558 = vmatpush1.msra.mxu0 %v826
    %1559 = vmatprep.subr.mxu0 %v833
    %1560 = vmatpush1.msra.mxu0 %v832
    %1561 = vmatprep.subr.mxu0 %v839
    %1562 = vmatpush1.msra.mxu0 %v838
    %1563 = vmatprep.subr.mxu0 %v845
    %1564 = vmatpush1.msra.mxu0 %v844
    %1565 = vmatprep.subr.mxu0 %v851
    %1566 = vmatpush1.msra.mxu0 %v850
    %1567 = vmatprep.subr.mxu0 %v857
    %1568 = vmatpush1.msra.mxu0 %v856
    %1569 = vmatprep.subr.mxu0 %v863
    %1570 = vmatpush1.msra.mxu0 %v862
    %1571 = vmatprep.subr.mxu0 %v869
    %1572 = vmatpush1.msra.mxu0 %v868
    %1573 = vmatprep.subr.mxu0 %v875
    %1574 = vmatpush1.msra.mxu0 %v874
    %1575 = vmatprep.subr.mxu0 %v881
    %1576 = vmatpush1.msra.mxu0 %v880
    %1577 = vmatprep.subr.mxu0 %v887
    %1578 = vmatpush1.msra.mxu0 %v886
    %1579 = vmatprep.subr.mxu0 %v893
    %1580 = vmatpush1.msra.mxu0 %v892
    %1581 = vmatprep.subr.mxu0 %v899
    %1582 = vmatpush1.msra.mxu0 %v898
    %1583 = vmatprep.subr.mxu0 %v905
    %1584 = vmatpush1.msra.mxu0 %v904
    %1585 = vmatprep.subr.mxu0 %v911
    %1586 = vmatpush1.msra.mxu0 %v910
    %1587 = vmatprep.subr.mxu0 %v917
    %1588 = vmatpush1.msra.mxu0 %v916
    %1589 = vmatprep.subr.mxu0 %v923
    %1590 = vmatpush1.msra.mxu0 %v922
    %1591 = vmatprep.subr.mxu0 %v929
    %1592 = vmatpush1.msra.mxu0 %v928
    %1593 = vmatprep.subr.mxu0 %v935
    %1594 = vmatpush1.msra.mxu0 %v934
    %1595 = vmatprep.subr.mxu0 %v941
    %1596 = vmatpush1.msra.mxu0 %v940
    %1597 = vmatprep.subr.mxu0 %v947
    %1598 = vmatpush1.msra.mxu0 %v946
    %1599 = vmatprep.subr.mxu0 %v953
    %1600 = vmatpush1.msra.mxu0 %v952
    %1601 = vmatprep.subr.mxu0 %v959
    %1602 = vmatpush1.msra.mxu0 %v958
    %1603 = vmatprep.subr.mxu0 %v965
    %1604 = vmatpush1.msra.mxu0 %v964
    %1605 = vmatprep.subr.mxu0 %v971
    %1606 = vmatpush1.msra.mxu0 %v970
    %1607 = vmatprep.subr.mxu0 %v977
    %1608 = vmatpush1.msra.mxu0 %v976
    %1609 = vmatprep.mubr.f32.mxu0 %v592
    %1610 = vmatmul.mubr.f32.gmra.mrb[0].mxu0 %v591
    %v1611 = vpop.f32.mrb[0].mxu0
    %v1612 = vadd.f32 %v1541, %v1611
    %v1613 = vpop.f32.mrb[0].mxu0
    %v1614 = vadd.f32 %v1543, %v1613
    %1615 = vdwg.mxu0
    %1616 = vmatprep.subr.mxu0 %v983
    %1617 = vmatpush1.msra.mxu0 %v982
    %1618 = vmatprep.subr.mxu0 %v989
    %1619 = vmatpush1.msra.mxu0 %v988
    %1620 = vmatprep.subr.mxu0 %v995
    %1621 = vmatpush1.msra.mxu0 %v994
    %1622 = vmatprep.subr.mxu0 %v1001
    %1623 = vmatpush1.msra.mxu0 %v1000
    %1624 = vmatprep.subr.mxu0 %v1007
    %1625 = vmatpush1.msra.mxu0 %v1006
    %1626 = vmatprep.subr.mxu0 %v1013
    %1627 = vmatpush1.msra.mxu0 %v1012
    %1628 = vmatprep.subr.mxu0 %v1019
    %1629 = vmatpush1.msra.mxu0 %v1018
    %1630 = vmatprep.subr.mxu0 %v1025
    %1631 = vmatpush1.msra.mxu0 %v1024
    %1632 = vmatprep.subr.mxu0 %v1031
    %1633 = vmatpush1.msra.mxu0 %v1030
    %1634 = vmatprep.subr.mxu0 %v1037
    %1635 = vmatpush1.msra.mxu0 %v1036
    %1636 = vmatprep.subr.mxu0 %v1043
    %1637 = vmatpush1.msra.mxu0 %v1042
    %1638 = vmatprep.subr.mxu0 %v1049
    %1639 = vmatpush1.msra.mxu0 %v1048
    %1640 = vmatprep.subr.mxu0 %v1055
    %1641 = vmatpush1.msra.mxu0 %v1054
    %1642 = vmatprep.subr.mxu0 %v1061
    %1643 = vmatpush1.msra.mxu0 %v1060
    %1644 = vmatprep.subr.mxu0 %v1067
    %1645 = vmatpush1.msra.mxu0 %v1066
    %1646 = vmatprep.subr.mxu0 %v1073
    %1647 = vmatpush1.msra.mxu0 %v1072
    %1648 = vmatprep.subr.mxu0 %v1079
    %1649 = vmatpush1.msra.mxu0 %v1078
    %1650 = vmatprep.subr.mxu0 %v1085
    %1651 = vmatpush1.msra.mxu0 %v1084
    %1652 = vmatprep.subr.mxu0 %v1091
    %1653 = vmatpush1.msra.mxu0 %v1090
    %1654 = vmatprep.subr.mxu0 %v1097
    %1655 = vmatpush1.msra.mxu0 %v1096
    %1656 = vmatprep.subr.mxu0 %v1103
    %1657 = vmatpush1.msra.mxu0 %v1102
    %1658 = vmatprep.subr.mxu0 %v1109
    %1659 = vmatpush1.msra.mxu0 %v1108
    %1660 = vmatprep.subr.mxu0 %v1115
    %1661 = vmatpush1.msra.mxu0 %v1114
    %1662 = vmatprep.subr.mxu0 %v1121
    %1663 = vmatpush1.msra.mxu0 %v1120
    %1664 = vmatprep.subr.mxu0 %v1127
    %1665 = vmatpush1.msra.mxu0 %v1126
    %1666 = vmatprep.subr.mxu0 %v1133
    %1667 = vmatpush1.msra.mxu0 %v1132
    %1668 = vmatprep.subr.mxu0 %v1139
    %1669 = vmatpush1.msra.mxu0 %v1138
    %1670 = vmatprep.subr.mxu0 %v1145
    %1671 = vmatpush1.msra.mxu0 %v1144
    %1672 = vmatprep.subr.mxu0 %v1151
    %1673 = vmatpush1.msra.mxu0 %v1150
    %1674 = vmatprep.subr.mxu0 %v1157
    %1675 = vmatpush1.msra.mxu0 %v1156
    %1676 = vmatprep.subr.mxu0 %v1163
    %1677 = vmatpush1.msra.mxu0 %v1162
    %1678 = vmatprep.subr.mxu0 %v1169
    %1679 = vmatpush1.msra.mxu0 %v1168
    %1680 = vmatprep.mubr.f32.mxu0 %v594
    %1681 = vmatmul.mubr.f32.gmra.mrb[0].mxu0 %v593
    %v1682 = vpop.f32.mrb[0].mxu0
    %v1683 = vadd.f32 %v1612, %v1682
    %v1684 = vpop.f32.mrb[0].mxu0
    %v1685 = vadd.f32 %v1614, %v1684
    %1686 = vdwg.mxu0
    %1687 = vmatprep.subr.mxu0 %v1175
    %1688 = vmatpush1.msra.mxu0 %v1174
    %1689 = vmatprep.subr.mxu0 %v1181
    %1690 = vmatpush1.msra.mxu0 %v1180
    %1691 = vmatprep.subr.mxu0 %v1187
    %1692 = vmatpush1.msra.mxu0 %v1186
    %1693 = vmatprep.subr.mxu0 %v1193
    %1694 = vmatpush1.msra.mxu0 %v1192
    %1695 = vmatprep.subr.mxu0 %v1199
    %1696 = vmatpush1.msra.mxu0 %v1198
    %1697 = vmatprep.subr.mxu0 %v1205
    %1698 = vmatpush1.msra.mxu0 %v1204
    %1699 = vmatprep.subr.mxu0 %v1211
    %1700 = vmatpush1.msra.mxu0 %v1210
    %1701 = vmatprep.subr.mxu0 %v1217
    %1702 = vmatpush1.msra.mxu0 %v1216
    %1703 = vmatprep.subr.mxu0 %v1223
    %1704 = vmatpush1.msra.mxu0 %v1222
    %1705 = vmatprep.subr.mxu0 %v1229
    %1706 = vmatpush1.msra.mxu0 %v1228
    %1707 = vmatprep.subr.mxu0 %v1235
    %1708 = vmatpush1.msra.mxu0 %v1234
    %1709 = vmatprep.subr.mxu0 %v1241
    %1710 = vmatpush1.msra.mxu0 %v1240
    %1711 = vmatprep.subr.mxu0 %v1247
    %1712 = vmatpush1.msra.mxu0 %v1246
    %1713 = vmatprep.subr.mxu0 %v1253
    %1714 = vmatpush1.msra.mxu0 %v1252
    %1715 = vmatprep.subr.mxu0 %v1259
    %1716 = vmatpush1.msra.mxu0 %v1258
    %1717 = vmatprep.subr.mxu0 %v1265
    %1718 = vmatpush1.msra.mxu0 %v1264
    %1719 = vmatprep.subr.mxu0 %v1271
    %1720 = vmatpush1.msra.mxu0 %v1270
    %1721 = vmatprep.subr.mxu0 %v1277
    %1722 = vmatpush1.msra.mxu0 %v1276
    %1723 = vmatprep.subr.mxu0 %v1283
    %1724 = vmatpush1.msra.mxu0 %v1282
    %1725 = vmatprep.subr.mxu0 %v1289
    %1726 = vmatpush1.msra.mxu0 %v1288
    %1727 = vmatprep.subr.mxu0 %v1295
    %1728 = vmatpush1.msra.mxu0 %v1294
    %1729 = vmatprep.subr.mxu0 %v1301
    %1730 = vmatpush1.msra.mxu0 %v1300
    %1731 = vmatprep.subr.mxu0 %v1307
    %1732 = vmatpush1.msra.mxu0 %v1306
    %1733 = vmatprep.subr.mxu0 %v1313
    %1734 = vmatpush1.msra.mxu0 %v1312
    %1735 = vmatprep.subr.mxu0 %v1319
    %1736 = vmatpush1.msra.mxu0 %v1318
    %1737 = vmatprep.subr.mxu0 %v1325
    %1738 = vmatpush1.msra.mxu0 %v1324
    %1739 = vmatprep.subr.mxu0 %v1331
    %1740 = vmatpush1.msra.mxu0 %v1330
    %1741 = vmatprep.subr.mxu0 %v1337
    %1742 = vmatpush1.msra.mxu0 %v1336
    %1743 = vmatprep.subr.mxu0 %v1343
    %1744 = vmatpush1.msra.mxu0 %v1342
    %1745 = vmatprep.subr.mxu0 %v1349
    %1746 = vmatpush1.msra.mxu0 %v1348
    %1747 = vmatprep.subr.mxu0 %v1355
    %1748 = vmatpush1.msra.mxu0 %v1354
    %1749 = vmatprep.subr.mxu0 %v1361
    %1750 = vmatpush1.msra.mxu0 %v1360
    %1751 = vmatprep.mubr.f32.mxu0 %v596
    %1752 = vmatmul.mubr.f32.gmra.mrb[0].mxu0 %v595
    %v1753 = vpop.f32.mrb[0].mxu0
    %v1754 = vadd.f32 %v1683, %v1753
    %v1755 = vpop.f32.mrb[0].mxu0
    %v1756 = vadd.f32 %v1685, %v1755
    %1757 = vdwg.mxu0
    %1758 = vmatprep.subr.mxu0 %v1367
    %1759 = vmatpush1.msra.mxu0 %v1366
    %1760 = vmatprep.subr.mxu0 %v1373
    %1761 = vmatpush1.msra.mxu0 %v1372
    %1762 = vmatprep.subr.mxu0 %v1379
    %1763 = vmatpush1.msra.mxu0 %v1378
    %1764 = vmatprep.subr.mxu0 %v1385
    %1765 = vmatpush1.msra.mxu0 %v1384
    %1766 = vmatprep.subr.mxu0 %v1391
    %1767 = vmatpush1.msra.mxu0 %v1390
    %1768 = vmatprep.subr.mxu0 %v1397
    %1769 = vmatpush1.msra.mxu0 %v1396
    %1770 = vmatprep.subr.mxu0 %v1403
    %1771 = vmatpush1.msra.mxu0 %v1402
    %1772 = vmatprep.subr.mxu0 %v1409
    %1773 = vmatpush1.msra.mxu0 %v1408
    %1774 = vmatprep.subr.mxu0 %v1415
    %1775 = vmatpush1.msra.mxu0 %v1414
    %1776 = vmatprep.subr.mxu0 %v1421
    %1777 = vmatpush1.msra.mxu0 %v1420
    %1778 = vmatprep.subr.mxu0 %v1427
    %1779 = vmatpush1.msra.mxu0 %v1426
    %1780 = vmatprep.subr.mxu0 %v1433
    %1781 = vmatpush1.msra.mxu0 %v1432
    %1782 = vmatprep.subr.mxu0 0.0
    %1783 = vmatpush1.msra.mxu0 0.0
    %1784 = vmatprep.subr.mxu0 0.0
    %1785 = vmatpush1.msra.mxu0 0.0
    %1786 = vmatprep.subr.mxu0 0.0
    %1787 = vmatpush1.msra.mxu0 0.0
    %1788 = vmatprep.subr.mxu0 0.0
    %1789 = vmatpush1.msra.mxu0 0.0
    %1790 = vmatprep.subr.mxu0 0.0
    %1791 = vmatpush1.msra.mxu0 0.0
    %1792 = vmatprep.subr.mxu0 0.0
    %1793 = vmatpush1.msra.mxu0 0.0
    %1794 = vmatprep.subr.mxu0 0.0
    %1795 = vmatpush1.msra.mxu0 0.0
    %1796 = vmatprep.subr.mxu0 0.0
    %1797 = vmatpush1.msra.mxu0 0.0
    %1798 = vmatprep.subr.mxu0 0.0
    %1799 = vmatpush1.msra.mxu0 0.0
    %1800 = vmatprep.subr.mxu0 0.0
    %1801 = vmatpush1.msra.mxu0 0.0
    %1802 = vmatprep.subr.mxu0 0.0
    %1803 = vmatpush1.msra.mxu0 0.0
    %1804 = vmatprep.subr.mxu0 0.0
    %1805 = vmatpush1.msra.mxu0 0.0
    %1806 = vmatprep.subr.mxu0 0.0
    %1807 = vmatpush1.msra.mxu0 0.0
    %1808 = vmatprep.subr.mxu0 0.0
    %1809 = vmatpush1.msra.mxu0 0.0
    %1810 = vmatprep.subr.mxu0 0.0
    %1811 = vmatpush1.msra.mxu0 0.0
    %1812 = vmatprep.subr.mxu0 0.0
    %1813 = vmatpush1.msra.mxu0 0.0
    %1814 = vmatprep.subr.mxu0 0.0
    %1815 = vmatpush1.msra.mxu0 0.0
    %1816 = vmatprep.subr.mxu0 0.0
    %1817 = vmatpush1.msra.mxu0 0.0
    %1818 = vmatprep.subr.mxu0 0.0
    %1819 = vmatpush1.msra.mxu0 0.0
    %1820 = vmatprep.subr.mxu0 0.0
    %1821 = vmatpush1.msra.mxu0 0.0
    %1822 = vmatprep.mubr.f32.mxu0 0.0
    %1823 = vmatmul.mubr.f32.gmra.mrb[0].mxu0 %v1472
    %v1824 = vpop.f32.mrb[0].mxu0
    %v1825 = vadd.f32 %v1754, %v1824
    %v1826 = vpop.f32.mrb[0].mxu0
    %v1827 = vadd.f32 %v1756, %v1826
    %1828 = vdwg.mxu0
    %1829 = vmatprep.subr.mxu0 %v601
    %1830 = vmatpush1.msra.mxu0 %v600
    %1831 = vmatprep.subr.mxu0 %v607
    %1832 = vmatpush1.msra.mxu0 %v606
    %1833 = vmatprep.subr.mxu0 %v613
    %1834 = vmatpush1.msra.mxu0 %v612
    %1835 = vmatprep.subr.mxu0 %v619
    %1836 = vmatpush1.msra.mxu0 %v618
    %1837 = vmatprep.subr.mxu0 %v625
    %1838 = vmatpush1.msra.mxu0 %v624
    %1839 = vmatprep.subr.mxu0 %v631
    %1840 = vmatpush1.msra.mxu0 %v630
    %1841 = vmatprep.subr.mxu0 %v637
    %1842 = vmatpush1.msra.mxu0 %v636
    %1843 = vmatprep.subr.mxu0 %v643
    %1844 = vmatpush1.msra.mxu0 %v642
    %1845 = vmatprep.subr.mxu0 %v649
    %1846 = vmatpush1.msra.mxu0 %v648
    %1847 = vmatprep.subr.mxu0 %v655
    %1848 = vmatpush1.msra.mxu0 %v654
    %1849 = vmatprep.subr.mxu0 %v661
    %1850 = vmatpush1.msra.mxu0 %v660
    %1851 = vmatprep.subr.mxu0 %v667
    %1852 = vmatpush1.msra.mxu0 %v666
    %1853 = vmatprep.subr.mxu0 %v673
    %1854 = vmatpush1.msra.mxu0 %v672
    %1855 = vmatprep.subr.mxu0 %v679
    %1856 = vmatpush1.msra.mxu0 %v678
    %1857 = vmatprep.subr.mxu0 %v685
    %1858 = vmatpush1.msra.mxu0 %v684
    %1859 = vmatprep.subr.mxu0 %v691
    %1860 = vmatpush1.msra.mxu0 %v690
    %1861 = vmatprep.subr.mxu0 %v697
    %1862 = vmatpush1.msra.mxu0 %v696
    %1863 = vmatprep.subr.mxu0 %v703
    %1864 = vmatpush1.msra.mxu0 %v702
    %1865 = vmatprep.subr.mxu0 %v709
    %1866 = vmatpush1.msra.mxu0 %v708
    %1867 = vmatprep.subr.mxu0 %v715
    %1868 = vmatpush1.msra.mxu0 %v714
    %1869 = vmatprep.subr.mxu0 %v721
    %1870 = vmatpush1.msra.mxu0 %v720
    %1871 = vmatprep.subr.mxu0 %v727
    %1872 = vmatpush1.msra.mxu0 %v726
    %1873 = vmatprep.subr.mxu0 %v733
    %1874 = vmatpush1.msra.mxu0 %v732
    %1875 = vmatprep.subr.mxu0 %v739
    %1876 = vmatpush1.msra.mxu0 %v738
    %1877 = vmatprep.subr.mxu0 %v745
    %1878 = vmatpush1.msra.mxu0 %v744
    %1879 = vmatprep.subr.mxu0 %v751
    %1880 = vmatpush1.msra.mxu0 %v750
    %1881 = vmatprep.subr.mxu0 %v757
    %1882 = vmatpush1.msra.mxu0 %v756
    %1883 = vmatprep.subr.mxu0 %v763
    %1884 = vmatpush1.msra.mxu0 %v762
    %1885 = vmatprep.subr.mxu0 %v769
    %1886 = vmatpush1.msra.mxu0 %v768
    %1887 = vmatprep.subr.mxu0 %v775
    %1888 = vmatpush1.msra.mxu0 %v774
    %1889 = vmatprep.subr.mxu0 %v781
    %1890 = vmatpush1.msra.mxu0 %v780
    %1891 = vmatprep.subr.mxu0 %v787
    %1892 = vmatpush1.msra.mxu0 %v786
    %1893 = vmatprep.mubr.f32.mxu0 %v590
    %1894 = vmatmul.mubr.f32.gmra.mrb[0].mxu0 %v589
    %v1895 = vpop.f32.mrb[0].mxu0
    %v1896 = vadd.f32 %v1451, %v1895
    %v1897 = vpop.f32.mrb[0].mxu0
    %v1898 = vadd.f32 %v1455, %v1897
    %1899 = vdwg.mxu0
    %1900 = vmatprep.subr.mxu0 %v793
    %1901 = vmatpush1.msra.mxu0 %v792
    %1902 = vmatprep.subr.mxu0 %v799
    %1903 = vmatpush1.msra.mxu0 %v798
    %1904 = vmatprep.subr.mxu0 %v805
    %1905 = vmatpush1.msra.mxu0 %v804
    %1906 = vmatprep.subr.mxu0 %v811
    %1907 = vmatpush1.msra.mxu0 %v810
    %1908 = vmatprep.subr.mxu0 %v817
    %1909 = vmatpush1.msra.mxu0 %v816
    %1910 = vmatprep.subr.mxu0 %v823
    %1911 = vmatpush1.msra.mxu0 %v822
    %1912 = vmatprep.subr.mxu0 %v829
    %1913 = vmatpush1.msra.mxu0 %v828
    %1914 = vmatprep.subr.mxu0 %v835
    %1915 = vmatpush1.msra.mxu0 %v834
    %1916 = vmatprep.subr.mxu0 %v841
    %1917 = vmatpush1.msra.mxu0 %v840
    %1918 = vmatprep.subr.mxu0 %v847
    %1919 = vmatpush1.msra.mxu0 %v846
    %1920 = vmatprep.subr.mxu0 %v853
    %1921 = vmatpush1.msra.mxu0 %v852
    %1922 = vmatprep.subr.mxu0 %v859
    %1923 = vmatpush1.msra.mxu0 %v858
    %1924 = vmatprep.subr.mxu0 %v865
    %1925 = vmatpush1.msra.mxu0 %v864
    %1926 = vmatprep.subr.mxu0 %v871
    %1927 = vmatpush1.msra.mxu0 %v870
    %1928 = vmatprep.subr.mxu0 %v877
    %1929 = vmatpush1.msra.mxu0 %v876
    %1930 = vmatprep.subr.mxu0 %v883
    %1931 = vmatpush1.msra.mxu0 %v882
    %1932 = vmatprep.subr.mxu0 %v889
    %1933 = vmatpush1.msra.mxu0 %v888
    %1934 = vmatprep.subr.mxu0 %v895
    %1935 = vmatpush1.msra.mxu0 %v894
    %1936 = vmatprep.subr.mxu0 %v901
    %1937 = vmatpush1.msra.mxu0 %v900
    %1938 = vmatprep.subr.mxu0 %v907
    %1939 = vmatpush1.msra.mxu0 %v906
    %1940 = vmatprep.subr.mxu0 %v913
    %1941 = vmatpush1.msra.mxu0 %v912
    %1942 = vmatprep.subr.mxu0 %v919
    %1943 = vmatpush1.msra.mxu0 %v918
    %1944 = vmatprep.subr.mxu0 %v925
    %1945 = vmatpush1.msra.mxu0 %v924
    %1946 = vmatprep.subr.mxu0 %v931
    %1947 = vmatpush1.msra.mxu0 %v930
    %1948 = vmatprep.subr.mxu0 %v937
    %1949 = vmatpush1.msra.mxu0 %v936
    %1950 = vmatprep.subr.mxu0 %v943
    %1951 = vmatpush1.msra.mxu0 %v942
    %1952 = vmatprep.subr.mxu0 %v949
    %1953 = vmatpush1.msra.mxu0 %v948
    %1954 = vmatprep.subr.mxu0 %v955
    %1955 = vmatpush1.msra.mxu0 %v954
    %1956 = vmatprep.subr.mxu0 %v961
    %1957 = vmatpush1.msra.mxu0 %v960
    %1958 = vmatprep.subr.mxu0 %v967
    %1959 = vmatpush1.msra.mxu0 %v966
    %1960 = vmatprep.subr.mxu0 %v973
    %1961 = vmatpush1.msra.mxu0 %v972
    %1962 = vmatprep.subr.mxu0 %v979
    %1963 = vmatpush1.msra.mxu0 %v978
    %1964 = vmatprep.mubr.f32.mxu0 %v592
    %1965 = vmatmul.mubr.f32.gmra.mrb[0].mxu0 %v591
    %v1966 = vpop.f32.mrb[0].mxu0
    %v1967 = vadd.f32 %v1896, %v1966
    %v1968 = vpop.f32.mrb[0].mxu0
    %v1969 = vadd.f32 %v1898, %v1968
    %1970 = vdwg.mxu0
    %1971 = vmatprep.subr.mxu0 %v985
    %1972 = vmatpush1.msra.mxu0 %v984
    %1973 = vmatprep.subr.mxu0 %v991
    %1974 = vmatpush1.msra.mxu0 %v990
    %1975 = vmatprep.subr.mxu0 %v997
    %1976 = vmatpush1.msra.mxu0 %v996
    %1977 = vmatprep.subr.mxu0 %v1003
    %1978 = vmatpush1.msra.mxu0 %v1002
    %1979 = vmatprep.subr.mxu0 %v1009
    %1980 = vmatpush1.msra.mxu0 %v1008
    %1981 = vmatprep.subr.mxu0 %v1015
    %1982 = vmatpush1.msra.mxu0 %v1014
    %1983 = vmatprep.subr.mxu0 %v1021
    %1984 = vmatpush1.msra.mxu0 %v1020
    %1985 = vmatprep.subr.mxu0 %v1027
    %1986 = vmatpush1.msra.mxu0 %v1026
    %1987 = vmatprep.subr.mxu0 %v1033
    %1988 = vmatpush1.msra.mxu0 %v1032
    %1989 = vmatprep.subr.mxu0 %v1039
    %1990 = vmatpush1.msra.mxu0 %v1038
    %1991 = vmatprep.subr.mxu0 %v1045
    %1992 = vmatpush1.msra.mxu0 %v1044
    %1993 = vmatprep.subr.mxu0 %v1051
    %1994 = vmatpush1.msra.mxu0 %v1050
    %1995 = vmatprep.subr.mxu0 %v1057
    %1996 = vmatpush1.msra.mxu0 %v1056
    %1997 = vmatprep.subr.mxu0 %v1063
    %1998 = vmatpush1.msra.mxu0 %v1062
    %1999 = vmatprep.subr.mxu0 %v1069
    %2000 = vmatpush1.msra.mxu0 %v1068
    %2001 = vmatprep.subr.mxu0 %v1075
    %2002 = vmatpush1.msra.mxu0 %v1074
    %2003 = vmatprep.subr.mxu0 %v1081
    %2004 = vmatpush1.msra.mxu0 %v1080
    %2005 = vmatprep.subr.mxu0 %v1087
    %2006 = vmatpush1.msra.mxu0 %v1086
    %2007 = vmatprep.subr.mxu0 %v1093
    %2008 = vmatpush1.msra.mxu0 %v1092
    %2009 = vmatprep.subr.mxu0 %v1099
    %2010 = vmatpush1.msra.mxu0 %v1098
    %2011 = vmatprep.subr.mxu0 %v1105
    %2012 = vmatpush1.msra.mxu0 %v1104
    %2013 = vmatprep.subr.mxu0 %v1111
    %2014 = vmatpush1.msra.mxu0 %v1110
    %2015 = vmatprep.subr.mxu0 %v1117
    %2016 = vmatpush1.msra.mxu0 %v1116
    %2017 = vmatprep.subr.mxu0 %v1123
    %2018 = vmatpush1.msra.mxu0 %v1122
    %2019 = vmatprep.subr.mxu0 %v1129
    %2020 = vmatpush1.msra.mxu0 %v1128
    %2021 = vmatprep.subr.mxu0 %v1135
    %2022 = vmatpush1.msra.mxu0 %v1134
    %2023 = vmatprep.subr.mxu0 %v1141
    %2024 = vmatpush1.msra.mxu0 %v1140
    %2025 = vmatprep.subr.mxu0 %v1147
    %2026 = vmatpush1.msra.mxu0 %v1146
    %2027 = vmatprep.subr.mxu0 %v1153
    %2028 = vmatpush1.msra.mxu0 %v1152
    %2029 = vmatprep.subr.mxu0 %v1159
    %2030 = vmatpush1.msra.mxu0 %v1158
    %2031 = vmatprep.subr.mxu0 %v1165
    %2032 = vmatpush1.msra.mxu0 %v1164
    %2033 = vmatprep.subr.mxu0 %v1171
    %2034 = vmatpush1.msra.mxu0 %v1170
    %2035 = vmatprep.mubr.f32.mxu0 %v594
    %2036 = vmatmul.mubr.f32.gmra.mrb[0].mxu0 %v593
    %v2037 = vpop.f32.mrb[0].mxu0
    %v2038 = vadd.f32 %v1967, %v2037
    %v2039 = vpop.f32.mrb[0].mxu0
    %v2040 = vadd.f32 %v1969, %v2039
    %2041 = vdwg.mxu0
    %2042 = vmatprep.subr.mxu0 %v1177
    %2043 = vmatpush1.msra.mxu0 %v1176
    %2044 = vmatprep.subr.mxu0 %v1183
    %2045 = vmatpush1.msra.mxu0 %v1182
    %2046 = vmatprep.subr.mxu0 %v1189
    %2047 = vmatpush1.msra.mxu0 %v1188
    %2048 = vmatprep.subr.mxu0 %v1195
    %2049 = vmatpush1.msra.mxu0 %v1194
    %2050 = vmatprep.subr.mxu0 %v1201
    %2051 = vmatpush1.msra.mxu0 %v1200
    %2052 = vmatprep.subr.mxu0 %v1207
    %2053 = vmatpush1.msra.mxu0 %v1206
    %2054 = vmatprep.subr.mxu0 %v1213
    %2055 = vmatpush1.msra.mxu0 %v1212
    %2056 = vmatprep.subr.mxu0 %v1219
    %2057 = vmatpush1.msra.mxu0 %v1218
    %2058 = vmatprep.subr.mxu0 %v1225
    %2059 = vmatpush1.msra.mxu0 %v1224
    %2060 = vmatprep.subr.mxu0 %v1231
    %2061 = vmatpush1.msra.mxu0 %v1230
    %2062 = vmatprep.subr.mxu0 %v1237
    %2063 = vmatpush1.msra.mxu0 %v1236
    %2064 = vmatprep.subr.mxu0 %v1243
    %2065 = vmatpush1.msra.mxu0 %v1242
    %2066 = vmatprep.subr.mxu0 %v1249
    %2067 = vmatpush1.msra.mxu0 %v1248
    %2068 = vmatprep.subr.mxu0 %v1255
    %2069 = vmatpush1.msra.mxu0 %v1254
    %2070 = vmatprep.subr.mxu0 %v1261
    %2071 = vmatpush1.msra.mxu0 %v1260
    %2072 = vmatprep.subr.mxu0 %v1267
    %2073 = vmatpush1.msra.mxu0 %v1266
    %2074 = vmatprep.subr.mxu0 %v1273
    %2075 = vmatpush1.msra.mxu0 %v1272
    %2076 = vmatprep.subr.mxu0 %v1279
    %2077 = vmatpush1.msra.mxu0 %v1278
    %2078 = vmatprep.subr.mxu0 %v1285
    %2079 = vmatpush1.msra.mxu0 %v1284
    %2080 = vmatprep.subr.mxu0 %v1291
    %2081 = vmatpush1.msra.mxu0 %v1290
    %2082 = vmatprep.subr.mxu0 %v1297
    %2083 = vmatpush1.msra.mxu0 %v1296
    %2084 = vmatprep.subr.mxu0 %v1303
    %2085 = vmatpush1.msra.mxu0 %v1302
    %2086 = vmatprep.subr.mxu0 %v1309
    %2087 = vmatpush1.msra.mxu0 %v1308
    %2088 = vmatprep.subr.mxu0 %v1315
    %2089 = vmatpush1.msra.mxu0 %v1314
    %2090 = vmatprep.subr.mxu0 %v1321
    %2091 = vmatpush1.msra.mxu0 %v1320
    %2092 = vmatprep.subr.mxu0 %v1327
    %2093 = vmatpush1.msra.mxu0 %v1326
    %2094 = vmatprep.subr.mxu0 %v1333
    %2095 = vmatpush1.msra.mxu0 %v1332
    %2096 = vmatprep.subr.mxu0 %v1339
    %2097 = vmatpush1.msra.mxu0 %v1338
    %2098 = vmatprep.subr.mxu0 %v1345
    %2099 = vmatpush1.msra.mxu0 %v1344
    %2100 = vmatprep.subr.mxu0 %v1351
    %2101 = vmatpush1.msra.mxu0 %v1350
    %2102 = vmatprep.subr.mxu0 %v1357
    %2103 = vmatpush1.msra.mxu0 %v1356
    %2104 = vmatprep.subr.mxu0 %v1363
    %2105 = vmatpush1.msra.mxu0 %v1362
    %2106 = vmatprep.mubr.f32.mxu0 %v596
    %2107 = vmatmul.mubr.f32.gmra.mrb[0].mxu0 %v595
    %v2108 = vpop.f32.mrb[0].mxu0
    %v2109 = vadd.f32 %v2038, %v2108
    %v2110 = vpop.f32.mrb[0].mxu0
    %v2111 = vadd.f32 %v2040, %v2110
    %2112 = vdwg.mxu0
    %2113 = vmatprep.subr.mxu0 %v1369
    %2114 = vmatpush1.msra.mxu0 %v1368
    %2115 = vmatprep.subr.mxu0 %v1375
    %2116 = vmatpush1.msra.mxu0 %v1374
    %2117 = vmatprep.subr.mxu0 %v1381
    %2118 = vmatpush1.msra.mxu0 %v1380
    %2119 = vmatprep.subr.mxu0 %v1387
    %2120 = vmatpush1.msra.mxu0 %v1386
    %2121 = vmatprep.subr.mxu0 %v1393
    %2122 = vmatpush1.msra.mxu0 %v1392
    %2123 = vmatprep.subr.mxu0 %v1399
    %2124 = vmatpush1.msra.mxu0 %v1398
    %2125 = vmatprep.subr.mxu0 %v1405
    %2126 = vmatpush1.msra.mxu0 %v1404
    %2127 = vmatprep.subr.mxu0 %v1411
    %2128 = vmatpush1.msra.mxu0 %v1410
    %2129 = vmatprep.subr.mxu0 %v1417
    %2130 = vmatpush1.msra.mxu0 %v1416
    %2131 = vmatprep.subr.mxu0 %v1423
    %2132 = vmatpush1.msra.mxu0 %v1422
    %2133 = vmatprep.subr.mxu0 %v1429
    %2134 = vmatpush1.msra.mxu0 %v1428
    %2135 = vmatprep.subr.mxu0 %v1435
    %2136 = vmatpush1.msra.mxu0 %v1434
    %2137 = vmatprep.subr.mxu0 0.0
    %2138 = vmatpush1.msra.mxu0 0.0
    %2139 = vmatprep.subr.mxu0 0.0
    %2140 = vmatpush1.msra.mxu0 0.0
    %2141 = vmatprep.subr.mxu0 0.0
    %2142 = vmatpush1.msra.mxu0 0.0
    %2143 = vmatprep.subr.mxu0 0.0
    %2144 = vmatpush1.msra.mxu0 0.0
    %2145 = vmatprep.subr.mxu0 0.0
    %2146 = vmatpush1.msra.mxu0 0.0
    %2147 = vmatprep.subr.mxu0 0.0
    %2148 = vmatpush1.msra.mxu0 0.0
    %2149 = vmatprep.subr.mxu0 0.0
    %2150 = vmatpush1.msra.mxu0 0.0
    %2151 = vmatprep.subr.mxu0 0.0
    %2152 = vmatpush1.msra.mxu0 0.0
    %2153 = vmatprep.subr.mxu0 0.0
    %2154 = vmatpush1.msra.mxu0 0.0
    %2155 = vmatprep.subr.mxu0 0.0
    %2156 = vmatpush1.msra.mxu0 0.0
    %2157 = vmatprep.subr.mxu0 0.0
    %2158 = vmatpush1.msra.mxu0 0.0
    %2159 = vmatprep.subr.mxu0 0.0
    %2160 = vmatpush1.msra.mxu0 0.0
    %2161 = vmatprep.subr.mxu0 0.0
    %2162 = vmatpush1.msra.mxu0 0.0
    %2163 = vmatprep.subr.mxu0 0.0
    %2164 = vmatpush1.msra.mxu0 0.0
    %2165 = vmatprep.subr.mxu0 0.0
    %2166 = vmatpush1.msra.mxu0 0.0
    %2167 = vmatprep.subr.mxu0 0.0
    %2168 = vmatpush1.msra.mxu0 0.0
    %2169 = vmatprep.subr.mxu0 0.0
    %2170 = vmatpush1.msra.mxu0 0.0
    %2171 = vmatprep.subr.mxu0 0.0
    %2172 = vmatpush1.msra.mxu0 0.0
    %2173 = vmatprep.subr.mxu0 0.0
    %2174 = vmatpush1.msra.mxu0 0.0
    %2175 = vmatprep.subr.mxu0 0.0
    %2176 = vmatpush1.msra.mxu0 0.0
    %2177 = vmatprep.mubr.f32.mxu0 0.0
    %2178 = vmatmul.mubr.f32.gmra.mrb[0].mxu0 %v1472
    %v2179 = vpop.f32.mrb[0].mxu0
    %v2180 = vadd.f32 %v2109, %v2179
    %v2181 = vpop.f32.mrb[0].mxu0
    %v2182 = vadd.f32 %v2111, %v2181
    %2183 = vdwg.mxu0
    %2184 = vmatprep.subr.mxu0 %v603
    %2185 = vmatpush1.msra.mxu0 %v602
    %2186 = vmatprep.subr.mxu0 %v609
    %2187 = vmatpush1.msra.mxu0 %v608
    %2188 = vmatprep.subr.mxu0 %v615
    %2189 = vmatpush1.msra.mxu0 %v614
    %2190 = vmatprep.subr.mxu0 %v621
    %2191 = vmatpush1.msra.mxu0 %v620
    %2192 = vmatprep.subr.mxu0 %v627
    %2193 = vmatpush1.msra.mxu0 %v626
    %2194 = vmatprep.subr.mxu0 %v633
    %2195 = vmatpush1.msra.mxu0 %v632
    %2196 = vmatprep.subr.mxu0 %v639
    %2197 = vmatpush1.msra.mxu0 %v638
    %2198 = vmatprep.subr.mxu0 %v645
    %2199 = vmatpush1.msra.mxu0 %v644
    %2200 = vmatprep.subr.mxu0 %v651
    %2201 = vmatpush1.msra.mxu0 %v650
    %2202 = vmatprep.subr.mxu0 %v657
    %2203 = vmatpush1.msra.mxu0 %v656
    %2204 = vmatprep.subr.mxu0 %v663
    %2205 = vmatpush1.msra.mxu0 %v662
    %2206 = vmatprep.subr.mxu0 %v669
    %2207 = vmatpush1.msra.mxu0 %v668
    %2208 = vmatprep.subr.mxu0 %v675
    %2209 = vmatpush1.msra.mxu0 %v674
    %2210 = vmatprep.subr.mxu0 %v681
    %2211 = vmatpush1.msra.mxu0 %v680
    %2212 = vmatprep.subr.mxu0 %v687
    %2213 = vmatpush1.msra.mxu0 %v686
    %2214 = vmatprep.subr.mxu0 %v693
    %2215 = vmatpush1.msra.mxu0 %v692
    %2216 = vmatprep.subr.mxu0 %v699
    %2217 = vmatpush1.msra.mxu0 %v698
    %2218 = vmatprep.subr.mxu0 %v705
    %2219 = vmatpush1.msra.mxu0 %v704
    %2220 = vmatprep.subr.mxu0 %v711
    %2221 = vmatpush1.msra.mxu0 %v710
    %2222 = vmatprep.subr.mxu0 %v717
    %2223 = vmatpush1.msra.mxu0 %v716
    %2224 = vmatprep.subr.mxu0 %v723
    %2225 = vmatpush1.msra.mxu0 %v722
    %2226 = vmatprep.subr.mxu0 %v729
    %2227 = vmatpush1.msra.mxu0 %v728
    %2228 = vmatprep.subr.mxu0 %v735
    %2229 = vmatpush1.msra.mxu0 %v734
    %2230 = vmatprep.subr.mxu0 %v741
    %2231 = vmatpush1.msra.mxu0 %v740
    %2232 = vmatprep.subr.mxu0 %v747
    %2233 = vmatpush1.msra.mxu0 %v746
    %2234 = vmatprep.subr.mxu0 %v753
    %2235 = vmatpush1.msra.mxu0 %v752
    %2236 = vmatprep.subr.mxu0 %v759
    %2237 = vmatpush1.msra.mxu0 %v758
    %2238 = vmatprep.subr.mxu0 %v765
    %2239 = vmatpush1.msra.mxu0 %v764
    %2240 = vmatprep.subr.mxu0 %v771
    %2241 = vmatpush1.msra.mxu0 %v770
    %2242 = vmatprep.subr.mxu0 %v777
    %2243 = vmatpush1.msra.mxu0 %v776
    %2244 = vmatprep.subr.mxu0 %v783
    %2245 = vmatpush1.msra.mxu0 %v782
    %2246 = vmatprep.subr.mxu0 %v789
    %2247 = vmatpush1.msra.mxu0 %v788
    %2248 = vmatprep.mubr.f32.mxu0 %v590
    %2249 = vmatmul.mubr.f32.gmra.mrb[0].mxu0 %v589
    %v2250 = vpop.f32.mrb[0].mxu0
    %v2251 = vadd.f32 %v1459, %v2250
    %v2252 = vpop.f32.mrb[0].mxu0
    %v2253 = vadd.f32 %v1463, %v2252
    %2254 = vdwg.mxu0
    %2255 = vmatprep.subr.mxu0 %v795
    %2256 = vmatpush1.msra.mxu0 %v794
    %2257 = vmatprep.subr.mxu0 %v801
    %2258 = vmatpush1.msra.mxu0 %v800
    %2259 = vmatprep.subr.mxu0 %v807
    %2260 = vmatpush1.msra.mxu0 %v806
    %2261 = vmatprep.subr.mxu0 %v813
    %2262 = vmatpush1.msra.mxu0 %v812
    %2263 = vmatprep.subr.mxu0 %v819
    %2264 = vmatpush1.msra.mxu0 %v818
    %2265 = vmatprep.subr.mxu0 %v825
    %2266 = vmatpush1.msra.mxu0 %v824
    %2267 = vmatprep.subr.mxu0 %v831
    %2268 = vmatpush1.msra.mxu0 %v830
    %2269 = vmatprep.subr.mxu0 %v837
    %2270 = vmatpush1.msra.mxu0 %v836
    %2271 = vmatprep.subr.mxu0 %v843
    %2272 = vmatpush1.msra.mxu0 %v842
    %2273 = vmatprep.subr.mxu0 %v849
    %2274 = vmatpush1.msra.mxu0 %v848
    %2275 = vmatprep.subr.mxu0 %v855
    %2276 = vmatpush1.msra.mxu0 %v854
    %2277 = vmatprep.subr.mxu0 %v861
    %2278 = vmatpush1.msra.mxu0 %v860
    %2279 = vmatprep.subr.mxu0 %v867
    %2280 = vmatpush1.msra.mxu0 %v866
    %2281 = vmatprep.subr.mxu0 %v873
    %2282 = vmatpush1.msra.mxu0 %v872
    %2283 = vmatprep.subr.mxu0 %v879
    %2284 = vmatpush1.msra.mxu0 %v878
    %2285 = vmatprep.subr.mxu0 %v885
    %2286 = vmatpush1.msra.mxu0 %v884
    %2287 = vmatprep.subr.mxu0 %v891
    %2288 = vmatpush1.msra.mxu0 %v890
    %2289 = vmatprep.subr.mxu0 %v897
    %2290 = vmatpush1.msra.mxu0 %v896
    %2291 = vmatprep.subr.mxu0 %v903
    %2292 = vmatpush1.msra.mxu0 %v902
    %2293 = vmatprep.subr.mxu0 %v909
    %2294 = vmatpush1.msra.mxu0 %v908
    %2295 = vmatprep.subr.mxu0 %v915
    %2296 = vmatpush1.msra.mxu0 %v914
    %2297 = vmatprep.subr.mxu0 %v921
    %2298 = vmatpush1.msra.mxu0 %v920
    %2299 = vmatprep.subr.mxu0 %v927
    %2300 = vmatpush1.msra.mxu0 %v926
    %2301 = vmatprep.subr.mxu0 %v933
    %2302 = vmatpush1.msra.mxu0 %v932
    %2303 = vmatprep.subr.mxu0 %v939
    %2304 = vmatpush1.msra.mxu0 %v938
    %2305 = vmatprep.subr.mxu0 %v945
    %2306 = vmatpush1.msra.mxu0 %v944
    %2307 = vmatprep.subr.mxu0 %v951
    %2308 = vmatpush1.msra.mxu0 %v950
    %2309 = vmatprep.subr.mxu0 %v957
    %2310 = vmatpush1.msra.mxu0 %v956
    %2311 = vmatprep.subr.mxu0 %v963
    %2312 = vmatpush1.msra.mxu0 %v962
    %2313 = vmatprep.subr.mxu0 %v969
    %2314 = vmatpush1.msra.mxu0 %v968
    %2315 = vmatprep.subr.mxu0 %v975
    %2316 = vmatpush1.msra.mxu0 %v974
    %2317 = vmatprep.subr.mxu0 %v981
    %2318 = vmatpush1.msra.mxu0 %v980
    %2319 = vmatprep.mubr.f32.mxu0 %v592
    %2320 = vmatmul.mubr.f32.gmra.mrb[0].mxu0 %v591
    %v2321 = vpop.f32.mrb[0].mxu0
    %v2322 = vadd.f32 %v2251, %v2321
    %v2323 = vpop.f32.mrb[0].mxu0
    %v2324 = vadd.f32 %v2253, %v2323
    %2325 = vdwg.mxu0
    %2326 = vmatprep.subr.mxu0 %v987
    %2327 = vmatpush1.msra.mxu0 %v986
    %2328 = vmatprep.subr.mxu0 %v993
    %2329 = vmatpush1.msra.mxu0 %v992
    %2330 = vmatprep.subr.mxu0 %v999
    %2331 = vmatpush1.msra.mxu0 %v998
    %2332 = vmatprep.subr.mxu0 %v1005
    %2333 = vmatpush1.msra.mxu0 %v1004
    %2334 = vmatprep.subr.mxu0 %v1011
    %2335 = vmatpush1.msra.mxu0 %v1010
    %2336 = vmatprep.subr.mxu0 %v1017
    %2337 = vmatpush1.msra.mxu0 %v1016
    %2338 = vmatprep.subr.mxu0 %v1023
    %2339 = vmatpush1.msra.mxu0 %v1022
    %2340 = vmatprep.subr.mxu0 %v1029
    %2341 = vmatpush1.msra.mxu0 %v1028
    %2342 = vmatprep.subr.mxu0 %v1035
    %2343 = vmatpush1.msra.mxu0 %v1034
    %2344 = vmatprep.subr.mxu0 %v1041
    %2345 = vmatpush1.msra.mxu0 %v1040
    %2346 = vmatprep.subr.mxu0 %v1047
    %2347 = vmatpush1.msra.mxu0 %v1046
    %2348 = vmatprep.subr.mxu0 %v1053
    %2349 = vmatpush1.msra.mxu0 %v1052
    %2350 = vmatprep.subr.mxu0 %v1059
    %2351 = vmatpush1.msra.mxu0 %v1058
    %2352 = vmatprep.subr.mxu0 %v1065
    %2353 = vmatpush1.msra.mxu0 %v1064
    %2354 = vmatprep.subr.mxu0 %v1071
    %2355 = vmatpush1.msra.mxu0 %v1070
    %2356 = vmatprep.subr.mxu0 %v1077
    %2357 = vmatpush1.msra.mxu0 %v1076
    %2358 = vmatprep.subr.mxu0 %v1083
    %2359 = vmatpush1.msra.mxu0 %v1082
    %2360 = vmatprep.subr.mxu0 %v1089
    %2361 = vmatpush1.msra.mxu0 %v1088
    %2362 = vmatprep.subr.mxu0 %v1095
    %2363 = vmatpush1.msra.mxu0 %v1094
    %2364 = vmatprep.subr.mxu0 %v1101
    %2365 = vmatpush1.msra.mxu0 %v1100
    %2366 = vmatprep.subr.mxu0 %v1107
    %2367 = vmatpush1.msra.mxu0 %v1106
    %2368 = vmatprep.subr.mxu0 %v1113
    %2369 = vmatpush1.msra.mxu0 %v1112
    %2370 = vmatprep.subr.mxu0 %v1119
    %2371 = vmatpush1.msra.mxu0 %v1118
    %2372 = vmatprep.subr.mxu0 %v1125
    %2373 = vmatpush1.msra.mxu0 %v1124
    %2374 = vmatprep.subr.mxu0 %v1131
    %2375 = vmatpush1.msra.mxu0 %v1130
    %2376 = vmatprep.subr.mxu0 %v1137
    %2377 = vmatpush1.msra.mxu0 %v1136
    %2378 = vmatprep.subr.mxu0 %v1143
    %2379 = vmatpush1.msra.mxu0 %v1142
    %2380 = vmatprep.subr.mxu0 %v1149
    %2381 = vmatpush1.msra.mxu0 %v1148
    %2382 = vmatprep.subr.mxu0 %v1155
    %2383 = vmatpush1.msra.mxu0 %v1154
    %2384 = vmatprep.subr.mxu0 %v1161
    %2385 = vmatpush1.msra.mxu0 %v1160
    %2386 = vmatprep.subr.mxu0 %v1167
    %2387 = vmatpush1.msra.mxu0 %v1166
    %2388 = vmatprep.subr.mxu0 %v1173
    %2389 = vmatpush1.msra.mxu0 %v1172
    %2390 = vmatprep.mubr.f32.mxu0 %v594
    %2391 = vmatmul.mubr.f32.gmra.mrb[0].mxu0 %v593
    %v2392 = vpop.f32.mrb[0].mxu0
    %v2393 = vadd.f32 %v2322, %v2392
    %v2394 = vpop.f32.mrb[0].mxu0
    %v2395 = vadd.f32 %v2324, %v2394
    %2396 = vdwg.mxu0
    %2397 = vmatprep.subr.mxu0 %v1179
    %2398 = vmatpush1.msra.mxu0 %v1178
    %2399 = vmatprep.subr.mxu0 %v1185
    %2400 = vmatpush1.msra.mxu0 %v1184
    %2401 = vmatprep.subr.mxu0 %v1191
    %2402 = vmatpush1.msra.mxu0 %v1190
    %2403 = vmatprep.subr.mxu0 %v1197
    %2404 = vmatpush1.msra.mxu0 %v1196
    %2405 = vmatprep.subr.mxu0 %v1203
    %2406 = vmatpush1.msra.mxu0 %v1202
    %2407 = vmatprep.subr.mxu0 %v1209
    %2408 = vmatpush1.msra.mxu0 %v1208
    %2409 = vmatprep.subr.mxu0 %v1215
    %2410 = vmatpush1.msra.mxu0 %v1214
    %2411 = vmatprep.subr.mxu0 %v1221
    %2412 = vmatpush1.msra.mxu0 %v1220
    %2413 = vmatprep.subr.mxu0 %v1227
    %2414 = vmatpush1.msra.mxu0 %v1226
    %2415 = vmatprep.subr.mxu0 %v1233
    %2416 = vmatpush1.msra.mxu0 %v1232
    %2417 = vmatprep.subr.mxu0 %v1239
    %2418 = vmatpush1.msra.mxu0 %v1238
    %2419 = vmatprep.subr.mxu0 %v1245
    %2420 = vmatpush1.msra.mxu0 %v1244
    %2421 = vmatprep.subr.mxu0 %v1251
    %2422 = vmatpush1.msra.mxu0 %v1250
    %2423 = vmatprep.subr.mxu0 %v1257
    %2424 = vmatpush1.msra.mxu0 %v1256
    %2425 = vmatprep.subr.mxu0 %v1263
    %2426 = vmatpush1.msra.mxu0 %v1262
    %2427 = vmatprep.subr.mxu0 %v1269
    %2428 = vmatpush1.msra.mxu0 %v1268
    %2429 = vmatprep.subr.mxu0 %v1275
    %2430 = vmatpush1.msra.mxu0 %v1274
    %2431 = vmatprep.subr.mxu0 %v1281
    %2432 = vmatpush1.msra.mxu0 %v1280
    %2433 = vmatprep.subr.mxu0 %v1287
    %2434 = vmatpush1.msra.mxu0 %v1286
    %2435 = vmatprep.subr.mxu0 %v1293
    %2436 = vmatpush1.msra.mxu0 %v1292
    %2437 = vmatprep.subr.mxu0 %v1299
    %2438 = vmatpush1.msra.mxu0 %v1298
    %2439 = vmatprep.subr.mxu0 %v1305
    %2440 = vmatpush1.msra.mxu0 %v1304
    %2441 = vmatprep.subr.mxu0 %v1311
    %2442 = vmatpush1.msra.mxu0 %v1310
    %2443 = vmatprep.subr.mxu0 %v1317
    %2444 = vmatpush1.msra.mxu0 %v1316
    %2445 = vmatprep.subr.mxu0 %v1323
    %2446 = vmatpush1.msra.mxu0 %v1322
    %2447 = vmatprep.subr.mxu0 %v1329
    %2448 = vmatpush1.msra.mxu0 %v1328
    %2449 = vmatprep.subr.mxu0 %v1335
    %2450 = vmatpush1.msra.mxu0 %v1334
    %2451 = vmatprep.subr.mxu0 %v1341
    %2452 = vmatpush1.msra.mxu0 %v1340
    %2453 = vmatprep.subr.mxu0 %v1347
    %2454 = vmatpush1.msra.mxu0 %v1346
    %2455 = vmatprep.subr.mxu0 %v1353
    %2456 = vmatpush1.msra.mxu0 %v1352
    %2457 = vmatprep.subr.mxu0 %v1359
    %2458 = vmatpush1.msra.mxu0 %v1358
    %2459 = vmatprep.subr.mxu0 %v1365
    %2460 = vmatpush1.msra.mxu0 %v1364
    %2461 = vmatprep.mubr.f32.mxu0 %v596
    %2462 = vmatmul.mubr.f32.gmra.mrb[0].mxu0 %v595
    %v2463 = vpop.f32.mrb[0].mxu0
    %v2464 = vadd.f32 %v2393, %v2463
    %v2465 = vpop.f32.mrb[0].mxu0
    %v2466 = vadd.f32 %v2395, %v2465
    %2467 = vdwg.mxu0
    %2468 = vmatprep.subr.mxu0 %v1371
    %2469 = vmatpush1.msra.mxu0 %v1370
    %2470 = vmatprep.subr.mxu0 %v1377
    %2471 = vmatpush1.msra.mxu0 %v1376
    %2472 = vmatprep.subr.mxu0 %v1383
    %2473 = vmatpush1.msra.mxu0 %v1382
    %2474 = vmatprep.subr.mxu0 %v1389
    %2475 = vmatpush1.msra.mxu0 %v1388
    %2476 = vmatprep.subr.mxu0 %v1395
    %2477 = vmatpush1.msra.mxu0 %v1394
    %2478 = vmatprep.subr.mxu0 %v1401
    %2479 = vmatpush1.msra.mxu0 %v1400
    %2480 = vmatprep.subr.mxu0 %v1407
    %2481 = vmatpush1.msra.mxu0 %v1406
    %2482 = vmatprep.subr.mxu0 %v1413
    %2483 = vmatpush1.msra.mxu0 %v1412
    %2484 = vmatprep.subr.mxu0 %v1419
    %2485 = vmatpush1.msra.mxu0 %v1418
    %2486 = vmatprep.subr.mxu0 %v1425
    %2487 = vmatpush1.msra.mxu0 %v1424
    %2488 = vmatprep.subr.mxu0 %v1431
    %2489 = vmatpush1.msra.mxu0 %v1430
    %2490 = vmatprep.subr.mxu0 %v1437
    %2491 = vmatpush1.msra.mxu0 %v1436
    %2492 = vmatprep.subr.mxu0 0.0
    %2493 = vmatpush1.msra.mxu0 0.0
    %2494 = vmatprep.subr.mxu0 0.0
    %2495 = vmatpush1.msra.mxu0 0.0
    %2496 = vmatprep.subr.mxu0 0.0
    %2497 = vmatpush1.msra.mxu0 0.0
    %2498 = vmatprep.subr.mxu0 0.0
    %2499 = vmatpush1.msra.mxu0 0.0
    %2500 = vmatprep.subr.mxu0 0.0
    %2501 = vmatpush1.msra.mxu0 0.0
    %2502 = vmatprep.subr.mxu0 0.0
    %2503 = vmatpush1.msra.mxu0 0.0
    %2504 = vmatprep.subr.mxu0 0.0
    %2505 = vmatpush1.msra.mxu0 0.0
    %2506 = vmatprep.subr.mxu0 0.0
    %2507 = vmatpush1.msra.mxu0 0.0
    %2508 = vmatprep.subr.mxu0 0.0
    %2509 = vmatpush1.msra.mxu0 0.0
    %2510 = vmatprep.subr.mxu0 0.0
    %2511 = vmatpush1.msra.mxu0 0.0
    %2512 = vmatprep.subr.mxu0 0.0
    %2513 = vmatpush1.msra.mxu0 0.0
    %2514 = vmatprep.subr.mxu0 0.0
    %2515 = vmatpush1.msra.mxu0 0.0
    %2516 = vmatprep.subr.mxu0 0.0
    %2517 = vmatpush1.msra.mxu0 0.0
    %2518 = vmatprep.subr.mxu0 0.0
    %2519 = vmatpush1.msra.mxu0 0.0
    %2520 = vmatprep.subr.mxu0 0.0
    %2521 = vmatpush1.msra.mxu0 0.0
    %2522 = vmatprep.subr.mxu0 0.0
    %2523 = vmatpush1.msra.mxu0 0.0
    %2524 = vmatprep.subr.mxu0 0.0
    %2525 = vmatpush1.msra.mxu0 0.0
    %2526 = vmatprep.subr.mxu0 0.0
    %2527 = vmatpush1.msra.mxu0 0.0
    %2528 = vmatprep.subr.mxu0 0.0
    %2529 = vmatpush1.msra.mxu0 0.0
    %2530 = vmatprep.subr.mxu0 0.0
    %2531 = vmatpush1.msra.mxu0 0.0
    %2532 = vmatprep.mubr.f32.mxu0 0.0
    %2533 = vmatmul.mubr.f32.gmra.mrb[0].mxu0 %v1472
    %v2534 = vpop.f32.mrb[0].mxu0
    %v2535 = vadd.f32 %v2464, %v2534
    %v2536 = vpop.f32.mrb[0].mxu0
    %v2537 = vadd.f32 %v2466, %v2536
    %2538 = vdwg.mxu0
    %v2539 = vmax.f32 %v1825, 0.0
    %v2540 = vmax.f32 %v1827, 0.0
    %v2541 = vmax.f32 %v2180, 0.0
    %v2542 = vmax.f32 %v2182, 0.0
    %v2543 = vmax.f32 %v2535, 0.0
    %v2544 = vmax.f32 %v2537, 0.0
    %v2545 = vld [vmem:[%s6] sm:$0xff]
    %v2546 = vld [vmem:[%s6 + $0x8] sm:$0xff]
    %v2547 = vld [vmem:[%s6 + $0x10] sm:$0xff]
    %v2548 = vld [vmem:[%s6 + $0x18] sm:$0xff]
    %v2549 = vld [vmem:[%s6 + $0x20] sm:$0xff]
    %v2550 = vld [vmem:[%s6 + $0x28] sm:$0xff]
    %v2551 = vld [vmem:[%s6 + $0x30] sm:$0xff]
    %v2552 = vld [vmem:[%s6 + $0x38] sm:$0xff]
    %v2553 = vld [vmem:[%s6 + $0x40] sm:$0xff]
    %v2554 = vld [vmem:[%s6 + $0x48] sm:$0xff]
    %v2555 = vld [vmem:[%s6 + $0x50] sm:$0xff]
    %v2556 = vld [vmem:[%s6 + $0x58] sm:$0xff]
    %v2557 = vld [vmem:[%s6 + $0x60] sm:$0xff]
    %v2558 = vld [vmem:[%s6 + $0x68] sm:$0xff]
    %v2559 = vld [vmem:[%s6 + $0x70] sm:$0xff]
    %v2560 = vld [vmem:[%s6 + $0x78] sm:$0xff]
    %v2561 = vld [vmem:[%s6 + $0x80] sm:$0xff]
    %v2562 = vld [vmem:[%s6 + $0x88] sm:$0xff]
    %v2563 = vld [vmem:[%s6 + $0x90] sm:$0xff]
    %v2564 = vld [vmem:[%s6 + $0x98] sm:$0xff]
    %v2565 = vld [vmem:[%s6 + $0xa0] sm:$0xff]
    %v2566 = vld [vmem:[%s6 + $0xa8] sm:$0xff]
    %v2567 = vld [vmem:[%s6 + $0xb0] sm:$0xff]
    %v2568 = vld [vmem:[%s6 + $0xb8] sm:$0xff]
    %v2569 = vld [vmem:[%s6 + $0xc0] sm:$0xff]
    %v2570 = vld [vmem:[%s6 + $0xc8] sm:$0xff]
    %v2571 = vld [vmem:[%s6 + $0xd0] sm:$0xff]
    %v2572 = vld [vmem:[%s6 + $0xd8] sm:$0xff]
    %v2573 = vld [vmem:[%s6 + $0xe0] sm:$0xff]
    %v2574 = vld [vmem:[%s6 + $0xe8] sm:$0xff]
    %v2575 = vld [vmem:[%s6 + $0xf0] sm:$0xff]
    %v2576 = vld [vmem:[%s6 + $0xf8] sm:$0xff]
    %v2577 = vld [vmem:[%s6 + $0x100] sm:$0xff]
    %v2578 = vld [vmem:[%s6 + $0x108] sm:$0xff]
    %v2579 = vld [vmem:[%s6 + $0x110] sm:$0xff]
    %v2580 = vld [vmem:[%s6 + $0x118] sm:$0xff]
    %v2581 = vld [vmem:[%s6 + $0x120] sm:$0xff]
    %v2582 = vld [vmem:[%s6 + $0x128] sm:$0xff]
    %v2583 = vld [vmem:[%s6 + $0x130] sm:$0xff]
    %v2584 = vld [vmem:[%s6 + $0x138] sm:$0xff]
    %v2585 = vld [vmem:[%s6 + $0x140] sm:$0xff]
    %v2586 = vld [vmem:[%s6 + $0x148] sm:$0xff]
    %v2587 = vld [vmem:[%s6 + $0x150] sm:$0xff]
    %v2588 = vld [vmem:[%s6 + $0x158] sm:$0xff]
    %v2589 = vld [vmem:[%s6 + $0x160] sm:$0xff]
    %v2590 = vld [vmem:[%s6 + $0x168] sm:$0xff]
    %v2591 = vld [vmem:[%s6 + $0x170] sm:$0xff]
    %v2592 = vld [vmem:[%s6 + $0x178] sm:$0xff]
    %v2593 = vld [vmem:[%s6 + $0x180] sm:$0xff]
    %v2594 = vld [vmem:[%s6 + $0x188] sm:$0xff]
    %v2595 = vld [vmem:[%s6 + $0x190] sm:$0xff]
    %v2596 = vld [vmem:[%s6 + $0x198] sm:$0xff]
    %v2597 = vld [vmem:[%s6 + $0x1a0] sm:$0xff]
    %v2598 = vld [vmem:[%s6 + $0x1a8] sm:$0xff]
    %v2599 = vld [vmem:[%s6 + $0x1b0] sm:$0xff]
    %v2600 = vld [vmem:[%s6 + $0x1b8] sm:$0xff]
    %v2601 = vld [vmem:[%s6 + $0x1c0] sm:$0xff]
    %v2602 = vld [vmem:[%s6 + $0x1c8] sm:$0xff]
    %v2603 = vld [vmem:[%s6 + $0x1d0] sm:$0xff]
    %v2604 = vld [vmem:[%s6 + $0x1d8] sm:$0xff]
    %v2605 = vld [vmem:[%s6 + $0x1e0] sm:$0xff]
    %v2606 = vld [vmem:[%s6 + $0x1e8] sm:$0xff]
    %v2607 = vld [vmem:[%s6 + $0x1f0] sm:$0xff]
    %v2608 = vld [vmem:[%s6 + $0x1f8] sm:$0xff]
    %v2609 = vld [vmem:[%s6 + $0x200] sm:$0xff]
    %v2610 = vld [vmem:[%s6 + $0x208] sm:$0xff]
    %v2611 = vld [vmem:[%s6 + $0x210] sm:$0xff]
    %v2612 = vld [vmem:[%s6 + $0x218] sm:$0xff]
    %v2613 = vld [vmem:[%s6 + $0x220] sm:$0xff]
    %v2614 = vld [vmem:[%s6 + $0x228] sm:$0xff]
    %v2615 = vld [vmem:[%s6 + $0x230] sm:$0xff]
    %v2616 = vld [vmem:[%s6 + $0x238] sm:$0xff]
    %v2617 = vld [vmem:[%s6 + $0x240] sm:$0xff]
    %v2618 = vld [vmem:[%s6 + $0x248] sm:$0xff]
    %v2619 = vld [vmem:[%s6 + $0x250] sm:$0xff]
    %v2620 = vld [vmem:[%s6 + $0x258] sm:$0xff]
    %v2621 = vld [vmem:[%s6 + $0x260] sm:$0xff]
    %v2622 = vld [vmem:[%s6 + $0x268] sm:$0xff]
    %v2623 = vld [vmem:[%s6 + $0x270] sm:$0xff]
    %v2624 = vld [vmem:[%s6 + $0x278] sm:$0xff]
    %v2625 = vld [vmem:[%s6 + $0x280] sm:$0xff]
    %v2626 = vld [vmem:[%s6 + $0x288] sm:$0xff]
    %v2627 = vld [vmem:[%s6 + $0x290] sm:$0xff]
    %v2628 = vld [vmem:[%s6 + $0x298] sm:$0xff]
    %v2629 = vld [vmem:[%s6 + $0x2a0] sm:$0xff]
    %v2630 = vld [vmem:[%s6 + $0x2a8] sm:$0xff]
    %v2631 = vld [vmem:[%s6 + $0x2b0] sm:$0xff]
    %v2632 = vld [vmem:[%s6 + $0x2b8] sm:$0xff]
    %v2633 = vld [vmem:[%s6 + $0x2c0] sm:$0xff]
    %v2634 = vld [vmem:[%s6 + $0x2c8] sm:$0xff]
    %v2635 = vld [vmem:[%s6 + $0x2d0] sm:$0xff]
    %v2636 = vld [vmem:[%s6 + $0x2d8] sm:$0xff]
    %v2637 = vld [vmem:[%s6 + $0x2e0] sm:$0xff]
    %v2638 = vld [vmem:[%s6 + $0x2e8] sm:$0xff]
    %v2639 = vld [vmem:[%s6 + $0x2f0] sm:$0xff]
    %v2640 = vld [vmem:[%s6 + $0x2f8] sm:$0xff]
    %v2641 = vld [vmem:[%s6 + $0x300] sm:$0xff]
    %v2642 = vld [vmem:[%s6 + $0x308] sm:$0xff]
    %v2643 = vld [vmem:[%s6 + $0x310] sm:$0xff]
    %v2644 = vld [vmem:[%s6 + $0x318] sm:$0xff]
    %v2645 = vld [vmem:[%s6 + $0x320] sm:$0xff]
    %v2646 = vld [vmem:[%s6 + $0x328] sm:$0xff]
    %v2647 = vld [vmem:[%s6 + $0x330] sm:$0xff]
    %v2648 = vld [vmem:[%s6 + $0x338] sm:$0xff]
    %v2649 = vld [vmem:[%s6 + $0x340] sm:$0xff]
    %v2650 = vld [vmem:[%s6 + $0x348] sm:$0xff]
    %v2651 = vld [vmem:[%s6 + $0x350] sm:$0xff]
    %v2652 = vld [vmem:[%s6 + $0x358] sm:$0xff]
    %v2653 = vld [vmem:[%s6 + $0x360] sm:$0xff]
    %v2654 = vld [vmem:[%s6 + $0x368] sm:$0xff]
    %v2655 = vld [vmem:[%s6 + $0x370] sm:$0xff]
    %v2656 = vld [vmem:[%s6 + $0x378] sm:$0xff]
    %v2657 = vld [vmem:[%s6 + $0x380] sm:$0xff]
    %v2658 = vld [vmem:[%s6 + $0x388] sm:$0xff]
    %v2659 = vld [vmem:[%s6 + $0x390] sm:$0xff]
    %v2660 = vld [vmem:[%s6 + $0x398] sm:$0xff]
    %v2661 = vld [vmem:[%s6 + $0x3a0] sm:$0xff]
    %v2662 = vld [vmem:[%s6 + $0x3a8] sm:$0xff]
    %v2663 = vld [vmem:[%s6 + $0x3b0] sm:$0xff]
    %v2664 = vld [vmem:[%s6 + $0x3b8] sm:$0xff]
    %v2665 = vld [vmem:[%s6 + $0x3c0] sm:$0xff]
    %v2666 = vld [vmem:[%s6 + $0x3c8] sm:$0xff]
    %v2667 = vld [vmem:[%s6 + $0x3d0] sm:$0xff]
    %v2668 = vld [vmem:[%s6 + $0x3d8] sm:$0xff]
    %v2669 = vld [vmem:[%s6 + $0x3e0] sm:$0xff]
    %v2670 = vld [vmem:[%s6 + $0x3e8] sm:$0xff]
    %v2671 = vld [vmem:[%s6 + $0x3f0] sm:$0xff]
    %v2672 = vld [vmem:[%s6 + $0x3f8] sm:$0xff]
    %v2673 = vld [vmem:[%s6 + $0x400] sm:$0xff]
    %v2674 = vld [vmem:[%s6 + $0x408] sm:$0xff]
    %v2675 = vld [vmem:[%s6 + $0x410] sm:$0xff]
    %v2676 = vld [vmem:[%s6 + $0x418] sm:$0xff]
    %v2677 = vld [vmem:[%s6 + $0x420] sm:$0xff]
    %v2678 = vld [vmem:[%s6 + $0x428] sm:$0xff]
    %v2679 = vld [vmem:[%s6 + $0x430] sm:$0xff]
    %v2680 = vld [vmem:[%s6 + $0x438] sm:$0xff]
    %v2681 = vld [vmem:[%s6 + $0x440] sm:$0xff]
    %v2682 = vld [vmem:[%s6 + $0x448] sm:$0xff]
    %v2683 = vld [vmem:[%s6 + $0x450] sm:$0xff]
    %v2684 = vld [vmem:[%s6 + $0x458] sm:$0xff]
    %v2685 = vld [vmem:[%s6 + $0x460] sm:$0xff]
    %v2686 = vld [vmem:[%s6 + $0x468] sm:$0xff]
    %v2687 = vld [vmem:[%s6 + $0x470] sm:$0xff]
    %v2688 = vld [vmem:[%s6 + $0x478] sm:$0xff]
    %v2689 = vld [vmem:[%s6 + $0x480] sm:$0xff]
    %v2690 = vld [vmem:[%s6 + $0x488] sm:$0xff]
    %v2691 = vld [vmem:[%s6 + $0x490] sm:$0xff]
    %v2692 = vld [vmem:[%s6 + $0x498] sm:$0xff]
    %v2693 = vld [vmem:[%s6 + $0x4a0] sm:$0xff]
    %v2694 = vld [vmem:[%s6 + $0x4a8] sm:$0xff]
    %v2695 = vld [vmem:[%s6 + $0x4b0] sm:$0xff]
    %v2696 = vld [vmem:[%s6 + $0x4b8] sm:$0xff]
    %v2697 = vld [vmem:[%s6 + $0x4c0] sm:$0xff]
    %v2698 = vld [vmem:[%s6 + $0x4c8] sm:$0xff]
    %v2699 = vld [vmem:[%s6 + $0x4d0] sm:$0xff]
    %v2700 = vld [vmem:[%s6 + $0x4d8] sm:$0xff]
    %v2701 = vld [vmem:[%s6 + $0x4e0] sm:$0xff]
    %v2702 = vld [vmem:[%s6 + $0x4e8] sm:$0xff]
    %v2703 = vld [vmem:[%s6 + $0x4f0] sm:$0xff]
    %v2704 = vld [vmem:[%s6 + $0x4f8] sm:$0xff]
    %v2705 = vld [vmem:[%s6 + $0x500] sm:$0xff]
    %v2706 = vld [vmem:[%s6 + $0x508] sm:$0xff]
    %v2707 = vld [vmem:[%s6 + $0x510] sm:$0xff]
    %v2708 = vld [vmem:[%s6 + $0x518] sm:$0xff]
    %v2709 = vld [vmem:[%s6 + $0x520] sm:$0xff]
    %v2710 = vld [vmem:[%s6 + $0x528] sm:$0xff]
    %v2711 = vld [vmem:[%s6 + $0x530] sm:$0xff]
    %v2712 = vld [vmem:[%s6 + $0x538] sm:$0xff]
    %v2713 = vld [vmem:[%s6 + $0x540] sm:$0xff]
    %v2714 = vld [vmem:[%s6 + $0x548] sm:$0xff]
    %v2715 = vld [vmem:[%s6 + $0x550] sm:$0xff]
    %v2716 = vld [vmem:[%s6 + $0x558] sm:$0xff]
    %v2717 = vld [vmem:[%s6 + $0x560] sm:$0xff]
    %v2718 = vld [vmem:[%s6 + $0x568] sm:$0xff]
    %v2719 = vld [vmem:[%s6 + $0x570] sm:$0xff]
    %v2720 = vld [vmem:[%s6 + $0x578] sm:$0xff]
    %v2721 = vld [vmem:[%s6 + $0x580] sm:$0xff]
    %v2722 = vld [vmem:[%s6 + $0x588] sm:$0xff]
    %v2723 = vld [vmem:[%s6 + $0x590] sm:$0xff]
    %v2724 = vld [vmem:[%s6 + $0x598] sm:$0xff]
    %v2725 = vld [vmem:[%s6 + $0x5a0] sm:$0xff]
    %v2726 = vld [vmem:[%s6 + $0x5a8] sm:$0xff]
    %v2727 = vld [vmem:[%s6 + $0x5b0] sm:$0xff]
    %v2728 = vld [vmem:[%s6 + $0x5b8] sm:$0xff]
    %v2729 = vld [vmem:[%s6 + $0x5c0] sm:$0xff]
    %v2730 = vld [vmem:[%s6 + $0x5c8] sm:$0xff]
    %v2731 = vld [vmem:[%s6 + $0x5d0] sm:$0xff]
    %v2732 = vld [vmem:[%s6 + $0x5d8] sm:$0xff]
    %v2733 = vld [vmem:[%s6 + $0x5e0] sm:$0xff]
    %v2734 = vld [vmem:[%s6 + $0x5e8] sm:$0xff]
    %v2735 = vld [vmem:[%s6 + $0x5f0] sm:$0xff]
    %v2736 = vld [vmem:[%s6 + $0x5f8] sm:$0xff]
    %v2737 = vld [vmem:[%s6 + $0x600] sm:$0xff]
    %v2738 = vld [vmem:[%s6 + $0x608] sm:$0xff]
    %v2739 = vld [vmem:[%s6 + $0x610] sm:$0xff]
    %v2740 = vld [vmem:[%s6 + $0x618] sm:$0xff]
    %v2741 = vld [vmem:[%s6 + $0x620] sm:$0xff]
    %v2742 = vld [vmem:[%s6 + $0x628] sm:$0xff]
    %v2743 = vld [vmem:[%s6 + $0x630] sm:$0xff]
    %v2744 = vld [vmem:[%s6 + $0x638] sm:$0xff]
    %v2745 = vld [vmem:[%s6 + $0x640] sm:$0xff]
    %v2746 = vld [vmem:[%s6 + $0x648] sm:$0xff]
    %v2747 = vld [vmem:[%s6 + $0x650] sm:$0xff]
    %v2748 = vld [vmem:[%s6 + $0x658] sm:$0xff]
    %v2749 = vld [vmem:[%s6 + $0x660] sm:$0xff]
    %v2750 = vld [vmem:[%s6 + $0x668] sm:$0xff]
    %v2751 = vld [vmem:[%s6 + $0x670] sm:$0xff]
    %v2752 = vld [vmem:[%s6 + $0x678] sm:$0xff]
    %v2753 = vld [vmem:[%s6 + $0x680] sm:$0xff]
    %v2754 = vld [vmem:[%s6 + $0x688] sm:$0xff]
    %v2755 = vld [vmem:[%s6 + $0x690] sm:$0xff]
    %v2756 = vld [vmem:[%s6 + $0x698] sm:$0xff]
    %v2757 = vld [vmem:[%s6 + $0x6a0] sm:$0xff]
    %v2758 = vld [vmem:[%s6 + $0x6a8] sm:$0xff]
    %v2759 = vld [vmem:[%s6 + $0x6b0] sm:$0xff]
    %v2760 = vld [vmem:[%s6 + $0x6b8] sm:$0xff]
    %v2761 = vld [vmem:[%s6 + $0x6c0] sm:$0xff]
    %v2762 = vld [vmem:[%s6 + $0x6c8] sm:$0xff]
    %v2763 = vld [vmem:[%s6 + $0x6d0] sm:$0xff]
    %v2764 = vld [vmem:[%s6 + $0x6d8] sm:$0xff]
    %v2765 = vld [vmem:[%s6 + $0x6e0] sm:$0xff]
    %v2766 = vld [vmem:[%s6 + $0x6e8] sm:$0xff]
    %v2767 = vld [vmem:[%s6 + $0x6f0] sm:$0xff]
    %v2768 = vld [vmem:[%s6 + $0x6f8] sm:$0xff]
    %v2769 = vld [vmem:[%s6 + $0x700] sm:$0xff]
    %v2770 = vld [vmem:[%s6 + $0x708] sm:$0xff]
    %v2771 = vld [vmem:[%s6 + $0x710] sm:$0xff]
    %v2772 = vld [vmem:[%s6 + $0x718] sm:$0xff]
    %v2773 = vld [vmem:[%s6 + $0x720] sm:$0xff]
    %v2774 = vld [vmem:[%s6 + $0x728] sm:$0xff]
    %v2775 = vld [vmem:[%s6 + $0x730] sm:$0xff]
    %v2776 = vld [vmem:[%s6 + $0x738] sm:$0xff]
    %v2777 = vld [vmem:[%s6 + $0x740] sm:$0xff]
    %v2778 = vld [vmem:[%s6 + $0x748] sm:$0xff]
    %v2779 = vld [vmem:[%s6 + $0x750] sm:$0xff]
    %v2780 = vld [vmem:[%s6 + $0x758] sm:$0xff]
    %v2781 = vld [vmem:[%s6 + $0x760] sm:$0xff]
    %v2782 = vld [vmem:[%s6 + $0x768] sm:$0xff]
    %v2783 = vld [vmem:[%s6 + $0x770] sm:$0xff]
    %v2784 = vld [vmem:[%s6 + $0x778] sm:$0xff]
    %v2785 = vld [vmem:[%s6 + $0x780] sm:$0xff]
    %v2786 = vld [vmem:[%s6 + $0x788] sm:$0xff]
    %v2787 = vld [vmem:[%s6 + $0x790] sm:$0xff]
    %v2788 = vld [vmem:[%s6 + $0x798] sm:$0xff]
    %v2789 = vld [vmem:[%s6 + $0x7a0] sm:$0xff]
    %v2790 = vld [vmem:[%s6 + $0x7a8] sm:$0xff]
    %v2791 = vld [vmem:[%s6 + $0x7b0] sm:$0xff]
    %v2792 = vld [vmem:[%s6 + $0x7b8] sm:$0xff]
    %v2793 = vld [vmem:[%s6 + $0x7c0] sm:$0xff]
    %v2794 = vld [vmem:[%s6 + $0x7c8] sm:$0xff]
    %v2795 = vld [vmem:[%s6 + $0x7d0] sm:$0xff]
    %v2796 = vld [vmem:[%s6 + $0x7d8] sm:$0xff]
    %v2797 = vld [vmem:[%s6 + $0x7e0] sm:$0xff]
    %v2798 = vld [vmem:[%s6 + $0x7e8] sm:$0xff]
    %v2799 = vld [vmem:[%s6 + $0x7f0] sm:$0xff]
    %v2800 = vld [vmem:[%s6 + $0x7f8] sm:$0xff]
    %v2801 = vld [vmem:[%s6 + $0x800] sm:$0xff]
    %v2802 = vld [vmem:[%s6 + $0x808] sm:$0xff]
    %v2803 = vld [vmem:[%s6 + $0x810] sm:$0xff]
    %v2804 = vld [vmem:[%s6 + $0x818] sm:$0xff]
    %v2805 = vld [vmem:[%s6 + $0x820] sm:$0xff]
    %v2806 = vld [vmem:[%s6 + $0x828] sm:$0xff]
    %v2807 = vld [vmem:[%s6 + $0x830] sm:$0xff]
    %v2808 = vld [vmem:[%s6 + $0x838] sm:$0xff]
    %v2809 = vld [vmem:[%s6 + $0x840] sm:$0xff]
    %v2810 = vld [vmem:[%s6 + $0x848] sm:$0xff]
    %v2811 = vld [vmem:[%s6 + $0x850] sm:$0xff]
    %v2812 = vld [vmem:[%s6 + $0x858] sm:$0xff]
    %v2813 = vld [vmem:[%s6 + $0x860] sm:$0xff]
    %v2814 = vld [vmem:[%s6 + $0x868] sm:$0xff]
    %v2815 = vld [vmem:[%s6 + $0x870] sm:$0xff]
    %v2816 = vld [vmem:[%s6 + $0x878] sm:$0xff]
    %v2817 = vld [vmem:[%s6 + $0x880] sm:$0xff]
    %v2818 = vld [vmem:[%s6 + $0x888] sm:$0xff]
    %v2819 = vld [vmem:[%s6 + $0x890] sm:$0xff]
    %v2820 = vld [vmem:[%s6 + $0x898] sm:$0xff]
    %v2821 = vld [vmem:[%s6 + $0x8a0] sm:$0xff]
    %v2822 = vld [vmem:[%s6 + $0x8a8] sm:$0xff]
    %v2823 = vld [vmem:[%s6 + $0x8b0] sm:$0xff]
    %v2824 = vld [vmem:[%s6 + $0x8b8] sm:$0xff]
    %v2825 = vld [vmem:[%s6 + $0x8c0] sm:$0xff]
    %v2826 = vld [vmem:[%s6 + $0x8c8] sm:$0xff]
    %v2827 = vld [vmem:[%s6 + $0x8d0] sm:$0xff]
    %v2828 = vld [vmem:[%s6 + $0x8d8] sm:$0xff]
    %v2829 = vld [vmem:[%s6 + $0x8e0] sm:$0xff]
    %v2830 = vld [vmem:[%s6 + $0x8e8] sm:$0xff]
    %v2831 = vld [vmem:[%s6 + $0x8f0] sm:$0xff]
    %v2832 = vld [vmem:[%s6 + $0x8f8] sm:$0xff]
    %v2833 = vld [vmem:[%s6 + $0x900] sm:$0xff]
    %v2834 = vld [vmem:[%s6 + $0x908] sm:$0xff]
    %v2835 = vld [vmem:[%s6 + $0x910] sm:$0xff]
    %v2836 = vld [vmem:[%s6 + $0x918] sm:$0xff]
    %v2837 = vld [vmem:[%s6 + $0x920] sm:$0xff]
    %v2838 = vld [vmem:[%s6 + $0x928] sm:$0xff]
    %v2839 = vld [vmem:[%s6 + $0x930] sm:$0xff]
    %v2840 = vld [vmem:[%s6 + $0x938] sm:$0xff]
    %v2841 = vld [vmem:[%s6 + $0x940] sm:$0xff]
    %v2842 = vld [vmem:[%s6 + $0x948] sm:$0xff]
    %v2843 = vld [vmem:[%s6 + $0x950] sm:$0xff]
    %v2844 = vld [vmem:[%s6 + $0x958] sm:$0xff]
    %v2845 = vld [vmem:[%s6 + $0x960] sm:$0xff]
    %v2846 = vld [vmem:[%s6 + $0x968] sm:$0xff]
    %v2847 = vld [vmem:[%s6 + $0x970] sm:$0xff]
    %v2848 = vld [vmem:[%s6 + $0x978] sm:$0xff]
    %v2849 = vld [vmem:[%s6 + $0x980] sm:$0xff]
    %v2850 = vld [vmem:[%s6 + $0x988] sm:$0xff]
    %v2851 = vld [vmem:[%s6 + $0x990] sm:$0xff]
    %v2852 = vld [vmem:[%s6 + $0x998] sm:$0xff]
    %v2853 = vld [vmem:[%s6 + $0x9a0] sm:$0xff]
    %v2854 = vld [vmem:[%s6 + $0x9a8] sm:$0xff]
    %v2855 = vld [vmem:[%s6 + $0x9b0] sm:$0xff]
    %v2856 = vld [vmem:[%s6 + $0x9b8] sm:$0xff]
    %v2857 = vld [vmem:[%s6 + $0x9c0] sm:$0xff]
    %v2858 = vld [vmem:[%s6 + $0x9c8] sm:$0xff]
    %v2859 = vld [vmem:[%s6 + $0x9d0] sm:$0xff]
    %v2860 = vld [vmem:[%s6 + $0x9d8] sm:$0xff]
    %v2861 = vld [vmem:[%s6 + $0x9e0] sm:$0xff]
    %v2862 = vld [vmem:[%s6 + $0x9e8] sm:$0xff]
    %v2863 = vld [vmem:[%s6 + $0x9f0] sm:$0xff]
    %v2864 = vld [vmem:[%s6 + $0x9f8] sm:$0xff]
    %v2865 = vld [vmem:[%s6 + $0xa00] sm:$0xff]
    %v2866 = vld [vmem:[%s6 + $0xa08] sm:$0xff]
    %v2867 = vld [vmem:[%s6 + $0xa10] sm:$0xff]
    %v2868 = vld [vmem:[%s6 + $0xa18] sm:$0xff]
    %v2869 = vld [vmem:[%s6 + $0xa20] sm:$0xff]
    %v2870 = vld [vmem:[%s6 + $0xa28] sm:$0xff]
    %v2871 = vld [vmem:[%s6 + $0xa30] sm:$0xff]
    %v2872 = vld [vmem:[%s6 + $0xa38] sm:$0xff]
    %v2873 = vld [vmem:[%s6 + $0xa40] sm:$0xff]
    %v2874 = vld [vmem:[%s6 + $0xa48] sm:$0xff]
    %v2875 = vld [vmem:[%s6 + $0xa50] sm:$0xff]
    %v2876 = vld [vmem:[%s6 + $0xa58] sm:$0xff]
    %v2877 = vld [vmem:[%s6 + $0xa60] sm:$0xff]
    %v2878 = vld [vmem:[%s6 + $0xa68] sm:$0xff]
    %v2879 = vld [vmem:[%s6 + $0xa70] sm:$0xff]
    %v2880 = vld [vmem:[%s6 + $0xa78] sm:$0xff]
    %v2881 = vld [vmem:[%s7] sm:$0xf]
    %v2883 = vlaneseq
    %v2884 = vshrl.u32 %v2883, 7
    %v2885 = vsub.s32 0, %v2884
    %v2886 = vrot.slane %v2881, %v2885
    %v2887 = vlaneseq
    %v2888 = vshrl.u32 %v2887, 7
    %v2889 = vsub.s32 1, %v2888
    %v2890 = vrot.slane %v2881, %v2889
    %v2891 = vlaneseq
    %v2892 = vshrl.u32 %v2891, 7
    %v2893 = vsub.s32 2, %v2892
    %v2894 = vrot.slane %v2881, %v2893
    %v2895 = vlaneseq
    %v2896 = vshrl.u32 %v2895, 7
    %v2897 = vsub.s32 3, %v2896
    %v2898 = vrot.slane %v2881, %v2897
    %vm2903 = vcmask 261120
    %v2905 = vsel %vm2903, %v2544, 0
    %2907 = vmatprep.subr.mxu0 %v2546
    %2908 = vmatpush1.msra.mxu0 %v2545
    %2909 = vmatprep.subr.mxu0 %v2550
    %2910 = vmatpush1.msra.mxu0 %v2549
    %2911 = vmatprep.subr.mxu0 %v2554
    %2912 = vmatpush1.msra.mxu0 %v2553
    %2913 = vmatprep.subr.mxu0 %v2558
    %2914 = vmatpush1.msra.mxu0 %v2557
    %2915 = vmatprep.subr.mxu0 %v2562
    %2916 = vmatpush1.msra.mxu0 %v2561
    %2917 = vmatprep.subr.mxu0 %v2566
    %2918 = vmatpush1.msra.mxu0 %v2565
    %2919 = vmatprep.subr.mxu0 %v2570
    %2920 = vmatpush1.msra.mxu0 %v2569
    %2921 = vmatprep.subr.mxu0 %v2574
    %2922 = vmatpush1.msra.mxu0 %v2573
    %2923 = vmatprep.subr.mxu0 %v2578
    %2924 = vmatpush1.msra.mxu0 %v2577
    %2925 = vmatprep.subr.mxu0 %v2582
    %2926 = vmatpush1.msra.mxu0 %v2581
    %2927 = vmatprep.subr.mxu0 %v2586
    %2928 = vmatpush1.msra.mxu0 %v2585
    %2929 = vmatprep.subr.mxu0 %v2590
    %2930 = vmatpush1.msra.mxu0 %v2589
    %2931 = vmatprep.subr.mxu0 %v2594
    %2932 = vmatpush1.msra.mxu0 %v2593
    %2933 = vmatprep.subr.mxu0 %v2598
    %2934 = vmatpush1.msra.mxu0 %v2597
    %2935 = vmatprep.subr.mxu0 %v2602
    %2936 = vmatpush1.msra.mxu0 %v2601
    %2937 = vmatprep.subr.mxu0 %v2606
    %2938 = vmatpush1.msra.mxu0 %v2605
    %2939 = vmatprep.subr.mxu0 %v2610
    %2940 = vmatpush1.msra.mxu0 %v2609
    %2941 = vmatprep.subr.mxu0 %v2614
    %2942 = vmatpush1.msra.mxu0 %v2613
    %2943 = vmatprep.subr.mxu0 %v2618
    %2944 = vmatpush1.msra.mxu0 %v2617
    %2945 = vmatprep.subr.mxu0 %v2622
    %2946 = vmatpush1.msra.mxu0 %v2621
    %2947 = vmatprep.subr.mxu0 %v2626
    %2948 = vmatpush1.msra.mxu0 %v2625
    %2949 = vmatprep.subr.mxu0 %v2630
    %2950 = vmatpush1.msra.mxu0 %v2629
    %2951 = vmatprep.subr.mxu0 %v2634
    %2952 = vmatpush1.msra.mxu0 %v2633
    %2953 = vmatprep.subr.mxu0 %v2638
    %2954 = vmatpush1.msra.mxu0 %v2637
    %2955 = vmatprep.subr.mxu0 %v2642
    %2956 = vmatpush1.msra.mxu0 %v2641
    %2957 = vmatprep.subr.mxu0 %v2646
    %2958 = vmatpush1.msra.mxu0 %v2645
    %2959 = vmatprep.subr.mxu0 %v2650
    %2960 = vmatpush1.msra.mxu0 %v2649
    %2961 = vmatprep.subr.mxu0 %v2654
    %2962 = vmatpush1.msra.mxu0 %v2653
    %2963 = vmatprep.subr.mxu0 %v2658
    %2964 = vmatpush1.msra.mxu0 %v2657
    %2965 = vmatprep.subr.mxu0 %v2662
    %2966 = vmatpush1.msra.mxu0 %v2661
    %2967 = vmatprep.subr.mxu0 %v2666
    %2968 = vmatpush1.msra.mxu0 %v2665
    %2969 = vmatprep.subr.mxu0 %v2670
    %2970 = vmatpush1.msra.mxu0 %v2669
    %2971 = vmatprep.mubr.f32.mxu0 %v2540
    %2972 = vmatmul.mubr.f32.gmra.mrb[0].mxu0 %v2539
    %v2973 = vpop.f32.mrb[0].mxu0
    %v2974 = vadd.f32 %v2886, %v2973
    %v2975 = vpop.f32.mrb[0].mxu0
    %v2976 = vadd.f32 %v2890, %v2975
    %2977 = vdwg.mxu0
    %2978 = vmatprep.subr.mxu0 %v2674
    %2979 = vmatpush1.msra.mxu0 %v2673
    %2980 = vmatprep.subr.mxu0 %v2678
    %2981 = vmatpush1.msra.mxu0 %v2677
    %2982 = vmatprep.subr.mxu0 %v2682
    %2983 = vmatpush1.msra.mxu0 %v2681
    %2984 = vmatprep.subr.mxu0 %v2686
    %2985 = vmatpush1.msra.mxu0 %v2685
    %2986 = vmatprep.subr.mxu0 %v2690
    %2987 = vmatpush1.msra.mxu0 %v2689
    %2988 = vmatprep.subr.mxu0 %v2694
    %2989 = vmatpush1.msra.mxu0 %v2693
    %2990 = vmatprep.subr.mxu0 %v2698
    %2991 = vmatpush1.msra.mxu0 %v2697
    %2992 = vmatprep.subr.mxu0 %v2702
    %2993 = vmatpush1.msra.mxu0 %v2701
    %2994 = vmatprep.subr.mxu0 %v2706
    %2995 = vmatpush1.msra.mxu0 %v2705
    %2996 = vmatprep.subr.mxu0 %v2710
    %2997 = vmatpush1.msra.mxu0 %v2709
    %2998 = vmatprep.subr.mxu0 %v2714
    %2999 = vmatpush1.msra.mxu0 %v2713
    %3000 = vmatprep.subr.mxu0 %v2718
    %3001 = vmatpush1.msra.mxu0 %v2717
    %3002 = vmatprep.subr.mxu0 %v2722
    %3003 = vmatpush1.msra.mxu0 %v2721
    %3004 = vmatprep.subr.mxu0 %v2726
    %3005 = vmatpush1.msra.mxu0 %v2725
    %3006 = vmatprep.subr.mxu0 %v2730
    %3007 = vmatpush1.msra.mxu0 %v2729
    %3008 = vmatprep.subr.mxu0 %v2734
    %3009 = vmatpush1.msra.mxu0 %v2733
    %3010 = vmatprep.subr.mxu0 %v2738
    %3011 = vmatpush1.msra.mxu0 %v2737
    %3012 = vmatprep.subr.mxu0 %v2742
    %3013 = vmatpush1.msra.mxu0 %v2741
    %3014 = vmatprep.subr.mxu0 %v2746
    %3015 = vmatpush1.msra.mxu0 %v2745
    %3016 = vmatprep.subr.mxu0 %v2750
    %3017 = vmatpush1.msra.mxu0 %v2749
    %3018 = vmatprep.subr.mxu0 %v2754
    %3019 = vmatpush1.msra.mxu0 %v2753
    %3020 = vmatprep.subr.mxu0 %v2758
    %3021 = vmatpush1.msra.mxu0 %v2757
    %3022 = vmatprep.subr.mxu0 %v2762
    %3023 = vmatpush1.msra.mxu0 %v2761
    %3024 = vmatprep.subr.mxu0 %v2766
    %3025 = vmatpush1.msra.mxu0 %v2765
    %3026 = vmatprep.subr.mxu0 %v2770
    %3027 = vmatpush1.msra.mxu0 %v2769
    %3028 = vmatprep.subr.mxu0 %v2774
    %3029 = vmatpush1.msra.mxu0 %v2773
    %3030 = vmatprep.subr.mxu0 %v2778
    %3031 = vmatpush1.msra.mxu0 %v2777
    %3032 = vmatprep.subr.mxu0 %v2782
    %3033 = vmatpush1.msra.mxu0 %v2781
    %3034 = vmatprep.subr.mxu0 %v2786
    %3035 = vmatpush1.msra.mxu0 %v2785
    %3036 = vmatprep.subr.mxu0 %v2790
    %3037 = vmatpush1.msra.mxu0 %v2789
    %3038 = vmatprep.subr.mxu0 %v2794
    %3039 = vmatpush1.msra.mxu0 %v2793
    %3040 = vmatprep.subr.mxu0 %v2798
    %3041 = vmatpush1.msra.mxu0 %v2797
    %3042 = vmatprep.mubr.f32.mxu0 %v2542
    %3043 = vmatmul.mubr.f32.gmra.mrb[0].mxu0 %v2541
    %v3044 = vpop.f32.mrb[0].mxu0
    %v3045 = vadd.f32 %v2974, %v3044
    %v3046 = vpop.f32.mrb[0].mxu0
    %v3047 = vadd.f32 %v2976, %v3046
    %3048 = vdwg.mxu0
    %3049 = vmatprep.subr.mxu0 %v2802
    %3050 = vmatpush1.msra.mxu0 %v2801
    %3051 = vmatprep.subr.mxu0 %v2806
    %3052 = vmatpush1.msra.mxu0 %v2805
    %3053 = vmatprep.subr.mxu0 %v2810
    %3054 = vmatpush1.msra.mxu0 %v2809
    %3055 = vmatprep.subr.mxu0 %v2814
    %3056 = vmatpush1.msra.mxu0 %v2813
    %3057 = vmatprep.subr.mxu0 %v2818
    %3058 = vmatpush1.msra.mxu0 %v2817
    %3059 = vmatprep.subr.mxu0 %v2822
    %3060 = vmatpush1.msra.mxu0 %v2821
    %3061 = vmatprep.subr.mxu0 %v2826
    %3062 = vmatpush1.msra.mxu0 %v2825
    %3063 = vmatprep.subr.mxu0 %v2830
    %3064 = vmatpush1.msra.mxu0 %v2829
    %3065 = vmatprep.subr.mxu0 %v2834
    %3066 = vmatpush1.msra.mxu0 %v2833
    %3067 = vmatprep.subr.mxu0 %v2838
    %3068 = vmatpush1.msra.mxu0 %v2837
    %3069 = vmatprep.subr.mxu0 %v2842
    %3070 = vmatpush1.msra.mxu0 %v2841
    %3071 = vmatprep.subr.mxu0 %v2846
    %3072 = vmatpush1.msra.mxu0 %v2845
    %3073 = vmatprep.subr.mxu0 %v2850
    %3074 = vmatpush1.msra.mxu0 %v2849
    %3075 = vmatprep.subr.mxu0 %v2854
    %3076 = vmatpush1.msra.mxu0 %v2853
    %3077 = vmatprep.subr.mxu0 %v2858
    %3078 = vmatpush1.msra.mxu0 %v2857
    %3079 = vmatprep.subr.mxu0 %v2862
    %3080 = vmatpush1.msra.mxu0 %v2861
    %3081 = vmatprep.subr.mxu0 %v2866
    %3082 = vmatpush1.msra.mxu0 %v2865
    %3083 = vmatprep.subr.mxu0 %v2870
    %3084 = vmatpush1.msra.mxu0 %v2869
    %3085 = vmatprep.subr.mxu0 %v2874
    %3086 = vmatpush1.msra.mxu0 %v2873
    %3087 = vmatprep.subr.mxu0 %v2878
    %3088 = vmatpush1.msra.mxu0 %v2877
    %3089 = vmatprep.subr.mxu0 0.0
    %3090 = vmatpush1.msra.mxu0 0.0
    %3091 = vmatprep.subr.mxu0 0.0
    %3092 = vmatpush1.msra.mxu0 0.0
    %3093 = vmatprep.subr.mxu0 0.0
    %3094 = vmatpush1.msra.mxu0 0.0
    %3095 = vmatprep.subr.mxu0 0.0
    %3096 = vmatpush1.msra.mxu0 0.0
    %3097 = vmatprep.subr.mxu0 0.0
    %3098 = vmatpush1.msra.mxu0 0.0
    %3099 = vmatprep.subr.mxu0 0.0
    %3100 = vmatpush1.msra.mxu0 0.0
    %3101 = vmatprep.subr.mxu0 0.0
    %3102 = vmatpush1.msra.mxu0 0.0
    %3103 = vmatprep.subr.mxu0 0.0
    %3104 = vmatpush1.msra.mxu0 0.0
    %3105 = vmatprep.subr.mxu0 0.0
    %3106 = vmatpush1.msra.mxu0 0.0
    %3107 = vmatprep.subr.mxu0 0.0
    %3108 = vmatpush1.msra.mxu0 0.0
    %3109 = vmatprep.subr.mxu0 0.0
    %3110 = vmatpush1.msra.mxu0 0.0
    %3111 = vmatprep.subr.mxu0 0.0
    %3112 = vmatpush1.msra.mxu0 0.0
    %3113 = vmatprep.mubr.f32.mxu0 %v2905
    %3114 = vmatmul.mubr.f32.gmra.mrb[0].mxu0 %v2543
    %v3115 = vpop.f32.mrb[0].mxu0
    %v3116 = vadd.f32 %v3045, %v3115
    %v3117 = vpop.f32.mrb[0].mxu0
    %v3118 = vadd.f32 %v3047, %v3117
    %3119 = vdwg.mxu0
    %3120 = vmatprep.subr.mxu0 %v2548
    %3121 = vmatpush1.msra.mxu0 %v2547
    %3122 = vmatprep.subr.mxu0 %v2552
    %3123 = vmatpush1.msra.mxu0 %v2551
    %3124 = vmatprep.subr.mxu0 %v2556
    %3125 = vmatpush1.msra.mxu0 %v2555
    %3126 = vmatprep.subr.mxu0 %v2560
    %3127 = vmatpush1.msra.mxu0 %v2559
    %3128 = vmatprep.subr.mxu0 %v2564
    %3129 = vmatpush1.msra.mxu0 %v2563
    %3130 = vmatprep.subr.mxu0 %v2568
    %3131 = vmatpush1.msra.mxu0 %v2567
    %3132 = vmatprep.subr.mxu0 %v2572
    %3133 = vmatpush1.msra.mxu0 %v2571
    %3134 = vmatprep.subr.mxu0 %v2576
    %3135 = vmatpush1.msra.mxu0 %v2575
    %3136 = vmatprep.subr.mxu0 %v2580
    %3137 = vmatpush1.msra.mxu0 %v2579
    %3138 = vmatprep.subr.mxu0 %v2584
    %3139 = vmatpush1.msra.mxu0 %v2583
    %3140 = vmatprep.subr.mxu0 %v2588
    %3141 = vmatpush1.msra.mxu0 %v2587
    %3142 = vmatprep.subr.mxu0 %v2592
    %3143 = vmatpush1.msra.mxu0 %v2591
    %3144 = vmatprep.subr.mxu0 %v2596
    %3145 = vmatpush1.msra.mxu0 %v2595
    %3146 = vmatprep.subr.mxu0 %v2600
    %3147 = vmatpush1.msra.mxu0 %v2599
    %3148 = vmatprep.subr.mxu0 %v2604
    %3149 = vmatpush1.msra.mxu0 %v2603
    %3150 = vmatprep.subr.mxu0 %v2608
    %3151 = vmatpush1.msra.mxu0 %v2607
    %3152 = vmatprep.subr.mxu0 %v2612
    %3153 = vmatpush1.msra.mxu0 %v2611
    %3154 = vmatprep.subr.mxu0 %v2616
    %3155 = vmatpush1.msra.mxu0 %v2615
    %3156 = vmatprep.subr.mxu0 %v2620
    %3157 = vmatpush1.msra.mxu0 %v2619
    %3158 = vmatprep.subr.mxu0 %v2624
    %3159 = vmatpush1.msra.mxu0 %v2623
    %3160 = vmatprep.subr.mxu0 %v2628
    %3161 = vmatpush1.msra.mxu0 %v2627
    %3162 = vmatprep.subr.mxu0 %v2632
    %3163 = vmatpush1.msra.mxu0 %v2631
    %3164 = vmatprep.subr.mxu0 %v2636
    %3165 = vmatpush1.msra.mxu0 %v2635
    %3166 = vmatprep.subr.mxu0 %v2640
    %3167 = vmatpush1.msra.mxu0 %v2639
    %3168 = vmatprep.subr.mxu0 %v2644
    %3169 = vmatpush1.msra.mxu0 %v2643
    %3170 = vmatprep.subr.mxu0 %v2648
    %3171 = vmatpush1.msra.mxu0 %v2647
    %3172 = vmatprep.subr.mxu0 %v2652
    %3173 = vmatpush1.msra.mxu0 %v2651
    %3174 = vmatprep.subr.mxu0 %v2656
    %3175 = vmatpush1.msra.mxu0 %v2655
    %3176 = vmatprep.subr.mxu0 %v2660
    %3177 = vmatpush1.msra.mxu0 %v2659
    %3178 = vmatprep.subr.mxu0 %v2664
    %3179 = vmatpush1.msra.mxu0 %v2663
    %3180 = vmatprep.subr.mxu0 %v2668
    %3181 = vmatpush1.msra.mxu0 %v2667
    %3182 = vmatprep.subr.mxu0 %v2672
    %3183 = vmatpush1.msra.mxu0 %v2671
    %3184 = vmatprep.mubr.f32.mxu0 %v2540
    %3185 = vmatmul.mubr.f32.gmra.mrb[0].mxu0 %v2539
    %v3186 = vpop.f32.mrb[0].mxu0
    %v3187 = vadd.f32 %v2894, %v3186
    %v3188 = vpop.f32.mrb[0].mxu0
    %v3189 = vadd.f32 %v2898, %v3188
    %3190 = vdwg.mxu0
    %3191 = vmatprep.subr.mxu0 %v2676
    %3192 = vmatpush1.msra.mxu0 %v2675
    %3193 = vmatprep.subr.mxu0 %v2680
    %3194 = vmatpush1.msra.mxu0 %v2679
    %3195 = vmatprep.subr.mxu0 %v2684
    %3196 = vmatpush1.msra.mxu0 %v2683
    %3197 = vmatprep.subr.mxu0 %v2688
    %3198 = vmatpush1.msra.mxu0 %v2687
    %3199 = vmatprep.subr.mxu0 %v2692
    %3200 = vmatpush1.msra.mxu0 %v2691
    %3201 = vmatprep.subr.mxu0 %v2696
    %3202 = vmatpush1.msra.mxu0 %v2695
    %3203 = vmatprep.subr.mxu0 %v2700
    %3204 = vmatpush1.msra.mxu0 %v2699
    %3205 = vmatprep.subr.mxu0 %v2704
    %3206 = vmatpush1.msra.mxu0 %v2703
    %3207 = vmatprep.subr.mxu0 %v2708
    %3208 = vmatpush1.msra.mxu0 %v2707
    %3209 = vmatprep.subr.mxu0 %v2712
    %3210 = vmatpush1.msra.mxu0 %v2711
    %3211 = vmatprep.subr.mxu0 %v2716
    %3212 = vmatpush1.msra.mxu0 %v2715
    %3213 = vmatprep.subr.mxu0 %v2720
    %3214 = vmatpush1.msra.mxu0 %v2719
    %3215 = vmatprep.subr.mxu0 %v2724
    %3216 = vmatpush1.msra.mxu0 %v2723
    %3217 = vmatprep.subr.mxu0 %v2728
    %3218 = vmatpush1.msra.mxu0 %v2727
    %3219 = vmatprep.subr.mxu0 %v2732
    %3220 = vmatpush1.msra.mxu0 %v2731
    %3221 = vmatprep.subr.mxu0 %v2736
    %3222 = vmatpush1.msra.mxu0 %v2735
    %3223 = vmatprep.subr.mxu0 %v2740
    %3224 = vmatpush1.msra.mxu0 %v2739
    %3225 = vmatprep.subr.mxu0 %v2744
    %3226 = vmatpush1.msra.mxu0 %v2743
    %3227 = vmatprep.subr.mxu0 %v2748
    %3228 = vmatpush1.msra.mxu0 %v2747
    %3229 = vmatprep.subr.mxu0 %v2752
    %3230 = vmatpush1.msra.mxu0 %v2751
    %3231 = vmatprep.subr.mxu0 %v2756
    %3232 = vmatpush1.msra.mxu0 %v2755
    %3233 = vmatprep.subr.mxu0 %v2760
    %3234 = vmatpush1.msra.mxu0 %v2759
    %3235 = vmatprep.subr.mxu0 %v2764
    %3236 = vmatpush1.msra.mxu0 %v2763
    %3237 = vmatprep.subr.mxu0 %v2768
    %3238 = vmatpush1.msra.mxu0 %v2767
    %3239 = vmatprep.subr.mxu0 %v2772
    %3240 = vmatpush1.msra.mxu0 %v2771
    %3241 = vmatprep.subr.mxu0 %v2776
    %3242 = vmatpush1.msra.mxu0 %v2775
    %3243 = vmatprep.subr.mxu0 %v2780
    %3244 = vmatpush1.msra.mxu0 %v2779
    %3245 = vmatprep.subr.mxu0 %v2784
    %3246 = vmatpush1.msra.mxu0 %v2783
    %3247 = vmatprep.subr.mxu0 %v2788
    %3248 = vmatpush1.msra.mxu0 %v2787
    %3249 = vmatprep.subr.mxu0 %v2792
    %3250 = vmatpush1.msra.mxu0 %v2791
    %3251 = vmatprep.subr.mxu0 %v2796
    %3252 = vmatpush1.msra.mxu0 %v2795
    %3253 = vmatprep.subr.mxu0 %v2800
    %3254 = vmatpush1.msra.mxu0 %v2799
    %3255 = vmatprep.mubr.f32.mxu0 %v2542
    %3256 = vmatmul.mubr.f32.gmra.mrb[0].mxu0 %v2541
    %v3257 = vpop.f32.mrb[0].mxu0
    %v3258 = vadd.f32 %v3187, %v3257
    %v3259 = vpop.f32.mrb[0].mxu0
    %v3260 = vadd.f32 %v3189, %v3259
    %3261 = vdwg.mxu0
    %3262 = vmatprep.subr.mxu0 %v2804
    %3263 = vmatpush1.msra.mxu0 %v2803
    %3264 = vmatprep.subr.mxu0 %v2808
    %3265 = vmatpush1.msra.mxu0 %v2807
    %3266 = vmatprep.subr.mxu0 %v2812
    %3267 = vmatpush1.msra.mxu0 %v2811
    %3268 = vmatprep.subr.mxu0 %v2816
    %3269 = vmatpush1.msra.mxu0 %v2815
    %3270 = vmatprep.subr.mxu0 %v2820
    %3271 = vmatpush1.msra.mxu0 %v2819
    %3272 = vmatprep.subr.mxu0 %v2824
    %3273 = vmatpush1.msra.mxu0 %v2823
    %3274 = vmatprep.subr.mxu0 %v2828
    %3275 = vmatpush1.msra.mxu0 %v2827
    %3276 = vmatprep.subr.mxu0 %v2832
    %3277 = vmatpush1.msra.mxu0 %v2831
    %3278 = vmatprep.subr.mxu0 %v2836
    %3279 = vmatpush1.msra.mxu0 %v2835
    %3280 = vmatprep.subr.mxu0 %v2840
    %3281 = vmatpush1.msra.mxu0 %v2839
    %3282 = vmatprep.subr.mxu0 %v2844
    %3283 = vmatpush1.msra.mxu0 %v2843
    %3284 = vmatprep.subr.mxu0 %v2848
    %3285 = vmatpush1.msra.mxu0 %v2847
    %3286 = vmatprep.subr.mxu0 %v2852
    %3287 = vmatpush1.msra.mxu0 %v2851
    %3288 = vmatprep.subr.mxu0 %v2856
    %3289 = vmatpush1.msra.mxu0 %v2855
    %3290 = vmatprep.subr.mxu0 %v2860
    %3291 = vmatpush1.msra.mxu0 %v2859
    %3292 = vmatprep.subr.mxu0 %v2864
    %3293 = vmatpush1.msra.mxu0 %v2863
    %3294 = vmatprep.subr.mxu0 %v2868
    %3295 = vmatpush1.msra.mxu0 %v2867
    %3296 = vmatprep.subr.mxu0 %v2872
    %3297 = vmatpush1.msra.mxu0 %v2871
    %3298 = vmatprep.subr.mxu0 %v2876
    %3299 = vmatpush1.msra.mxu0 %v2875
    %3300 = vmatprep.subr.mxu0 %v2880
    %3301 = vmatpush1.msra.mxu0 %v2879
    %3302 = vmatprep.subr.mxu0 0.0
    %3303 = vmatpush1.msra.mxu0 0.0
    %3304 = vmatprep.subr.mxu0 0.0
    %3305 = vmatpush1.msra.mxu0 0.0
    %3306 = vmatprep.subr.mxu0 0.0
    %3307 = vmatpush1.msra.mxu0 0.0
    %3308 = vmatprep.subr.mxu0 0.0
    %3309 = vmatpush1.msra.mxu0 0.0
    %3310 = vmatprep.subr.mxu0 0.0
    %3311 = vmatpush1.msra.mxu0 0.0
    %3312 = vmatprep.subr.mxu0 0.0
    %3313 = vmatpush1.msra.mxu0 0.0
    %3314 = vmatprep.subr.mxu0 0.0
    %3315 = vmatpush1.msra.mxu0 0.0
    %3316 = vmatprep.subr.mxu0 0.0
    %3317 = vmatpush1.msra.mxu0 0.0
    %3318 = vmatprep.subr.mxu0 0.0
    %3319 = vmatpush1.msra.mxu0 0.0
    %3320 = vmatprep.subr.mxu0 0.0
    %3321 = vmatpush1.msra.mxu0 0.0
    %3322 = vmatprep.subr.mxu0 0.0
    %3323 = vmatpush1.msra.mxu0 0.0
    %3324 = vmatprep.subr.mxu0 0.0
    %3325 = vmatpush1.msra.mxu0 0.0
    %3326 = vmatprep.mubr.f32.mxu0 %v2905
    %3327 = vmatmul.mubr.f32.gmra.mrb[0].mxu0 %v2543
    %v3328 = vpop.f32.mrb[0].mxu0
    %v3329 = vadd.f32 %v3258, %v3328
    %v3330 = vpop.f32.mrb[0].mxu0
    %v3331 = vadd.f32 %v3260, %v3330
    %3332 = vdwg.mxu0
    %v3333 = vmax.f32 %v3116, 0.0
    %v3334 = vmax.f32 %v3118, 0.0
    %v3335 = vmax.f32 %v3329, 0.0
    %v3336 = vmax.f32 %v3331, 0.0
    %v3337 = vld [vmem:[%s8] sm:$0xff]
    %v3338 = vld [vmem:[%s8 + $0x8] sm:$0xff]
    %v3339 = vld [vmem:[%s8 + $0x10] sm:$0xff]
    %v3340 = vld [vmem:[%s8 + $0x18] sm:$0xff]
    %v3341 = vld [vmem:[%s8 + $0x20] sm:$0xff]
    %v3342 = vld [vmem:[%s8 + $0x28] sm:$0xff]
    %v3343 = vld [vmem:[%s8 + $0x30] sm:$0xff]
    %v3344 = vld [vmem:[%s8 + $0x38] sm:$0xff]
    %v3345 = vld [vmem:[%s8 + $0x40] sm:$0xff]
    %v3346 = vld [vmem:[%s8 + $0x48] sm:$0xff]
    %v3347 = vld [vmem:[%s8 + $0x50] sm:$0xff]
    %v3348 = vld [vmem:[%s8 + $0x58] sm:$0xff]
    %v3349 = vld [vmem:[%s8 + $0x60] sm:$0xff]
    %v3350 = vld [vmem:[%s8 + $0x68] sm:$0xff]
    %v3351 = vld [vmem:[%s8 + $0x70] sm:$0xff]
    %v3352 = vld [vmem:[%s8 + $0x78] sm:$0xff]
    %v3353 = vld [vmem:[%s8 + $0x80] sm:$0xff]
    %v3354 = vld [vmem:[%s8 + $0x88] sm:$0xff]
    %v3355 = vld [vmem:[%s8 + $0x90] sm:$0xff]
    %v3356 = vld [vmem:[%s8 + $0x98] sm:$0xff]
    %v3357 = vld [vmem:[%s8 + $0xa0] sm:$0xff]
    %v3358 = vld [vmem:[%s8 + $0xa8] sm:$0xff]
    %v3359 = vld [vmem:[%s8 + $0xb0] sm:$0xff]
    %v3360 = vld [vmem:[%s8 + $0xb8] sm:$0xff]
    %v3361 = vld [vmem:[%s8 + $0xc0] sm:$0xff]
    %v3362 = vld [vmem:[%s8 + $0xc8] sm:$0xff]
    %v3363 = vld [vmem:[%s8 + $0xd0] sm:$0xff]
    %v3364 = vld [vmem:[%s8 + $0xd8] sm:$0xff]
    %v3365 = vld [vmem:[%s8 + $0xe0] sm:$0xff]
    %v3366 = vld [vmem:[%s8 + $0xe8] sm:$0xff]
    %v3367 = vld [vmem:[%s8 + $0xf0] sm:$0xff]
    %v3368 = vld [vmem:[%s8 + $0xf8] sm:$0xff]
    %v3369 = vld [vmem:[%s8 + $0x100] sm:$0xff]
    %v3370 = vld [vmem:[%s8 + $0x108] sm:$0xff]
    %v3371 = vld [vmem:[%s8 + $0x110] sm:$0xff]
    %v3372 = vld [vmem:[%s8 + $0x118] sm:$0xff]
    %v3373 = vld [vmem:[%s8 + $0x120] sm:$0xff]
    %v3374 = vld [vmem:[%s8 + $0x128] sm:$0xff]
    %v3375 = vld [vmem:[%s8 + $0x130] sm:$0xff]
    %v3376 = vld [vmem:[%s8 + $0x138] sm:$0xff]
    %v3377 = vld [vmem:[%s8 + $0x140] sm:$0xff]
    %v3378 = vld [vmem:[%s8 + $0x148] sm:$0xff]
    %v3379 = vld [vmem:[%s8 + $0x150] sm:$0xff]
    %v3380 = vld [vmem:[%s8 + $0x158] sm:$0xff]
    %v3381 = vld [vmem:[%s8 + $0x160] sm:$0xff]
    %v3382 = vld [vmem:[%s8 + $0x168] sm:$0xff]
    %v3383 = vld [vmem:[%s8 + $0x170] sm:$0xff]
    %v3384 = vld [vmem:[%s8 + $0x178] sm:$0xff]
    %v3385 = vld [vmem:[%s8 + $0x180] sm:$0xff]
    %v3386 = vld [vmem:[%s8 + $0x188] sm:$0xff]
    %v3387 = vld [vmem:[%s8 + $0x190] sm:$0xff]
    %v3388 = vld [vmem:[%s8 + $0x198] sm:$0xff]
    %v3389 = vld [vmem:[%s8 + $0x1a0] sm:$0xff]
    %v3390 = vld [vmem:[%s8 + $0x1a8] sm:$0xff]
    %v3391 = vld [vmem:[%s8 + $0x1b0] sm:$0xff]
    %v3392 = vld [vmem:[%s8 + $0x1b8] sm:$0xff]
    %v3393 = vld [vmem:[%s8 + $0x1c0] sm:$0xff]
    %v3394 = vld [vmem:[%s8 + $0x1c8] sm:$0xff]
    %v3395 = vld [vmem:[%s8 + $0x1d0] sm:$0xff]
    %v3396 = vld [vmem:[%s8 + $0x1d8] sm:$0xff]
    %v3397 = vld [vmem:[%s8 + $0x1e0] sm:$0xff]
    %v3398 = vld [vmem:[%s8 + $0x1e8] sm:$0xff]
    %v3399 = vld [vmem:[%s8 + $0x1f0] sm:$0xff]
    %v3400 = vld [vmem:[%s8 + $0x1f8] sm:$0xff]
    %v3401 = vld [vmem:[%s8 + $0x200] sm:$0xff]
    %v3402 = vld [vmem:[%s8 + $0x208] sm:$0xff]
    %v3403 = vld [vmem:[%s8 + $0x210] sm:$0xff]
    %v3404 = vld [vmem:[%s8 + $0x218] sm:$0xff]
    %v3405 = vld [vmem:[%s8 + $0x220] sm:$0xff]
    %v3406 = vld [vmem:[%s8 + $0x228] sm:$0xff]
    %v3407 = vld [vmem:[%s8 + $0x230] sm:$0xff]
    %v3408 = vld [vmem:[%s8 + $0x238] sm:$0xff]
    %v3409 = vld [vmem:[%s8 + $0x240] sm:$0xff]
    %v3410 = vld [vmem:[%s8 + $0x248] sm:$0xff]
    %v3411 = vld [vmem:[%s8 + $0x250] sm:$0xff]
    %v3412 = vld [vmem:[%s8 + $0x258] sm:$0xff]
    %v3413 = vld [vmem:[%s8 + $0x260] sm:$0xff]
    %v3414 = vld [vmem:[%s8 + $0x268] sm:$0xff]
    %v3415 = vld [vmem:[%s8 + $0x270] sm:$0xff]
    %v3416 = vld [vmem:[%s8 + $0x278] sm:$0xff]
    %v3417 = vld [vmem:[%s8 + $0x280] sm:$0xff]
    %v3418 = vld [vmem:[%s8 + $0x288] sm:$0xff]
    %v3419 = vld [vmem:[%s8 + $0x290] sm:$0xff]
    %v3420 = vld [vmem:[%s8 + $0x298] sm:$0xff]
    %v3421 = vld [vmem:[%s8 + $0x2a0] sm:$0xff]
    %v3422 = vld [vmem:[%s8 + $0x2a8] sm:$0xff]
    %v3423 = vld [vmem:[%s8 + $0x2b0] sm:$0xff]
    %v3424 = vld [vmem:[%s8 + $0x2b8] sm:$0xff]
    %v3425 = vld [vmem:[%s8 + $0x2c0] sm:$0xff]
    %v3426 = vld [vmem:[%s8 + $0x2c8] sm:$0xff]
    %v3427 = vld [vmem:[%s8 + $0x2d0] sm:$0xff]
    %v3428 = vld [vmem:[%s8 + $0x2d8] sm:$0xff]
    %v3429 = vld [vmem:[%s8 + $0x2e0] sm:$0xff]
    %v3430 = vld [vmem:[%s8 + $0x2e8] sm:$0xff]
    %v3431 = vld [vmem:[%s8 + $0x2f0] sm:$0xff]
    %v3432 = vld [vmem:[%s8 + $0x2f8] sm:$0xff]
    %v3433 = vld [vmem:[%s8 + $0x300] sm:$0xff]
    %v3434 = vld [vmem:[%s8 + $0x308] sm:$0xff]
    %v3435 = vld [vmem:[%s8 + $0x310] sm:$0xff]
    %v3436 = vld [vmem:[%s8 + $0x318] sm:$0xff]
    %v3437 = vld [vmem:[%s8 + $0x320] sm:$0xff]
    %v3438 = vld [vmem:[%s8 + $0x328] sm:$0xff]
    %v3439 = vld [vmem:[%s8 + $0x330] sm:$0xff]
    %v3440 = vld [vmem:[%s8 + $0x338] sm:$0xff]
    %v3441 = vld [vmem:[%s8 + $0x340] sm:$0xff]
    %v3442 = vld [vmem:[%s8 + $0x348] sm:$0xff]
    %v3443 = vld [vmem:[%s8 + $0x350] sm:$0xff]
    %v3444 = vld [vmem:[%s8 + $0x358] sm:$0xff]
    %v3445 = vld [vmem:[%s8 + $0x360] sm:$0xff]
    %v3446 = vld [vmem:[%s8 + $0x368] sm:$0xff]
    %v3447 = vld [vmem:[%s8 + $0x370] sm:$0xff]
    %v3448 = vld [vmem:[%s8 + $0x378] sm:$0xff]
    %v3449 = vld [vmem:[%s8 + $0x380] sm:$0xff]
    %v3450 = vld [vmem:[%s8 + $0x388] sm:$0xff]
    %v3451 = vld [vmem:[%s8 + $0x390] sm:$0xff]
    %v3452 = vld [vmem:[%s8 + $0x398] sm:$0xff]
    %v3453 = vld [vmem:[%s8 + $0x3a0] sm:$0xff]
    %v3454 = vld [vmem:[%s8 + $0x3a8] sm:$0xff]
    %v3455 = vld [vmem:[%s8 + $0x3b0] sm:$0xff]
    %v3456 = vld [vmem:[%s8 + $0x3b8] sm:$0xff]
    %v3457 = vld [vmem:[%s8 + $0x3c0] sm:$0xff]
    %v3458 = vld [vmem:[%s8 + $0x3c8] sm:$0xff]
    %v3459 = vld [vmem:[%s8 + $0x3d0] sm:$0xff]
    %v3460 = vld [vmem:[%s8 + $0x3d8] sm:$0xff]
    %v3461 = vld [vmem:[%s8 + $0x3e0] sm:$0xff]
    %v3462 = vld [vmem:[%s8 + $0x3e8] sm:$0xff]
    %v3463 = vld [vmem:[%s8 + $0x3f0] sm:$0xff]
    %v3464 = vld [vmem:[%s8 + $0x3f8] sm:$0xff]
    %v3465 = vld [vmem:[%s8 + $0x400] sm:$0xff]
    %v3466 = vld [vmem:[%s8 + $0x408] sm:$0xff]
    %v3467 = vld [vmem:[%s8 + $0x410] sm:$0xff]
    %v3468 = vld [vmem:[%s8 + $0x418] sm:$0xff]
    %v3469 = vld [vmem:[%s8 + $0x420] sm:$0xff]
    %v3470 = vld [vmem:[%s8 + $0x428] sm:$0xff]
    %v3471 = vld [vmem:[%s8 + $0x430] sm:$0xff]
    %v3472 = vld [vmem:[%s8 + $0x438] sm:$0xff]
    %v3473 = vld [vmem:[%s8 + $0x440] sm:$0xff]
    %v3474 = vld [vmem:[%s8 + $0x448] sm:$0xff]
    %v3475 = vld [vmem:[%s8 + $0x450] sm:$0xff]
    %v3476 = vld [vmem:[%s8 + $0x458] sm:$0xff]
    %v3477 = vld [vmem:[%s8 + $0x460] sm:$0xff]
    %v3478 = vld [vmem:[%s8 + $0x468] sm:$0xff]
    %v3479 = vld [vmem:[%s8 + $0x470] sm:$0xff]
    %v3480 = vld [vmem:[%s8 + $0x478] sm:$0xff]
    %v3481 = vld [vmem:[%s8 + $0x480] sm:$0xff]
    %v3482 = vld [vmem:[%s8 + $0x488] sm:$0xff]
    %v3483 = vld [vmem:[%s8 + $0x490] sm:$0xff]
    %v3484 = vld [vmem:[%s8 + $0x498] sm:$0xff]
    %v3485 = vld [vmem:[%s8 + $0x4a0] sm:$0xff]
    %v3486 = vld [vmem:[%s8 + $0x4a8] sm:$0xff]
    %v3487 = vld [vmem:[%s8 + $0x4b0] sm:$0xff]
    %v3488 = vld [vmem:[%s8 + $0x4b8] sm:$0xff]
    %v3489 = vld [vmem:[%s8 + $0x4c0] sm:$0xff]
    %v3490 = vld [vmem:[%s8 + $0x4c8] sm:$0xff]
    %v3491 = vld [vmem:[%s8 + $0x4d0] sm:$0xff]
    %v3492 = vld [vmem:[%s8 + $0x4d8] sm:$0xff]
    %v3493 = vld [vmem:[%s8 + $0x4e0] sm:$0xff]
    %v3494 = vld [vmem:[%s8 + $0x4e8] sm:$0xff]
    %v3495 = vld [vmem:[%s8 + $0x4f0] sm:$0xff]
    %v3496 = vld [vmem:[%s8 + $0x4f8] sm:$0xff]
    %v3497 = vld [vmem:[%s8 + $0x500] sm:$0xff]
    %v3498 = vld [vmem:[%s8 + $0x508] sm:$0xff]
    %v3499 = vld [vmem:[%s8 + $0x510] sm:$0xff]
    %v3500 = vld [vmem:[%s8 + $0x518] sm:$0xff]
    %v3501 = vld [vmem:[%s8 + $0x520] sm:$0xff]
    %v3502 = vld [vmem:[%s8 + $0x528] sm:$0xff]
    %v3503 = vld [vmem:[%s8 + $0x530] sm:$0xff]
    %v3504 = vld [vmem:[%s8 + $0x538] sm:$0xff]
    %v3505 = vld [vmem:[%s8 + $0x540] sm:$0xff]
    %v3506 = vld [vmem:[%s8 + $0x548] sm:$0xff]
    %v3507 = vld [vmem:[%s8 + $0x550] sm:$0xff]
    %v3508 = vld [vmem:[%s8 + $0x558] sm:$0xff]
    %v3509 = vld [vmem:[%s8 + $0x560] sm:$0xff]
    %v3510 = vld [vmem:[%s8 + $0x568] sm:$0xff]
    %v3511 = vld [vmem:[%s8 + $0x570] sm:$0xff]
    %v3512 = vld [vmem:[%s8 + $0x578] sm:$0xff]
    %v3513 = vld [vmem:[%s8 + $0x580] sm:$0xff]
    %v3514 = vld [vmem:[%s8 + $0x588] sm:$0xff]
    %v3515 = vld [vmem:[%s8 + $0x590] sm:$0xff]
    %v3516 = vld [vmem:[%s8 + $0x598] sm:$0xff]
    %v3517 = vld [vmem:[%s8 + $0x5a0] sm:$0xff]
    %v3518 = vld [vmem:[%s8 + $0x5a8] sm:$0xff]
    %v3519 = vld [vmem:[%s8 + $0x5b0] sm:$0xff]
    %v3520 = vld [vmem:[%s8 + $0x5b8] sm:$0xff]
    %v3521 = vld [vmem:[%s8 + $0x5c0] sm:$0xff]
    %v3522 = vld [vmem:[%s8 + $0x5c8] sm:$0xff]
    %v3523 = vld [vmem:[%s8 + $0x5d0] sm:$0xff]
    %v3524 = vld [vmem:[%s8 + $0x5d8] sm:$0xff]
    %v3525 = vld [vmem:[%s8 + $0x5e0] sm:$0xff]
    %v3526 = vld [vmem:[%s8 + $0x5e8] sm:$0xff]
    %v3527 = vld [vmem:[%s8 + $0x5f0] sm:$0xff]
    %v3528 = vld [vmem:[%s8 + $0x5f8] sm:$0xff]
    %v3529 = vld [vmem:[%s8 + $0x600] sm:$0xff]
    %v3530 = vld [vmem:[%s8 + $0x608] sm:$0xff]
    %v3531 = vld [vmem:[%s8 + $0x610] sm:$0xff]
    %v3532 = vld [vmem:[%s8 + $0x618] sm:$0xff]
    %v3533 = vld [vmem:[%s8 + $0x620] sm:$0xff]
    %v3534 = vld [vmem:[%s8 + $0x628] sm:$0xff]
    %v3535 = vld [vmem:[%s8 + $0x630] sm:$0xff]
    %v3536 = vld [vmem:[%s8 + $0x638] sm:$0xff]
    %v3537 = vld [vmem:[%s8 + $0x640] sm:$0xff]
    %v3538 = vld [vmem:[%s8 + $0x648] sm:$0xff]
    %v3539 = vld [vmem:[%s8 + $0x650] sm:$0xff]
    %v3540 = vld [vmem:[%s8 + $0x658] sm:$0xff]
    %v3541 = vld [vmem:[%s8 + $0x660] sm:$0xff]
    %v3542 = vld [vmem:[%s8 + $0x668] sm:$0xff]
    %v3543 = vld [vmem:[%s8 + $0x670] sm:$0xff]
    %v3544 = vld [vmem:[%s8 + $0x678] sm:$0xff]
    %v3545 = vld [vmem:[%s8 + $0x680] sm:$0xff]
    %v3546 = vld [vmem:[%s8 + $0x688] sm:$0xff]
    %v3547 = vld [vmem:[%s8 + $0x690] sm:$0xff]
    %v3548 = vld [vmem:[%s8 + $0x698] sm:$0xff]
    %v3549 = vld [vmem:[%s8 + $0x6a0] sm:$0xff]
    %v3550 = vld [vmem:[%s8 + $0x6a8] sm:$0xff]
    %v3551 = vld [vmem:[%s8 + $0x6b0] sm:$0xff]
    %v3552 = vld [vmem:[%s8 + $0x6b8] sm:$0xff]
    %v3553 = vld [vmem:[%s8 + $0x6c0] sm:$0xff]
    %v3554 = vld [vmem:[%s8 + $0x6c8] sm:$0xff]
    %v3555 = vld [vmem:[%s8 + $0x6d0] sm:$0xff]
    %v3556 = vld [vmem:[%s8 + $0x6d8] sm:$0xff]
    %v3557 = vld [vmem:[%s8 + $0x6e0] sm:$0xff]
    %v3558 = vld [vmem:[%s8 + $0x6e8] sm:$0xff]
    %v3559 = vld [vmem:[%s8 + $0x6f0] sm:$0xff]
    %v3560 = vld [vmem:[%s8 + $0x6f8] sm:$0xff]
    %v3561 = vld [vmem:[%s8 + $0x700] sm:$0xff]
    %v3562 = vld [vmem:[%s8 + $0x708] sm:$0xff]
    %v3563 = vld [vmem:[%s8 + $0x710] sm:$0xff]
    %v3564 = vld [vmem:[%s8 + $0x718] sm:$0xff]
    %v3565 = vld [vmem:[%s8 + $0x720] sm:$0xff]
    %v3566 = vld [vmem:[%s8 + $0x728] sm:$0xff]
    %v3567 = vld [vmem:[%s8 + $0x730] sm:$0xff]
    %v3568 = vld [vmem:[%s8 + $0x738] sm:$0xff]
    %v3569 = vld [vmem:[%s8 + $0x740] sm:$0xff]
    %v3570 = vld [vmem:[%s8 + $0x748] sm:$0xff]
    %v3571 = vld [vmem:[%s8 + $0x750] sm:$0xff]
    %v3572 = vld [vmem:[%s8 + $0x758] sm:$0xff]
    %v3573 = vld [vmem:[%s8 + $0x760] sm:$0xff]
    %v3574 = vld [vmem:[%s8 + $0x768] sm:$0xff]
    %v3575 = vld [vmem:[%s8 + $0x770] sm:$0xff]
    %v3576 = vld [vmem:[%s8 + $0x778] sm:$0xff]
    %v3577 = vld [vmem:[%s8 + $0x780] sm:$0xff]
    %v3578 = vld [vmem:[%s8 + $0x788] sm:$0xff]
    %v3579 = vld [vmem:[%s8 + $0x790] sm:$0xff]
    %v3580 = vld [vmem:[%s8 + $0x798] sm:$0xff]
    %v3581 = vld [vmem:[%s8 + $0x7a0] sm:$0xff]
    %v3582 = vld [vmem:[%s8 + $0x7a8] sm:$0xff]
    %v3583 = vld [vmem:[%s8 + $0x7b0] sm:$0xff]
    %v3584 = vld [vmem:[%s8 + $0x7b8] sm:$0xff]
    %v3585 = vld [vmem:[%s8 + $0x7c0] sm:$0xff]
    %v3586 = vld [vmem:[%s8 + $0x7c8] sm:$0xff]
    %v3587 = vld [vmem:[%s8 + $0x7d0] sm:$0xff]
    %v3588 = vld [vmem:[%s8 + $0x7d8] sm:$0xff]
    %v3589 = vld [vmem:[%s8 + $0x7e0] sm:$0xff]
    %v3590 = vld [vmem:[%s8 + $0x7e8] sm:$0xff]
    %v3591 = vld [vmem:[%s8 + $0x7f0] sm:$0xff]
    %v3592 = vld [vmem:[%s8 + $0x7f8] sm:$0xff]
    %v3593 = vld [vmem:[%s9] sm:$0xf]
    %v3595 = vlaneseq
    %v3596 = vshrl.u32 %v3595, 7
    %v3597 = vsub.s32 0, %v3596
    %v3598 = vrot.slane %v3593, %v3597
    %v3599 = vlaneseq
    %v3600 = vshrl.u32 %v3599, 7
    %v3601 = vsub.s32 1, %v3600
    %v3602 = vrot.slane %v3593, %v3601
    %v3603 = vlaneseq
    %v3604 = vshrl.u32 %v3603, 7
    %v3605 = vsub.s32 2, %v3604
    %v3606 = vrot.slane %v3593, %v3605
    %v3607 = vlaneseq
    %v3608 = vshrl.u32 %v3607, 7
    %v3609 = vsub.s32 3, %v3608
    %v3610 = vrot.slane %v3593, %v3609
    %3615 = vmatprep.subr.mxu0 %v3338
    %3616 = vmatpush1.msra.mxu0 %v3337
    %3617 = vmatprep.subr.mxu0 %v3342
    %3618 = vmatpush1.msra.mxu0 %v3341
    %3619 = vmatprep.subr.mxu0 %v3346
    %3620 = vmatpush1.msra.mxu0 %v3345
    %3621 = vmatprep.subr.mxu0 %v3350
    %3622 = vmatpush1.msra.mxu0 %v3349
    %3623 = vmatprep.subr.mxu0 %v3354
    %3624 = vmatpush1.msra.mxu0 %v3353
    %3625 = vmatprep.subr.mxu0 %v3358
    %3626 = vmatpush1.msra.mxu0 %v3357
    %3627 = vmatprep.subr.mxu0 %v3362
    %3628 = vmatpush1.msra.mxu0 %v3361
    %3629 = vmatprep.subr.mxu0 %v3366
    %3630 = vmatpush1.msra.mxu0 %v3365
    %3631 = vmatprep.subr.mxu0 %v3370
    %3632 = vmatpush1.msra.mxu0 %v3369
    %3633 = vmatprep.subr.mxu0 %v3374
    %3634 = vmatpush1.msra.mxu0 %v3373
    %3635 = vmatprep.subr.mxu0 %v3378
    %3636 = vmatpush1.msra.mxu0 %v3377
    %3637 = vmatprep.subr.mxu0 %v3382
    %3638 = vmatpush1.msra.mxu0 %v3381
    %3639 = vmatprep.subr.mxu0 %v3386
    %3640 = vmatpush1.msra.mxu0 %v3385
    %3641 = vmatprep.subr.mxu0 %v3390
    %3642 = vmatpush1.msra.mxu0 %v3389
    %3643 = vmatprep.subr.mxu0 %v3394
    %3644 = vmatpush1.msra.mxu0 %v3393
    %3645 = vmatprep.subr.mxu0 %v3398
    %3646 = vmatpush1.msra.mxu0 %v3397
    %3647 = vmatprep.subr.mxu0 %v3402
    %3648 = vmatpush1.msra.mxu0 %v3401
    %3649 = vmatprep.subr.mxu0 %v3406
    %3650 = vmatpush1.msra.mxu0 %v3405
    %3651 = vmatprep.subr.mxu0 %v3410
    %3652 = vmatpush1.msra.mxu0 %v3409
    %3653 = vmatprep.subr.mxu0 %v3414
    %3654 = vmatpush1.msra.mxu0 %v3413
    %3655 = vmatprep.subr.mxu0 %v3418
    %3656 = vmatpush1.msra.mxu0 %v3417
    %3657 = vmatprep.subr.mxu0 %v3422
    %3658 = vmatpush1.msra.mxu0 %v3421
    %3659 = vmatprep.subr.mxu0 %v3426
    %3660 = vmatpush1.msra.mxu0 %v3425
    %3661 = vmatprep.subr.mxu0 %v3430
    %3662 = vmatpush1.msra.mxu0 %v3429
    %3663 = vmatprep.subr.mxu0 %v3434
    %3664 = vmatpush1.msra.mxu0 %v3433
    %3665 = vmatprep.subr.mxu0 %v3438
    %3666 = vmatpush1.msra.mxu0 %v3437
    %3667 = vmatprep.subr.mxu0 %v3442
    %3668 = vmatpush1.msra.mxu0 %v3441
    %3669 = vmatprep.subr.mxu0 %v3446
    %3670 = vmatpush1.msra.mxu0 %v3445
    %3671 = vmatprep.subr.mxu0 %v3450
    %3672 = vmatpush1.msra.mxu0 %v3449
    %3673 = vmatprep.subr.mxu0 %v3454
    %3674 = vmatpush1.msra.mxu0 %v3453
    %3675 = vmatprep.subr.mxu0 %v3458
    %3676 = vmatpush1.msra.mxu0 %v3457
    %3677 = vmatprep.subr.mxu0 %v3462
    %3678 = vmatpush1.msra.mxu0 %v3461
    %3679 = vmatprep.mubr.f32.mxu0 %v3334
    %3680 = vmatmul.mubr.f32.gmra.mrb[0].mxu0 %v3333
    %v3681 = vpop.f32.mrb[0].mxu0
    %v3682 = vadd.f32 %v3598, %v3681
    %v3683 = vpop.f32.mrb[0].mxu0
    %v3684 = vadd.f32 %v3602, %v3683
    %3685 = vdwg.mxu0
    %3686 = vmatprep.subr.mxu0 %v3466
    %3687 = vmatpush1.msra.mxu0 %v3465
    %3688 = vmatprep.subr.mxu0 %v3470
    %3689 = vmatpush1.msra.mxu0 %v3469
    %3690 = vmatprep.subr.mxu0 %v3474
    %3691 = vmatpush1.msra.mxu0 %v3473
    %3692 = vmatprep.subr.mxu0 %v3478
    %3693 = vmatpush1.msra.mxu0 %v3477
    %3694 = vmatprep.subr.mxu0 %v3482
    %3695 = vmatpush1.msra.mxu0 %v3481
    %3696 = vmatprep.subr.mxu0 %v3486
    %3697 = vmatpush1.msra.mxu0 %v3485
    %3698 = vmatprep.subr.mxu0 %v3490
    %3699 = vmatpush1.msra.mxu0 %v3489
    %3700 = vmatprep.subr.mxu0 %v3494
    %3701 = vmatpush1.msra.mxu0 %v3493
    %3702 = vmatprep.subr.mxu0 %v3498
    %3703 = vmatpush1.msra.mxu0 %v3497
    %3704 = vmatprep.subr.mxu0 %v3502
    %3705 = vmatpush1.msra.mxu0 %v3501
    %3706 = vmatprep.subr.mxu0 %v3506
    %3707 = vmatpush1.msra.mxu0 %v3505
    %3708 = vmatprep.subr.mxu0 %v3510
    %3709 = vmatpush1.msra.mxu0 %v3509
    %3710 = vmatprep.subr.mxu0 %v3514
    %3711 = vmatpush1.msra.mxu0 %v3513
    %3712 = vmatprep.subr.mxu0 %v3518
    %3713 = vmatpush1.msra.mxu0 %v3517
    %3714 = vmatprep.subr.mxu0 %v3522
    %3715 = vmatpush1.msra.mxu0 %v3521
    %3716 = vmatprep.subr.mxu0 %v3526
    %3717 = vmatpush1.msra.mxu0 %v3525
    %3718 = vmatprep.subr.mxu0 %v3530
    %3719 = vmatpush1.msra.mxu0 %v3529
    %3720 = vmatprep.subr.mxu0 %v3534
    %3721 = vmatpush1.msra.mxu0 %v3533
    %3722 = vmatprep.subr.mxu0 %v3538
    %3723 = vmatpush1.msra.mxu0 %v3537
    %3724 = vmatprep.subr.mxu0 %v3542
    %3725 = vmatpush1.msra.mxu0 %v3541
    %3726 = vmatprep.subr.mxu0 %v3546
    %3727 = vmatpush1.msra.mxu0 %v3545
    %3728 = vmatprep.subr.mxu0 %v3550
    %3729 = vmatpush1.msra.mxu0 %v3549
    %3730 = vmatprep.subr.mxu0 %v3554
    %3731 = vmatpush1.msra.mxu0 %v3553
    %3732 = vmatprep.subr.mxu0 %v3558
    %3733 = vmatpush1.msra.mxu0 %v3557
    %3734 = vmatprep.subr.mxu0 %v3562
    %3735 = vmatpush1.msra.mxu0 %v3561
    %3736 = vmatprep.subr.mxu0 %v3566
    %3737 = vmatpush1.msra.mxu0 %v3565
    %3738 = vmatprep.subr.mxu0 %v3570
    %3739 = vmatpush1.msra.mxu0 %v3569
    %3740 = vmatprep.subr.mxu0 %v3574
    %3741 = vmatpush1.msra.mxu0 %v3573
    %3742 = vmatprep.subr.mxu0 %v3578
    %3743 = vmatpush1.msra.mxu0 %v3577
    %3744 = vmatprep.subr.mxu0 %v3582
    %3745 = vmatpush1.msra.mxu0 %v3581
    %3746 = vmatprep.subr.mxu0 %v3586
    %3747 = vmatpush1.msra.mxu0 %v3585
    %3748 = vmatprep.subr.mxu0 %v3590
    %3749 = vmatpush1.msra.mxu0 %v3589
    %3750 = vmatprep.mubr.f32.mxu0 %v3336
    %3751 = vmatmul.mubr.f32.gmra.mrb[0].mxu0 %v3335
    %v3752 = vpop.f32.mrb[0].mxu0
    %v3753 = vadd.f32 %v3682, %v3752
    %v3754 = vpop.f32.mrb[0].mxu0
    %v3755 = vadd.f32 %v3684, %v3754
    %3756 = vdwg.mxu0
    %3757 = vmatprep.subr.mxu0 %v3340
    %3758 = vmatpush1.msra.mxu0 %v3339
    %3759 = vmatprep.subr.mxu0 %v3344
    %3760 = vmatpush1.msra.mxu0 %v3343
    %3761 = vmatprep.subr.mxu0 %v3348
    %3762 = vmatpush1.msra.mxu0 %v3347
    %3763 = vmatprep.subr.mxu0 %v3352
    %3764 = vmatpush1.msra.mxu0 %v3351
    %3765 = vmatprep.subr.mxu0 %v3356
    %3766 = vmatpush1.msra.mxu0 %v3355
    %3767 = vmatprep.subr.mxu0 %v3360
    %3768 = vmatpush1.msra.mxu0 %v3359
    %3769 = vmatprep.subr.mxu0 %v3364
    %3770 = vmatpush1.msra.mxu0 %v3363
    %3771 = vmatprep.subr.mxu0 %v3368
    %3772 = vmatpush1.msra.mxu0 %v3367
    %3773 = vmatprep.subr.mxu0 %v3372
    %3774 = vmatpush1.msra.mxu0 %v3371
    %3775 = vmatprep.subr.mxu0 %v3376
    %3776 = vmatpush1.msra.mxu0 %v3375
    %3777 = vmatprep.subr.mxu0 %v3380
    %3778 = vmatpush1.msra.mxu0 %v3379
    %3779 = vmatprep.subr.mxu0 %v3384
    %3780 = vmatpush1.msra.mxu0 %v3383
    %3781 = vmatprep.subr.mxu0 %v3388
    %3782 = vmatpush1.msra.mxu0 %v3387
    %3783 = vmatprep.subr.mxu0 %v3392
    %3784 = vmatpush1.msra.mxu0 %v3391
    %3785 = vmatprep.subr.mxu0 %v3396
    %3786 = vmatpush1.msra.mxu0 %v3395
    %3787 = vmatprep.subr.mxu0 %v3400
    %3788 = vmatpush1.msra.mxu0 %v3399
    %3789 = vmatprep.subr.mxu0 %v3404
    %3790 = vmatpush1.msra.mxu0 %v3403
    %3791 = vmatprep.subr.mxu0 %v3408
    %3792 = vmatpush1.msra.mxu0 %v3407
    %3793 = vmatprep.subr.mxu0 %v3412
    %3794 = vmatpush1.msra.mxu0 %v3411
    %3795 = vmatprep.subr.mxu0 %v3416
    %3796 = vmatpush1.msra.mxu0 %v3415
    %3797 = vmatprep.subr.mxu0 %v3420
    %3798 = vmatpush1.msra.mxu0 %v3419
    %3799 = vmatprep.subr.mxu0 %v3424
    %3800 = vmatpush1.msra.mxu0 %v3423
    %3801 = vmatprep.subr.mxu0 %v3428
    %3802 = vmatpush1.msra.mxu0 %v3427
    %3803 = vmatprep.subr.mxu0 %v3432
    %3804 = vmatpush1.msra.mxu0 %v3431
    %3805 = vmatprep.subr.mxu0 %v3436
    %3806 = vmatpush1.msra.mxu0 %v3435
    %3807 = vmatprep.subr.mxu0 %v3440
    %3808 = vmatpush1.msra.mxu0 %v3439
    %3809 = vmatprep.subr.mxu0 %v3444
    %3810 = vmatpush1.msra.mxu0 %v3443
    %3811 = vmatprep.subr.mxu0 %v3448
    %3812 = vmatpush1.msra.mxu0 %v3447
    %3813 = vmatprep.subr.mxu0 %v3452
    %3814 = vmatpush1.msra.mxu0 %v3451
    %3815 = vmatprep.subr.mxu0 %v3456
    %3816 = vmatpush1.msra.mxu0 %v3455
    %3817 = vmatprep.subr.mxu0 %v3460
    %3818 = vmatpush1.msra.mxu0 %v3459
    %3819 = vmatprep.subr.mxu0 %v3464
    %3820 = vmatpush1.msra.mxu0 %v3463
    %3821 = vmatprep.mubr.f32.mxu0 %v3334
    %3822 = vmatmul.mubr.f32.gmra.mrb[0].mxu0 %v3333
    %v3823 = vpop.f32.mrb[0].mxu0
    %v3824 = vadd.f32 %v3606, %v3823
    %v3825 = vpop.f32.mrb[0].mxu0
    %v3826 = vadd.f32 %v3610, %v3825
    %3827 = vdwg.mxu0
    %3828 = vmatprep.subr.mxu0 %v3468
    %3829 = vmatpush1.msra.mxu0 %v3467
    %3830 = vmatprep.subr.mxu0 %v3472
    %3831 = vmatpush1.msra.mxu0 %v3471
    %3832 = vmatprep.subr.mxu0 %v3476
    %3833 = vmatpush1.msra.mxu0 %v3475
    %3834 = vmatprep.subr.mxu0 %v3480
    %3835 = vmatpush1.msra.mxu0 %v3479
    %3836 = vmatprep.subr.mxu0 %v3484
    %3837 = vmatpush1.msra.mxu0 %v3483
    %3838 = vmatprep.subr.mxu0 %v3488
    %3839 = vmatpush1.msra.mxu0 %v3487
    %3840 = vmatprep.subr.mxu0 %v3492
    %3841 = vmatpush1.msra.mxu0 %v3491
    %3842 = vmatprep.subr.mxu0 %v3496
    %3843 = vmatpush1.msra.mxu0 %v3495
    %3844 = vmatprep.subr.mxu0 %v3500
    %3845 = vmatpush1.msra.mxu0 %v3499
    %3846 = vmatprep.subr.mxu0 %v3504
    %3847 = vmatpush1.msra.mxu0 %v3503
    %3848 = vmatprep.subr.mxu0 %v3508
    %3849 = vmatpush1.msra.mxu0 %v3507
    %3850 = vmatprep.subr.mxu0 %v3512
    %3851 = vmatpush1.msra.mxu0 %v3511
    %3852 = vmatprep.subr.mxu0 %v3516
    %3853 = vmatpush1.msra.mxu0 %v3515
    %3854 = vmatprep.subr.mxu0 %v3520
    %3855 = vmatpush1.msra.mxu0 %v3519
    %3856 = vmatprep.subr.mxu0 %v3524
    %3857 = vmatpush1.msra.mxu0 %v3523
    %3858 = vmatprep.subr.mxu0 %v3528
    %3859 = vmatpush1.msra.mxu0 %v3527
    %3860 = vmatprep.subr.mxu0 %v3532
    %3861 = vmatpush1.msra.mxu0 %v3531
    %3862 = vmatprep.subr.mxu0 %v3536
    %3863 = vmatpush1.msra.mxu0 %v3535
    %3864 = vmatprep.subr.mxu0 %v3540
    %3865 = vmatpush1.msra.mxu0 %v3539
    %3866 = vmatprep.subr.mxu0 %v3544
    %3867 = vmatpush1.msra.mxu0 %v3543
    %3868 = vmatprep.subr.mxu0 %v3548
    %3869 = vmatpush1.msra.mxu0 %v3547
    %3870 = vmatprep.subr.mxu0 %v3552
    %3871 = vmatpush1.msra.mxu0 %v3551
    %3872 = vmatprep.subr.mxu0 %v3556
    %3873 = vmatpush1.msra.mxu0 %v3555
    %3874 = vmatprep.subr.mxu0 %v3560
    %3875 = vmatpush1.msra.mxu0 %v3559
    %3876 = vmatprep.subr.mxu0 %v3564
    %3877 = vmatpush1.msra.mxu0 %v3563
    %3878 = vmatprep.subr.mxu0 %v3568
    %3879 = vmatpush1.msra.mxu0 %v3567
    %3880 = vmatprep.subr.mxu0 %v3572
    %3881 = vmatpush1.msra.mxu0 %v3571
    %3882 = vmatprep.subr.mxu0 %v3576
    %3883 = vmatpush1.msra.mxu0 %v3575
    %3884 = vmatprep.subr.mxu0 %v3580
    %3885 = vmatpush1.msra.mxu0 %v3579
    %3886 = vmatprep.subr.mxu0 %v3584
    %3887 = vmatpush1.msra.mxu0 %v3583
    %3888 = vmatprep.subr.mxu0 %v3588
    %3889 = vmatpush1.msra.mxu0 %v3587
    %3890 = vmatprep.subr.mxu0 %v3592
    %3891 = vmatpush1.msra.mxu0 %v3591
    %3892 = vmatprep.mubr.f32.mxu0 %v3336
    %3893 = vmatmul.mubr.f32.gmra.mrb[0].mxu0 %v3335
    %v3894 = vpop.f32.mrb[0].mxu0
    %v3895 = vadd.f32 %v3824, %v3894
    %v3896 = vpop.f32.mrb[0].mxu0
    %v3897 = vadd.f32 %v3826, %v3896
    %3898 = vdwg.mxu0
    %v3899 = vmax.f32 %v3753, 0.0
    %v3900 = vmax.f32 %v3755, 0.0
    %v3901 = vmax.f32 %v3895, 0.0
    %v3902 = vmax.f32 %v3897, 0.0
    %v3903 = vld [vmem:[%s10] sm:$0xff]
    %v3904 = vld [vmem:[%s10 + $0x8] sm:$0xff]
    %v3905 = vld [vmem:[%s10 + $0x10] sm:$0xff]
    %v3906 = vld [vmem:[%s10 + $0x18] sm:$0xff]
    %v3907 = vld [vmem:[%s10 + $0x20] sm:$0xff]
    %v3908 = vld [vmem:[%s10 + $0x28] sm:$0xff]
    %v3909 = vld [vmem:[%s10 + $0x30] sm:$0xff]
    %v3910 = vld [vmem:[%s10 + $0x38] sm:$0xff]
    %v3911 = vld [vmem:[%s10 + $0x40] sm:$0xff]
    %v3912 = vld [vmem:[%s10 + $0x48] sm:$0xff]
    %v3913 = vld [vmem:[%s10 + $0x50] sm:$0xff]
    %v3914 = vld [vmem:[%s10 + $0x58] sm:$0xff]
    %v3915 = vld [vmem:[%s10 + $0x60] sm:$0xff]
    %v3916 = vld [vmem:[%s10 + $0x68] sm:$0xff]
    %v3917 = vld [vmem:[%s10 + $0x70] sm:$0xff]
    %v3918 = vld [vmem:[%s10 + $0x78] sm:$0xff]
    %v3919 = vld [vmem:[%s10 + $0x80] sm:$0xff]
    %v3920 = vld [vmem:[%s10 + $0x88] sm:$0xff]
    %v3921 = vld [vmem:[%s10 + $0x90] sm:$0xff]
    %v3922 = vld [vmem:[%s10 + $0x98] sm:$0xff]
    %v3923 = vld [vmem:[%s10 + $0xa0] sm:$0xff]
    %v3924 = vld [vmem:[%s10 + $0xa8] sm:$0xff]
    %v3925 = vld [vmem:[%s10 + $0xb0] sm:$0xff]
    %v3926 = vld [vmem:[%s10 + $0xb8] sm:$0xff]
    %v3927 = vld [vmem:[%s10 + $0xc0] sm:$0xff]
    %v3928 = vld [vmem:[%s10 + $0xc8] sm:$0xff]
    %v3929 = vld [vmem:[%s10 + $0xd0] sm:$0xff]
    %v3930 = vld [vmem:[%s10 + $0xd8] sm:$0xff]
    %v3931 = vld [vmem:[%s10 + $0xe0] sm:$0xff]
    %v3932 = vld [vmem:[%s10 + $0xe8] sm:$0xff]
    %v3933 = vld [vmem:[%s10 + $0xf0] sm:$0xff]
    %v3934 = vld [vmem:[%s10 + $0xf8] sm:$0xff]
    %v3935 = vld [vmem:[%s10 + $0x100] sm:$0xff]
    %v3936 = vld [vmem:[%s10 + $0x108] sm:$0xff]
    %v3937 = vld [vmem:[%s10 + $0x110] sm:$0xff]
    %v3938 = vld [vmem:[%s10 + $0x118] sm:$0xff]
    %v3939 = vld [vmem:[%s10 + $0x120] sm:$0xff]
    %v3940 = vld [vmem:[%s10 + $0x128] sm:$0xff]
    %v3941 = vld [vmem:[%s10 + $0x130] sm:$0xff]
    %v3942 = vld [vmem:[%s10 + $0x138] sm:$0xff]
    %v3943 = vld [vmem:[%s10 + $0x140] sm:$0xff]
    %v3944 = vld [vmem:[%s10 + $0x148] sm:$0xff]
    %v3945 = vld [vmem:[%s10 + $0x150] sm:$0xff]
    %v3946 = vld [vmem:[%s10 + $0x158] sm:$0xff]
    %v3947 = vld [vmem:[%s10 + $0x160] sm:$0xff]
    %v3948 = vld [vmem:[%s10 + $0x168] sm:$0xff]
    %v3949 = vld [vmem:[%s10 + $0x170] sm:$0xff]
    %v3950 = vld [vmem:[%s10 + $0x178] sm:$0xff]
    %v3951 = vld [vmem:[%s10 + $0x180] sm:$0xff]
    %v3952 = vld [vmem:[%s10 + $0x188] sm:$0xff]
    %v3953 = vld [vmem:[%s10 + $0x190] sm:$0xff]
    %v3954 = vld [vmem:[%s10 + $0x198] sm:$0xff]
    %v3955 = vld [vmem:[%s10 + $0x1a0] sm:$0xff]
    %v3956 = vld [vmem:[%s10 + $0x1a8] sm:$0xff]
    %v3957 = vld [vmem:[%s10 + $0x1b0] sm:$0xff]
    %v3958 = vld [vmem:[%s10 + $0x1b8] sm:$0xff]
    %v3959 = vld [vmem:[%s10 + $0x1c0] sm:$0xff]
    %v3960 = vld [vmem:[%s10 + $0x1c8] sm:$0xff]
    %v3961 = vld [vmem:[%s10 + $0x1d0] sm:$0xff]
    %v3962 = vld [vmem:[%s10 + $0x1d8] sm:$0xff]
    %v3963 = vld [vmem:[%s10 + $0x1e0] sm:$0xff]
    %v3964 = vld [vmem:[%s10 + $0x1e8] sm:$0xff]
    %v3965 = vld [vmem:[%s10 + $0x1f0] sm:$0xff]
    %v3966 = vld [vmem:[%s10 + $0x1f8] sm:$0xff]
    %v3967 = vld [vmem:[%s11] sm:$0x1]
    %v3969 = vlaneseq
    %v3970 = vshrl.u32 %v3969, 7
    %v3971 = vsub.s32 0, %v3970
    %v3972 = vrot.slane %v3967, %v3971
    %3974 = vmatprep.subr.mxu0 0.0
    %3975 = vmatpush1.msra.mxu0 %v3903
    %3976 = vmatprep.subr.mxu0 0.0
    %3977 = vmatpush1.msra.mxu0 %v3904
    %3978 = vmatprep.subr.mxu0 0.0
    %3979 = vmatpush1.msra.mxu0 %v3905
    %3980 = vmatprep.subr.mxu0 0.0
    %3981 = vmatpush1.msra.mxu0 %v3906
    %3982 = vmatprep.subr.mxu0 0.0
    %3983 = vmatpush1.msra.mxu0 %v3907
    %3984 = vmatprep.subr.mxu0 0.0
    %3985 = vmatpush1.msra.mxu0 %v3908
    %3986 = vmatprep.subr.mxu0 0.0
    %3987 = vmatpush1.msra.mxu0 %v3909
    %3988 = vmatprep.subr.mxu0 0.0
    %3989 = vmatpush1.msra.mxu0 %v3910
    %3990 = vmatprep.subr.mxu0 0.0
    %3991 = vmatpush1.msra.mxu0 %v3911
    %3992 = vmatprep.subr.mxu0 0.0
    %3993 = vmatpush1.msra.mxu0 %v3912
    %3994 = vmatprep.subr.mxu0 0.0
    %3995 = vmatpush1.msra.mxu0 %v3913
    %3996 = vmatprep.subr.mxu0 0.0
    %3997 = vmatpush1.msra.mxu0 %v3914
    %3998 = vmatprep.subr.mxu0 0.0
    %3999 = vmatpush1.msra.mxu0 %v3915
    %4000 = vmatprep.subr.mxu0 0.0
    %4001 = vmatpush1.msra.mxu0 %v3916
    %4002 = vmatprep.subr.mxu0 0.0
    %4003 = vmatpush1.msra.mxu0 %v3917
    %4004 = vmatprep.subr.mxu0 0.0
    %4005 = vmatpush1.msra.mxu0 %v3918
    %4006 = vmatprep.subr.mxu0 0.0
    %4007 = vmatpush1.msra.mxu0 %v3919
    %4008 = vmatprep.subr.mxu0 0.0
    %4009 = vmatpush1.msra.mxu0 %v3920
    %4010 = vmatprep.subr.mxu0 0.0
    %4011 = vmatpush1.msra.mxu0 %v3921
    %4012 = vmatprep.subr.mxu0 0.0
    %4013 = vmatpush1.msra.mxu0 %v3922
    %4014 = vmatprep.subr.mxu0 0.0
    %4015 = vmatpush1.msra.mxu0 %v3923
    %4016 = vmatprep.subr.mxu0 0.0
    %4017 = vmatpush1.msra.mxu0 %v3924
    %4018 = vmatprep.subr.mxu0 0.0
    %4019 = vmatpush1.msra.mxu0 %v3925
    %4020 = vmatprep.subr.mxu0 0.0
    %4021 = vmatpush1.msra.mxu0 %v3926
    %4022 = vmatprep.subr.mxu0 0.0
    %4023 = vmatpush1.msra.mxu0 %v3927
    %4024 = vmatprep.subr.mxu0 0.0
    %4025 = vmatpush1.msra.mxu0 %v3928
    %4026 = vmatprep.subr.mxu0 0.0
    %4027 = vmatpush1.msra.mxu0 %v3929
    %4028 = vmatprep.subr.mxu0 0.0
    %4029 = vmatpush1.msra.mxu0 %v3930
    %4030 = vmatprep.subr.mxu0 0.0
    %4031 = vmatpush1.msra.mxu0 %v3931
    %4032 = vmatprep.subr.mxu0 0.0
    %4033 = vmatpush1.msra.mxu0 %v3932
    %4034 = vmatprep.subr.mxu0 0.0
    %4035 = vmatpush1.msra.mxu0 %v3933
    %4036 = vmatprep.subr.mxu0 0.0
    %4037 = vmatpush1.msra.mxu0 %v3934
    %4038 = vmatprep.mubr.f32.mxu0 %v3900
    %4039 = vmatmul.mubr.f32.gmra.mrb[0].mxu0 %v3899
    %v4040 = vpop.f32.mrb[0].mxu0
    %v4041 = vadd.f32 %v3972, %v4040
    %v4042 = vpop.f32.mrb[0].mxu0
    %4043 = vdwg.mxu0
    %4044 = vmatprep.subr.mxu0 0.0
    %4045 = vmatpush1.msra.mxu0 %v3935
    %4046 = vmatprep.subr.mxu0 0.0
    %4047 = vmatpush1.msra.mxu0 %v3936
    %4048 = vmatprep.subr.mxu0 0.0
    %4049 = vmatpush1.msra.mxu0 %v3937
    %4050 = vmatprep.subr.mxu0 0.0
    %4051 = vmatpush1.msra.mxu0 %v3938
    %4052 = vmatprep.subr.mxu0 0.0
    %4053 = vmatpush1.msra.mxu0 %v3939
    %4054 = vmatprep.subr.mxu0 0.0
    %4055 = vmatpush1.msra.mxu0 %v3940
    %4056 = vmatprep.subr.mxu0 0.0
    %4057 = vmatpush1.msra.mxu0 %v3941
    %4058 = vmatprep.subr.mxu0 0.0
    %4059 = vmatpush1.msra.mxu0 %v3942
    %4060 = vmatprep.subr.mxu0 0.0
    %4061 = vmatpush1.msra.mxu0 %v3943
    %4062 = vmatprep.subr.mxu0 0.0
    %4063 = vmatpush1.msra.mxu0 %v3944
    %4064 = vmatprep.subr.mxu0 0.0
    %4065 = vmatpush1.msra.mxu0 %v3945
    %4066 = vmatprep.subr.mxu0 0.0
    %4067 = vmatpush1.msra.mxu0 %v3946
    %4068 = vmatprep.subr.mxu0 0.0
    %4069 = vmatpush1.msra.mxu0 %v3947
    %4070 = vmatprep.subr.mxu0 0.0
    %4071 = vmatpush1.msra.mxu0 %v3948
    %4072 = vmatprep.subr.mxu0 0.0
    %4073 = vmatpush1.msra.mxu0 %v3949
    %4074 = vmatprep.subr.mxu0 0.0
    %4075 = vmatpush1.msra.mxu0 %v3950
    %4076 = vmatprep.subr.mxu0 0.0
    %4077 = vmatpush1.msra.mxu0 %v3951
    %4078 = vmatprep.subr.mxu0 0.0
    %4079 = vmatpush1.msra.mxu0 %v3952
    %4080 = vmatprep.subr.mxu0 0.0
    %4081 = vmatpush1.msra.mxu0 %v3953
    %4082 = vmatprep.subr.mxu0 0.0
    %4083 = vmatpush1.msra.mxu0 %v3954
    %4084 = vmatprep.subr.mxu0 0.0
    %4085 = vmatpush1.msra.mxu0 %v3955
    %4086 = vmatprep.subr.mxu0 0.0
    %4087 = vmatpush1.msra.mxu0 %v3956
    %4088 = vmatprep.subr.mxu0 0.0
    %4089 = vmatpush1.msra.mxu0 %v3957
    %4090 = vmatprep.subr.mxu0 0.0
    %4091 = vmatpush1.msra.mxu0 %v3958
    %4092 = vmatprep.subr.mxu0 0.0
    %4093 = vmatpush1.msra.mxu0 %v3959
    %4094 = vmatprep.subr.mxu0 0.0
    %4095 = vmatpush1.msra.mxu0 %v3960
    %4096 = vmatprep.subr.mxu0 0.0
    %4097 = vmatpush1.msra.mxu0 %v3961
    %4098 = vmatprep.subr.mxu0 0.0
    %4099 = vmatpush1.msra.mxu0 %v3962
    %4100 = vmatprep.subr.mxu0 0.0
    %4101 = vmatpush1.msra.mxu0 %v3963
    %4102 = vmatprep.subr.mxu0 0.0
    %4103 = vmatpush1.msra.mxu0 %v3964
    %4104 = vmatprep.subr.mxu0 0.0
    %4105 = vmatpush1.msra.mxu0 %v3965
    %4106 = vmatprep.subr.mxu0 0.0
    %4107 = vmatpush1.msra.mxu0 %v3966
    %4108 = vmatprep.mubr.f32.mxu0 %v3902
    %4109 = vmatmul.mubr.f32.gmra.mrb[0].mxu0 %v3901
    %v4110 = vpop.f32.mrb[0].mxu0
    %v4111 = vadd.f32 %v4041, %v4110
    %v4112 = vpop.f32.mrb[0].mxu0
    %4113 = vdwg.mxu0
    %v4114 = vld [vmem:[%s1] sm:$0xff]
    %v4115 = vld [vmem:[%s1 + $0x8] sm:$0xff]
    %v4116 = vld [vmem:[%s1 + $0x10] sm:$0xf]
    %v4117 = vld [vmem:[%s12] sm:$0xff]
    %v4118 = vld [vmem:[%s12 + $0x8] sm:$0x3f]
    %v4119 = vld [vmem:[%s13] sm:$0x1]
    %v4121 = vlaneseq
    %v4122 = vshrl.u32 %v4121, 7
    %v4123 = vsub.s32 0, %v4122
    %v4124 = vrot.slane %v4119, %v4123
    %vm4126 = vcmask 113664
    %v4128 = vsel %vm4126, %v4114, 0
    %v4131 = vsel %vm4126, %v4115, 0
    %v4134 = vsel %vm4126, %v4116, 0
    %v4137 = vsel %vm207, %v4118, 0
    %4139 = vmatprep.subr.mxu0 0.0
    %4140 = vmatpush1.msra.mxu0 %v4117
    %4141 = vmatprep.subr.mxu0 0.0
    %4142 = vmatpush1.msra.mxu0 %v4137
    %4143 = vmatprep.subr.mxu0 0.0
    %4144 = vmatpush1.msra.mxu0 0.0
    %4145 = vmatprep.subr.mxu0 0.0
    %4146 = vmatpush1.msra.mxu0 0.0
    %4147 = vmatprep.subr.mxu0 0.0
    %4148 = vmatpush1.msra.mxu0 0.0
    %4149 = vmatprep.subr.mxu0 0.0
    %4150 = vmatpush1.msra.mxu0 0.0
    %4151 = vmatprep.subr.mxu0 0.0
    %4152 = vmatpush1.msra.mxu0 0.0
    %4153 = vmatprep.subr.mxu0 0.0
    %4154 = vmatpush1.msra.mxu0 0.0
    %4155 = vmatprep.subr.mxu0 0.0
    %4156 = vmatpush1.msra.mxu0 0.0
    %4157 = vmatprep.subr.mxu0 0.0
    %4158 = vmatpush1.msra.mxu0 0.0
    %4159 = vmatprep.subr.mxu0 0.0
    %4160 = vmatpush1.msra.mxu0 0.0
    %4161 = vmatprep.subr.mxu0 0.0
    %4162 = vmatpush1.msra.mxu0 0.0
    %4163 = vmatprep.subr.mxu0 0.0
    %4164 = vmatpush1.msra.mxu0 0.0
    %4165 = vmatprep.subr.mxu0 0.0
    %4166 = vmatpush1.msra.mxu0 0.0
    %4167 = vmatprep.subr.mxu0 0.0
    %4168 = vmatpush1.msra.mxu0 0.0
    %4169 = vmatprep.subr.mxu0 0.0
    %4170 = vmatpush1.msra.mxu0 0.0
    %4171 = vmatprep.subr.mxu0 0.0
    %4172 = vmatpush1.msra.mxu0 0.0
    %4173 = vmatprep.subr.mxu0 0.0
    %4174 = vmatpush1.msra.mxu0 0.0
    %4175 = vmatprep.subr.mxu0 0.0
    %4176 = vmatpush1.msra.mxu0 0.0
    %4177 = vmatprep.subr.mxu0 0.0
    %4178 = vmatpush1.msra.mxu0 0.0
    %4179 = vmatprep.subr.mxu0 0.0
    %4180 = vmatpush1.msra.mxu0 0.0
    %4181 = vmatprep.subr.mxu0 0.0
    %4182 = vmatpush1.msra.mxu0 0.0
    %4183 = vmatprep.subr.mxu0 0.0
    %4184 = vmatpush1.msra.mxu0 0.0
    %4185 = vmatprep.subr.mxu0 0.0
    %4186 = vmatpush1.msra.mxu0 0.0
    %4187 = vmatprep.subr.mxu0 0.0
    %4188 = vmatpush1.msra.mxu0 0.0
    %4189 = vmatprep.subr.mxu0 0.0
    %4190 = vmatpush1.msra.mxu0 0.0
    %4191 = vmatprep.subr.mxu0 0.0
    %4192 = vmatpush1.msra.mxu0 0.0
    %4193 = vmatprep.subr.mxu0 0.0
    %4194 = vmatpush1.msra.mxu0 0.0
    %4195 = vmatprep.subr.mxu0 0.0
    %4196 = vmatpush1.msra.mxu0 0.0
    %4197 = vmatprep.subr.mxu0 0.0
    %4198 = vmatpush1.msra.mxu0 0.0
    %4199 = vmatprep.subr.mxu0 0.0
    %4200 = vmatpush1.msra.mxu0 0.0
    %4201 = vmatprep.subr.mxu0 0.0
    %4202 = vmatpush1.msra.mxu0 0.0
    %4203 = vmatprep.mubr.f32.mxu0 0.0
    %4204 = vmatmul.mubr.f32.gmra.mrb[0].mxu0 %v4128
    %v4205 = vpop.f32.mrb[0].mxu0
    %v4206 = vadd.f32 %v4124, %v4205
    %v4207 = vpop.f32.mrb[0].mxu0
    %4208 = vmatprep.mubr.f32.mxu0 0.0
    %4209 = vmatmul.mubr.f32.gmra.mrb[0].mxu0 %v4131
    %v4210 = vpop.f32.mrb[0].mxu0
    %v4211 = vadd.f32 %v4124, %v4210
    %v4212 = vpop.f32.mrb[0].mxu0
    %4213 = vmatprep.mubr.f32.mxu0 0.0
    %4214 = vmatmul.mubr.f32.gmra.mrb[0].mxu0 %v4134
    %v4215 = vpop.f32.mrb[0].mxu0
    %v4216 = vadd.f32 %v4124, %v4215
    %v4217 = vpop.f32.mrb[0].mxu0
    %4218 = vdwg.mxu0
    %v4219 = vld [vmem:[%s14] sm:$0xff]
    %v4220 = vld [vmem:[%s14 + $0x8] sm:$0xff]
    %v4221 = vld [vmem:[%s14 + $0x10] sm:$0xff]
    %v4222 = vld [vmem:[%s14 + $0x18] sm:$0xff]
    %v4223 = vld [vmem:[%s15] sm:$0x1]
    %v4225 = vlaneseq
    %v4226 = vshrl.u32 %v4225, 7
    %v4227 = vsub.s32 0, %v4226
    %v4228 = vrot.slane %v4223, %v4227
    %v4231 = vsel %vm2903, %v4206, 0
    %v4234 = vsel %vm2903, %v4211, 0
    %v4237 = vsel %vm2903, %v4216, 0
    %4239 = vmatprep.subr.mxu0 0.0
    %4240 = vmatpush1.msra.mxu0 %v4219
    %4241 = vmatprep.subr.mxu0 0.0
    %4242 = vmatpush1.msra.mxu0 %v4220
    %4243 = vmatprep.subr.mxu0 0.0
    %4244 = vmatpush1.msra.mxu0 %v4221
    %4245 = vmatprep.subr.mxu0 0.0
    %4246 = vmatpush1.msra.mxu0 %v4222
    %4247 = vmatprep.subr.mxu0 0.0
    %4248 = vmatpush1.msra.mxu0 0.0
    %4249 = vmatprep.subr.mxu0 0.0
    %4250 = vmatpush1.msra.mxu0 0.0
    %4251 = vmatprep.subr.mxu0 0.0
    %4252 = vmatpush1.msra.mxu0 0.0
    %4253 = vmatprep.subr.mxu0 0.0
    %4254 = vmatpush1.msra.mxu0 0.0
    %4255 = vmatprep.subr.mxu0 0.0
    %4256 = vmatpush1.msra.mxu0 0.0
    %4257 = vmatprep.subr.mxu0 0.0
    %4258 = vmatpush1.msra.mxu0 0.0
    %4259 = vmatprep.subr.mxu0 0.0
    %4260 = vmatpush1.msra.mxu0 0.0
    %4261 = vmatprep.subr.mxu0 0.0
    %4262 = vmatpush1.msra.mxu0 0.0
    %4263 = vmatprep.subr.mxu0 0.0
    %4264 = vmatpush1.msra.mxu0 0.0
    %4265 = vmatprep.subr.mxu0 0.0
    %4266 = vmatpush1.msra.mxu0 0.0
    %4267 = vmatprep.subr.mxu0 0.0
    %4268 = vmatpush1.msra.mxu0 0.0
    %4269 = vmatprep.subr.mxu0 0.0
    %4270 = vmatpush1.msra.mxu0 0.0
    %4271 = vmatprep.subr.mxu0 0.0
    %4272 = vmatpush1.msra.mxu0 0.0
    %4273 = vmatprep.subr.mxu0 0.0
    %4274 = vmatpush1.msra.mxu0 0.0
    %4275 = vmatprep.subr.mxu0 0.0
    %4276 = vmatpush1.msra.mxu0 0.0
    %4277 = vmatprep.subr.mxu0 0.0
    %4278 = vmatpush1.msra.mxu0 0.0
    %4279 = vmatprep.subr.mxu0 0.0
    %4280 = vmatpush1.msra.mxu0 0.0
    %4281 = vmatprep.subr.mxu0 0.0
    %4282 = vmatpush1.msra.mxu0 0.0
    %4283 = vmatprep.subr.mxu0 0.0
    %4284 = vmatpush1.msra.mxu0 0.0
    %4285 = vmatprep.subr.mxu0 0.0
    %4286 = vmatpush1.msra.mxu0 0.0
    %4287 = vmatprep.subr.mxu0 0.0
    %4288 = vmatpush1.msra.mxu0 0.0
    %4289 = vmatprep.subr.mxu0 0.0
    %4290 = vmatpush1.msra.mxu0 0.0
    %4291 = vmatprep.subr.mxu0 0.0
    %4292 = vmatpush1.msra.mxu0 0.0
    %4293 = vmatprep.subr.mxu0 0.0
    %4294 = vmatpush1.msra.mxu0 0.0
    %4295 = vmatprep.subr.mxu0 0.0
    %4296 = vmatpush1.msra.mxu0 0.0
    %4297 = vmatprep.subr.mxu0 0.0
    %4298 = vmatpush1.msra.mxu0 0.0
    %4299 = vmatprep.subr.mxu0 0.0
    %4300 = vmatpush1.msra.mxu0 0.0
    %4301 = vmatprep.subr.mxu0 0.0
    %4302 = vmatpush1.msra.mxu0 0.0
    %4303 = vmatprep.mubr.f32.mxu0 0.0
    %4304 = vmatmul.mubr.f32.gmra.mrb[0].mxu0 %v4231
    %v4305 = vpop.f32.mrb[0].mxu0
    %v4306 = vadd.f32 %v4228, %v4305
    %v4307 = vpop.f32.mrb[0].mxu0
    %4308 = vmatprep.mubr.f32.mxu0 0.0
    %4309 = vmatmul.mubr.f32.gmra.mrb[0].mxu0 %v4234
    %v4310 = vpop.f32.mrb[0].mxu0
    %v4311 = vadd.f32 %v4228, %v4310
    %v4312 = vpop.f32.mrb[0].mxu0
    %4313 = vmatprep.mubr.f32.mxu0 0.0
    %4314 = vmatmul.mubr.f32.gmra.mrb[0].mxu0 %v4237
    %v4315 = vpop.f32.mrb[0].mxu0
    %v4316 = vadd.f32 %v4228, %v4315
    %v4317 = vpop.f32.mrb[0].mxu0
    %4318 = vdwg.mxu0
    %v4319 = vld [vmem:[%s16] sm:$0xff]
    %v4320 = vld [vmem:[%s16 + $0x8] sm:$0xff]
    %v4321 = vld [vmem:[%s16 + $0x10] sm:$0xff]
    %v4322 = vld [vmem:[%s16 + $0x18] sm:$0xff]
    %v4324 = vsel %vm2903, 0.0, 0
    %4326 = vmatprep.subr.mxu0 0.0
    %4327 = vmatpush1.msra.mxu0 %v4319
    %4328 = vmatprep.subr.mxu0 0.0
    %4329 = vmatpush1.msra.mxu0 %v4320
    %4330 = vmatprep.subr.mxu0 0.0
    %4331 = vmatpush1.msra.mxu0 %v4321
    %4332 = vmatprep.subr.mxu0 0.0
    %4333 = vmatpush1.msra.mxu0 %v4322
    %4334 = vmatprep.subr.mxu0 0.0
    %4335 = vmatpush1.msra.mxu0 0.0
    %4336 = vmatprep.subr.mxu0 0.0
    %4337 = vmatpush1.msra.mxu0 0.0
    %4338 = vmatprep.subr.mxu0 0.0
    %4339 = vmatpush1.msra.mxu0 0.0
    %4340 = vmatprep.subr.mxu0 0.0
    %4341 = vmatpush1.msra.mxu0 0.0
    %4342 = vmatprep.subr.mxu0 0.0
    %4343 = vmatpush1.msra.mxu0 0.0
    %4344 = vmatprep.subr.mxu0 0.0
    %4345 = vmatpush1.msra.mxu0 0.0
    %4346 = vmatprep.subr.mxu0 0.0
    %4347 = vmatpush1.msra.mxu0 0.0
    %4348 = vmatprep.subr.mxu0 0.0
    %4349 = vmatpush1.msra.mxu0 0.0
    %4350 = vmatprep.subr.mxu0 0.0
    %4351 = vmatpush1.msra.mxu0 0.0
    %4352 = vmatprep.subr.mxu0 0.0
    %4353 = vmatpush1.msra.mxu0 0.0
    %4354 = vmatprep.subr.mxu0 0.0
    %4355 = vmatpush1.msra.mxu0 0.0
    %4356 = vmatprep.subr.mxu0 0.0
    %4357 = vmatpush1.msra.mxu0 0.0
    %4358 = vmatprep.subr.mxu0 0.0
    %4359 = vmatpush1.msra.mxu0 0.0
    %4360 = vmatprep.subr.mxu0 0.0
    %4361 = vmatpush1.msra.mxu0 0.0
    %4362 = vmatprep.subr.mxu0 0.0
    %4363 = vmatpush1.msra.mxu0 0.0
    %4364 = vmatprep.subr.mxu0 0.0
    %4365 = vmatpush1.msra.mxu0 0.0
    %4366 = vmatprep.subr.mxu0 0.0
    %4367 = vmatpush1.msra.mxu0 0.0
    %4368 = vmatprep.subr.mxu0 0.0
    %4369 = vmatpush1.msra.mxu0 0.0
    %4370 = vmatprep.subr.mxu0 0.0
    %4371 = vmatpush1.msra.mxu0 0.0
    %4372 = vmatprep.subr.mxu0 0.0
    %4373 = vmatpush1.msra.mxu0 0.0
    %4374 = vmatprep.subr.mxu0 0.0
    %4375 = vmatpush1.msra.mxu0 0.0
    %4376 = vmatprep.subr.mxu0 0.0
    %4377 = vmatpush1.msra.mxu0 0.0
    %4378 = vmatprep.subr.mxu0 0.0
    %4379 = vmatpush1.msra.mxu0 0.0
    %4380 = vmatprep.subr.mxu0 0.0
    %4381 = vmatpush1.msra.mxu0 0.0
    %4382 = vmatprep.subr.mxu0 0.0
    %4383 = vmatpush1.msra.mxu0 0.0
    %4384 = vmatprep.subr.mxu0 0.0
    %4385 = vmatpush1.msra.mxu0 0.0
    %4386 = vmatprep.subr.mxu0 0.0
    %4387 = vmatpush1.msra.mxu0 0.0
    %4388 = vmatprep.subr.mxu0 0.0
    %4389 = vmatpush1.msra.mxu0 0.0
    %4390 = vmatprep.mubr.f32.mxu0 0.0
    %4391 = vmatmul.mubr.f32.gmra.mrb[0].mxu0 %v4324
    %v4392 = vpop.f32.mrb[0].mxu0
    %v4393 = vadd.f32 0.0, %v4392
    %v4394 = vpop.f32.mrb[0].mxu0
    %4395 = vdwg.mxu0
    %v4396 = vadd.f32 %v4306, %v4393
    %v4397 = vxor.u32 %v4396, 2147483648
    %v4398 = vmul.f32 %v4397, 1.442695
    %v4399 = vpow.pop %v4398
    %v4400 = vadd.f32 %v4399, 1.0
    %v4401 = vrcp.pop %v4400
    %v4402 = vmul.f32 1.0, %v4401
    %v4403 = vtanh.pop %v4396
    %v4404 = vmul.f32 %v4402, 0.0
    %4406 = vrot.lane.b32.xlu0 %v4403, 64
    %v4407 = vpop.permute.xlu0 %4406
    %v4409 = vmul.f32 %v4402, %v4407
    %4411 = vrot.lane.b32.xlu0 %v4409, 32
    %v4412 = vpop.permute.xlu0 %4411
    %v4414 = vadd.f32 %v4404, %v4412
    %v4415 = vtanh.pop %v4414
    %4417 = vrot.lane.b32.xlu0 %v4415, 64
    %v4418 = vpop.permute.xlu0 %4417
    %v4420 = vmul.f32 %v4402, %v4418
    %4422 = vrot.lane.b32.xlu0 %v4420, 32
    %v4423 = vpop.permute.xlu0 %4422
    %v4424 = vsel %vm2903, %v4423, 0
    %4426 = vmatprep.subr.mxu0 0.0
    %4427 = vmatpush1.msra.mxu0 %v4319
    %4428 = vmatprep.subr.mxu0 0.0
    %4429 = vmatpush1.msra.mxu0 %v4320
    %4430 = vmatprep.subr.mxu0 0.0
    %4431 = vmatpush1.msra.mxu0 %v4321
    %4432 = vmatprep.subr.mxu0 0.0
    %4433 = vmatpush1.msra.mxu0 %v4322
    %4434 = vmatprep.subr.mxu0 0.0
    %4435 = vmatpush1.msra.mxu0 0.0
    %4436 = vmatprep.subr.mxu0 0.0
    %4437 = vmatpush1.msra.mxu0 0.0
    %4438 = vmatprep.subr.mxu0 0.0
    %4439 = vmatpush1.msra.mxu0 0.0
    %4440 = vmatprep.subr.mxu0 0.0
    %4441 = vmatpush1.msra.mxu0 0.0
    %4442 = vmatprep.subr.mxu0 0.0
    %4443 = vmatpush1.msra.mxu0 0.0
    %4444 = vmatprep.subr.mxu0 0.0
    %4445 = vmatpush1.msra.mxu0 0.0
    %4446 = vmatprep.subr.mxu0 0.0
    %4447 = vmatpush1.msra.mxu0 0.0
    %4448 = vmatprep.subr.mxu0 0.0
    %4449 = vmatpush1.msra.mxu0 0.0
    %4450 = vmatprep.subr.mxu0 0.0
    %4451 = vmatpush1.msra.mxu0 0.0
    %4452 = vmatprep.subr.mxu0 0.0
    %4453 = vmatpush1.msra.mxu0 0.0
    %4454 = vmatprep.subr.mxu0 0.0
    %4455 = vmatpush1.msra.mxu0 0.0
    %4456 = vmatprep.subr.mxu0 0.0
    %4457 = vmatpush1.msra.mxu0 0.0
    %4458 = vmatprep.subr.mxu0 0.0
    %4459 = vmatpush1.msra.mxu0 0.0
    %4460 = vmatprep.subr.mxu0 0.0
    %4461 = vmatpush1.msra.mxu0 0.0
    %4462 = vmatprep.subr.mxu0 0.0
    %4463 = vmatpush1.msra.mxu0 0.0
    %4464 = vmatprep.subr.mxu0 0.0
    %4465 = vmatpush1.msra.mxu0 0.0
    %4466 = vmatprep.subr.mxu0 0.0
    %4467 = vmatpush1.msra.mxu0 0.0
    %4468 = vmatprep.subr.mxu0 0.0
    %4469 = vmatpush1.msra.mxu0 0.0
    %4470 = vmatprep.subr.mxu0 0.0
    %4471 = vmatpush1.msra.mxu0 0.0
    %4472 = vmatprep.subr.mxu0 0.0
    %4473 = vmatpush1.msra.mxu0 0.0
    %4474 = vmatprep.subr.mxu0 0.0
    %4475 = vmatpush1.msra.mxu0 0.0
    %4476 = vmatprep.subr.mxu0 0.0
    %4477 = vmatpush1.msra.mxu0 0.0
    %4478 = vmatprep.subr.mxu0 0.0
    %4479 = vmatpush1.msra.mxu0 0.0
    %4480 = vmatprep.subr.mxu0 0.0
    %4481 = vmatpush1.msra.mxu0 0.0
    %4482 = vmatprep.subr.mxu0 0.0
    %4483 = vmatpush1.msra.mxu0 0.0
    %4484 = vmatprep.subr.mxu0 0.0
    %4485 = vmatpush1.msra.mxu0 0.0
    %4486 = vmatprep.subr.mxu0 0.0
    %4487 = vmatpush1.msra.mxu0 0.0
    %4488 = vmatprep.subr.mxu0 0.0
    %4489 = vmatpush1.msra.mxu0 0.0
    %4490 = vmatprep.mubr.f32.mxu0 0.0
    %4491 = vmatmul.mubr.f32.gmra.mrb[0].mxu0 %v4424
    %v4492 = vpop.f32.mrb[0].mxu0
    %v4493 = vadd.f32 0.0, %v4492
    %v4494 = vpop.f32.mrb[0].mxu0
    %4495 = vdwg.mxu0
    %v4497 = vrot.slane %v4493, 4
    %v4499 = vadd.f32 %v4306, %v4497
    %v4500 = vxor.u32 %v4499, 2147483648
    %v4501 = vmul.f32 %v4500, 1.442695
    %v4502 = vpow.pop %v4501
    %v4503 = vadd.f32 %v4502, 1.0
    %v4504 = vrcp.pop %v4503
    %v4505 = vmul.f32 1.0, %v4504
    %v4506 = vtanh.pop %v4499
    %v4508 = vrot.slane %v4414, 4
    %v4510 = vmul.f32 %v4505, %v4508
    %4512 = vrot.lane.b32.xlu0 %v4506, 64
    %v4513 = vpop.permute.xlu0 %4512
    %v4515 = vmul.f32 %v4505, %v4513
    %4517 = vrot.lane.b32.xlu0 %v4515, 32
    %v4518 = vpop.permute.xlu0 %4517
    %v4520 = vadd.f32 %v4510, %v4518
    %v4521 = vtanh.pop %v4520
    %4523 = vrot.lane.b32.xlu0 %v4521, 64
    %v4524 = vpop.permute.xlu0 %4523
    %v4526 = vmul.f32 %v4505, %v4524
    %v4528 = vrot.slane %v4526, 4
    %4529 = vrot.lane.b32.xlu0 %v4528, 32
    %v4530 = vpop.permute.xlu0 %4529
    %v4531 = vsel %vm2903, %v4530, 0
    %4533 = vmatprep.subr.mxu0 0.0
    %4534 = vmatpush1.msra.mxu0 %v4319
    %4535 = vmatprep.subr.mxu0 0.0
    %4536 = vmatpush1.msra.mxu0 %v4320
    %4537 = vmatprep.subr.mxu0 0.0
    %4538 = vmatpush1.msra.mxu0 %v4321
    %4539 = vmatprep.subr.mxu0 0.0
    %4540 = vmatpush1.msra.mxu0 %v4322
    %4541 = vmatprep.subr.mxu0 0.0
    %4542 = vmatpush1.msra.mxu0 0.0
    %4543 = vmatprep.subr.mxu0 0.0
    %4544 = vmatpush1.msra.mxu0 0.0
    %4545 = vmatprep.subr.mxu0 0.0
    %4546 = vmatpush1.msra.mxu0 0.0
    %4547 = vmatprep.subr.mxu0 0.0
    %4548 = vmatpush1.msra.mxu0 0.0
    %4549 = vmatprep.subr.mxu0 0.0
    %4550 = vmatpush1.msra.mxu0 0.0
    %4551 = vmatprep.subr.mxu0 0.0
    %4552 = vmatpush1.msra.mxu0 0.0
    %4553 = vmatprep.subr.mxu0 0.0
    %4554 = vmatpush1.msra.mxu0 0.0
    %4555 = vmatprep.subr.mxu0 0.0
    %4556 = vmatpush1.msra.mxu0 0.0
    %4557 = vmatprep.subr.mxu0 0.0
    %4558 = vmatpush1.msra.mxu0 0.0
    %4559 = vmatprep.subr.mxu0 0.0
    %4560 = vmatpush1.msra.mxu0 0.0
    %4561 = vmatprep.subr.mxu0 0.0
    %4562 = vmatpush1.msra.mxu0 0.0
    %4563 = vmatprep.subr.mxu0 0.0
    %4564 = vmatpush1.msra.mxu0 0.0
    %4565 = vmatprep.subr.mxu0 0.0
    %4566 = vmatpush1.msra.mxu0 0.0
    %4567 = vmatprep.subr.mxu0 0.0
    %4568 = vmatpush1.msra.mxu0 0.0
    %4569 = vmatprep.subr.mxu0 0.0
    %4570 = vmatpush1.msra.mxu0 0.0
    %4571 = vmatprep.subr.mxu0 0.0
    %4572 = vmatpush1.msra.mxu0 0.0
    %4573 = vmatprep.subr.mxu0 0.0
    %4574 = vmatpush1.msra.mxu0 0.0
    %4575 = vmatprep.subr.mxu0 0.0
    %4576 = vmatpush1.msra.mxu0 0.0
    %4577 = vmatprep.subr.mxu0 0.0
    %4578 = vmatpush1.msra.mxu0 0.0
    %4579 = vmatprep.subr.mxu0 0.0
    %4580 = vmatpush1.msra.mxu0 0.0
    %4581 = vmatprep.subr.mxu0 0.0
    %4582 = vmatpush1.msra.mxu0 0.0
    %4583 = vmatprep.subr.mxu0 0.0
    %4584 = vmatpush1.msra.mxu0 0.0
    %4585 = vmatprep.subr.mxu0 0.0
    %4586 = vmatpush1.msra.mxu0 0.0
    %4587 = vmatprep.subr.mxu0 0.0
    %4588 = vmatpush1.msra.mxu0 0.0
    %4589 = vmatprep.subr.mxu0 0.0
    %4590 = vmatpush1.msra.mxu0 0.0
    %4591 = vmatprep.subr.mxu0 0.0
    %4592 = vmatpush1.msra.mxu0 0.0
    %4593 = vmatprep.subr.mxu0 0.0
    %4594 = vmatpush1.msra.mxu0 0.0
    %4595 = vmatprep.subr.mxu0 0.0
    %4596 = vmatpush1.msra.mxu0 0.0
    %4597 = vmatprep.mubr.f32.mxu0 0.0
    %4598 = vmatmul.mubr.f32.gmra.mrb[0].mxu0 %v4531
    %v4599 = vpop.f32.mrb[0].mxu0
    %v4600 = vadd.f32 0.0, %v4599
    %v4601 = vpop.f32.mrb[0].mxu0
    %4602 = vdwg.mxu0
    %v4603 = vadd.f32 %v4311, %v4600
    %v4604 = vxor.u32 %v4603, 2147483648
    %v4605 = vmul.f32 %v4604, 1.442695
    %v4606 = vpow.pop %v4605
    %v4607 = vadd.f32 %v4606, 1.0
    %v4608 = vrcp.pop %v4607
    %v4609 = vmul.f32 1.0, %v4608
    %v4610 = vtanh.pop %v4603
    %v4612 = vrot.slane %v4520, 4
    %v4614 = vmul.f32 %v4609, %v4612
    %4616 = vrot.lane.b32.xlu0 %v4610, 64
    %v4617 = vpop.permute.xlu0 %4616
    %v4619 = vmul.f32 %v4609, %v4617
    %4621 = vrot.lane.b32.xlu0 %v4619, 32
    %v4622 = vpop.permute.xlu0 %4621
    %v4624 = vadd.f32 %v4614, %v4622
    %v4625 = vtanh.pop %v4624
    %4627 = vrot.lane.b32.xlu0 %v4625, 64
    %v4628 = vpop.permute.xlu0 %4627
    %v4630 = vmul.f32 %v4609, %v4628
    %4632 = vrot.lane.b32.xlu0 %v4630, 32
    %v4633 = vpop.permute.xlu0 %4632
    %v4634 = vsel %vm2903, %v4633, 0
    %4636 = vmatprep.subr.mxu0 0.0
    %4637 = vmatpush1.msra.mxu0 %v4319
    %4638 = vmatprep.subr.mxu0 0.0
    %4639 = vmatpush1.msra.mxu0 %v4320
    %4640 = vmatprep.subr.mxu0 0.0
    %4641 = vmatpush1.msra.mxu0 %v4321
    %4642 = vmatprep.subr.mxu0 0.0
    %4643 = vmatpush1.msra.mxu0 %v4322
    %4644 = vmatprep.subr.mxu0 0.0
    %4645 = vmatpush1.msra.mxu0 0.0
    %4646 = vmatprep.subr.mxu0 0.0
    %4647 = vmatpush1.msra.mxu0 0.0
    %4648 = vmatprep.subr.mxu0 0.0
    %4649 = vmatpush1.msra.mxu0 0.0
    %4650 = vmatprep.subr.mxu0 0.0
    %4651 = vmatpush1.msra.mxu0 0.0
    %4652 = vmatprep.subr.mxu0 0.0
    %4653 = vmatpush1.msra.mxu0 0.0
    %4654 = vmatprep.subr.mxu0 0.0
    %4655 = vmatpush1.msra.mxu0 0.0
    %4656 = vmatprep.subr.mxu0 0.0
    %4657 = vmatpush1.msra.mxu0 0.0
    %4658 = vmatprep.subr.mxu0 0.0
    %4659 = vmatpush1.msra.mxu0 0.0
    %4660 = vmatprep.subr.mxu0 0.0
    %4661 = vmatpush1.msra.mxu0 0.0
    %4662 = vmatprep.subr.mxu0 0.0
    %4663 = vmatpush1.msra.mxu0 0.0
    %4664 = vmatprep.subr.mxu0 0.0
    %4665 = vmatpush1.msra.mxu0 0.0
    %4666 = vmatprep.subr.mxu0 0.0
    %4667 = vmatpush1.msra.mxu0 0.0
    %4668 = vmatprep.subr.mxu0 0.0
    %4669 = vmatpush1.msra.mxu0 0.0
    %4670 = vmatprep.subr.mxu0 0.0
    %4671 = vmatpush1.msra.mxu0 0.0
    %4672 = vmatprep.subr.mxu0 0.0
    %4673 = vmatpush1.msra.mxu0 0.0
    %4674 = vmatprep.subr.mxu0 0.0
    %4675 = vmatpush1.msra.mxu0 0.0
    %4676 = vmatprep.subr.mxu0 0.0
    %4677 = vmatpush1.msra.mxu0 0.0
    %4678 = vmatprep.subr.mxu0 0.0
    %4679 = vmatpush1.msra.mxu0 0.0
    %4680 = vmatprep.subr.mxu0 0.0
    %4681 = vmatpush1.msra.mxu0 0.0
    %4682 = vmatprep.subr.mxu0 0.0
    %4683 = vmatpush1.msra.mxu0 0.0
    %4684 = vmatprep.subr.mxu0 0.0
    %4685 = vmatpush1.msra.mxu0 0.0
    %4686 = vmatprep.subr.mxu0 0.0
    %4687 = vmatpush1.msra.mxu0 0.0
    %4688 = vmatprep.subr.mxu0 0.0
    %4689 = vmatpush1.msra.mxu0 0.0
    %4690 = vmatprep.subr.mxu0 0.0
    %4691 = vmatpush1.msra.mxu0 0.0
    %4692 = vmatprep.subr.mxu0 0.0
    %4693 = vmatpush1.msra.mxu0 0.0
    %4694 = vmatprep.subr.mxu0 0.0
    %4695 = vmatpush1.msra.mxu0 0.0
    %4696 = vmatprep.subr.mxu0 0.0
    %4697 = vmatpush1.msra.mxu0 0.0
    %4698 = vmatprep.subr.mxu0 0.0
    %4699 = vmatpush1.msra.mxu0 0.0
    %4700 = vmatprep.mubr.f32.mxu0 0.0
    %4701 = vmatmul.mubr.f32.gmra.mrb[0].mxu0 %v4634
    %v4702 = vpop.f32.mrb[0].mxu0
    %v4703 = vadd.f32 0.0, %v4702
    %v4704 = vpop.f32.mrb[0].mxu0
    %4705 = vdwg.mxu0
    %v4707 = vrot.slane %v4703, 4
    %v4709 = vadd.f32 %v4311, %v4707
    %v4710 = vxor.u32 %v4709, 2147483648
    %v4711 = vmul.f32 %v4710, 1.442695
    %v4712 = vpow.pop %v4711
    %v4713 = vadd.f32 %v4712, 1.0
    %v4714 = vrcp.pop %v4713
    %v4715 = vmul.f32 1.0, %v4714
    %v4716 = vtanh.pop %v4709
    %v4718 = vrot.slane %v4624, 4
    %v4720 = vmul.f32 %v4715, %v4718
    %4722 = vrot.lane.b32.xlu0 %v4716, 64
    %v4723 = vpop.permute.xlu0 %4722
    %v4725 = vmul.f32 %v4715, %v4723
    %4727 = vrot.lane.b32.xlu0 %v4725, 32
    %v4728 = vpop.permute.xlu0 %4727
    %v4730 = vadd.f32 %v4720, %v4728
    %v4731 = vtanh.pop %v4730
    %4733 = vrot.lane.b32.xlu0 %v4731, 64
    %v4734 = vpop.permute.xlu0 %4733
    %v4736 = vmul.f32 %v4715, %v4734
    %v4738 = vrot.slane %v4736, 4
    %4739 = vrot.lane.b32.xlu0 %v4738, 32
    %v4740 = vpop.permute.xlu0 %4739
    %v4741 = vsel %vm2903, %v4740, 0
    %4743 = vmatprep.subr.mxu0 0.0
    %4744 = vmatpush1.msra.mxu0 %v4319
    %4745 = vmatprep.subr.mxu0 0.0
    %4746 = vmatpush1.msra.mxu0 %v4320
    %4747 = vmatprep.subr.mxu0 0.0
    %4748 = vmatpush1.msra.mxu0 %v4321
    %4749 = vmatprep.subr.mxu0 0.0
    %4750 = vmatpush1.msra.mxu0 %v4322
    %4751 = vmatprep.subr.mxu0 0.0
    %4752 = vmatpush1.msra.mxu0 0.0
    %4753 = vmatprep.subr.mxu0 0.0
    %4754 = vmatpush1.msra.mxu0 0.0
    %4755 = vmatprep.subr.mxu0 0.0
    %4756 = vmatpush1.msra.mxu0 0.0
    %4757 = vmatprep.subr.mxu0 0.0
    %4758 = vmatpush1.msra.mxu0 0.0
    %4759 = vmatprep.subr.mxu0 0.0
    %4760 = vmatpush1.msra.mxu0 0.0
    %4761 = vmatprep.subr.mxu0 0.0
    %4762 = vmatpush1.msra.mxu0 0.0
    %4763 = vmatprep.subr.mxu0 0.0
    %4764 = vmatpush1.msra.mxu0 0.0
    %4765 = vmatprep.subr.mxu0 0.0
    %4766 = vmatpush1.msra.mxu0 0.0
    %4767 = vmatprep.subr.mxu0 0.0
    %4768 = vmatpush1.msra.mxu0 0.0
    %4769 = vmatprep.subr.mxu0 0.0
    %4770 = vmatpush1.msra.mxu0 0.0
    %4771 = vmatprep.subr.mxu0 0.0
    %4772 = vmatpush1.msra.mxu0 0.0
    %4773 = vmatprep.subr.mxu0 0.0
    %4774 = vmatpush1.msra.mxu0 0.0
    %4775 = vmatprep.subr.mxu0 0.0
    %4776 = vmatpush1.msra.mxu0 0.0
    %4777 = vmatprep.subr.mxu0 0.0
    %4778 = vmatpush1.msra.mxu0 0.0
    %4779 = vmatprep.subr.mxu0 0.0
    %4780 = vmatpush1.msra.mxu0 0.0
    %4781 = vmatprep.subr.mxu0 0.0
    %4782 = vmatpush1.msra.mxu0 0.0
    %4783 = vmatprep.subr.mxu0 0.0
    %4784 = vmatpush1.msra.mxu0 0.0
    %4785 = vmatprep.subr.mxu0 0.0
    %4786 = vmatpush1.msra.mxu0 0.0
    %4787 = vmatprep.subr.mxu0 0.0
    %4788 = vmatpush1.msra.mxu0 0.0
    %4789 = vmatprep.subr.mxu0 0.0
    %4790 = vmatpush1.msra.mxu0 0.0
    %4791 = vmatprep.subr.mxu0 0.0
    %4792 = vmatpush1.msra.mxu0 0.0
    %4793 = vmatprep.subr.mxu0 0.0
    %4794 = vmatpush1.msra.mxu0 0.0
    %4795 = vmatprep.subr.mxu0 0.0
    %4796 = vmatpush1.msra.mxu0 0.0
    %4797 = vmatprep.subr.mxu0 0.0
    %4798 = vmatpush1.msra.mxu0 0.0
    %4799 = vmatprep.subr.mxu0 0.0
    %4800 = vmatpush1.msra.mxu0 0.0
    %4801 = vmatprep.subr.mxu0 0.0
    %4802 = vmatpush1.msra.mxu0 0.0
    %4803 = vmatprep.subr.mxu0 0.0
    %4804 = vmatpush1.msra.mxu0 0.0
    %4805 = vmatprep.subr.mxu0 0.0
    %4806 = vmatpush1.msra.mxu0 0.0
    %4807 = vmatprep.mubr.f32.mxu0 0.0
    %4808 = vmatmul.mubr.f32.gmra.mrb[0].mxu0 %v4741
    %v4809 = vpop.f32.mrb[0].mxu0
    %v4810 = vadd.f32 0.0, %v4809
    %v4811 = vpop.f32.mrb[0].mxu0
    %4812 = vdwg.mxu0
    %v4813 = vadd.f32 %v4316, %v4810
    %v4814 = vxor.u32 %v4813, 2147483648
    %v4815 = vmul.f32 %v4814, 1.442695
    %v4816 = vpow.pop %v4815
    %v4817 = vadd.f32 %v4816, 1.0
    %v4818 = vrcp.pop %v4817
    %v4819 = vmul.f32 1.0, %v4818
    %v4820 = vtanh.pop %v4813
    %v4822 = vrot.slane %v4730, 4
    %v4824 = vmul.f32 %v4819, %v4822
    %4826 = vrot.lane.b32.xlu0 %v4820, 64
    %v4827 = vpop.permute.xlu0 %4826
    %v4829 = vmul.f32 %v4819, %v4827
    %4831 = vrot.lane.b32.xlu0 %v4829, 32
    %v4832 = vpop.permute.xlu0 %4831
    %v4834 = vadd.f32 %v4824, %v4832
    %v4835 = vtanh.pop %v4834
    %4837 = vrot.lane.b32.xlu0 %v4835, 64
    %v4838 = vpop.permute.xlu0 %4837
    %v4840 = vmul.f32 %v4819, %v4838
    %v4841 = vld [vmem:[%s17] sm:$0xff]
    %v4842 = vld [vmem:[%s17 + $0x8] sm:$0xff]
    %v4843 = vld [vmem:[%s17 + $0x10] sm:$0xff]
    %v4844 = vld [vmem:[%s17 + $0x18] sm:$0xff]
    %v4845 = vld [vmem:[%s18] sm:$0x1]
    %v4847 = vlaneseq
    %v4848 = vshrl.u32 %v4847, 7
    %v4849 = vsub.s32 0, %v4848
    %v4850 = vrot.slane %v4845, %v4849
    %4853 = vrot.lane.b32.xlu0 %v4840, 32
    %v4854 = vpop.permute.xlu0 %4853
    %v4855 = vsel %vm2903, %v4854, 0
    %4857 = vmatprep.subr.mxu0 0.0
    %4858 = vmatpush1.msra.mxu0 %v4841
    %4859 = vmatprep.subr.mxu0 0.0
    %4860 = vmatpush1.msra.mxu0 %v4842
    %4861 = vmatprep.subr.mxu0 0.0
    %4862 = vmatpush1.msra.mxu0 %v4843
    %4863 = vmatprep.subr.mxu0 0.0
    %4864 = vmatpush1.msra.mxu0 %v4844
    %4865 = vmatprep.subr.mxu0 0.0
    %4866 = vmatpush1.msra.mxu0 0.0
    %4867 = vmatprep.subr.mxu0 0.0
    %4868 = vmatpush1.msra.mxu0 0.0
    %4869 = vmatprep.subr.mxu0 0.0
    %4870 = vmatpush1.msra.mxu0 0.0
    %4871 = vmatprep.subr.mxu0 0.0
    %4872 = vmatpush1.msra.mxu0 0.0
    %4873 = vmatprep.subr.mxu0 0.0
    %4874 = vmatpush1.msra.mxu0 0.0
    %4875 = vmatprep.subr.mxu0 0.0
    %4876 = vmatpush1.msra.mxu0 0.0
    %4877 = vmatprep.subr.mxu0 0.0
    %4878 = vmatpush1.msra.mxu0 0.0
    %4879 = vmatprep.subr.mxu0 0.0
    %4880 = vmatpush1.msra.mxu0 0.0
    %4881 = vmatprep.subr.mxu0 0.0
    %4882 = vmatpush1.msra.mxu0 0.0
    %4883 = vmatprep.subr.mxu0 0.0
    %4884 = vmatpush1.msra.mxu0 0.0
    %4885 = vmatprep.subr.mxu0 0.0
    %4886 = vmatpush1.msra.mxu0 0.0
    %4887 = vmatprep.subr.mxu0 0.0
    %4888 = vmatpush1.msra.mxu0 0.0
    %4889 = vmatprep.subr.mxu0 0.0
    %4890 = vmatpush1.msra.mxu0 0.0
    %4891 = vmatprep.subr.mxu0 0.0
    %4892 = vmatpush1.msra.mxu0 0.0
    %4893 = vmatprep.subr.mxu0 0.0
    %4894 = vmatpush1.msra.mxu0 0.0
    %4895 = vmatprep.subr.mxu0 0.0
    %4896 = vmatpush1.msra.mxu0 0.0
    %4897 = vmatprep.subr.mxu0 0.0
    %4898 = vmatpush1.msra.mxu0 0.0
    %4899 = vmatprep.subr.mxu0 0.0
    %4900 = vmatpush1.msra.mxu0 0.0
    %4901 = vmatprep.subr.mxu0 0.0
    %4902 = vmatpush1.msra.mxu0 0.0
    %4903 = vmatprep.subr.mxu0 0.0
    %4904 = vmatpush1.msra.mxu0 0.0
    %4905 = vmatprep.subr.mxu0 0.0
    %4906 = vmatpush1.msra.mxu0 0.0
    %4907 = vmatprep.subr.mxu0 0.0
    %4908 = vmatpush1.msra.mxu0 0.0
    %4909 = vmatprep.subr.mxu0 0.0
    %4910 = vmatpush1.msra.mxu0 0.0
    %4911 = vmatprep.subr.mxu0 0.0
    %4912 = vmatpush1.msra.mxu0 0.0
    %4913 = vmatprep.subr.mxu0 0.0
    %4914 = vmatpush1.msra.mxu0 0.0
    %4915 = vmatprep.subr.mxu0 0.0
    %4916 = vmatpush1.msra.mxu0 0.0
    %4917 = vmatprep.subr.mxu0 0.0
    %4918 = vmatpush1.msra.mxu0 0.0
    %4919 = vmatprep.subr.mxu0 0.0
    %4920 = vmatpush1.msra.mxu0 0.0
    %4921 = vmatprep.mubr.f32.mxu0 0.0
    %4922 = vmatmul.mubr.f32.gmra.mrb[0].mxu0 %v4855
    %v4923 = vpop.f32.mrb[0].mxu0
    %v4924 = vadd.f32 %v4850, %v4923
    %v4925 = vpop.f32.mrb[0].mxu0
    %4926 = vdwg.mxu0
    %vm4927 = vcmask 257024
    %v4928 = vsel %vm4927, %v4111, 0.0
    %4929 = vadd.xlane.f32.xlu0 %v4928
    %v4930 = vpop.xlane.xlu0 %4929
    %v4931 = vsel %vm4927, %v4924, 0.0
    %4932 = vadd.xlane.f32.xlu0 %v4931
    %v4933 = vpop.xlane.xlu0 %4932
    %v4934 = vadd.f32 %v4930, %v4933
    %v4935 = vmul.f32 %v4934, 0.015625
    %v4936 = vld [vmem:[%s19] sm:$0xff]
    %v4937 = vld [vmem:[%s19 + $0x8] sm:$0xff]
    %v4938 = vld [vmem:[%s19 + $0x10] sm:$0xff]
    %v4939 = vld [vmem:[%s19 + $0x18] sm:$0xff]
    %v4940 = vld [vmem:[%s20] sm:$0xff]
    %v4941 = vld [vmem:[%s20 + $0x8] sm:$0xff]
    %v4942 = vld [vmem:[%s20 + $0x10] sm:$0xff]
    %v4943 = vld [vmem:[%s20 + $0x18] sm:$0xff]
    %v4945 = vsel %vm2903, %v4924, 0
    %4947 = vmatprep.subr.mxu0 0.0
    %4948 = vmatpush1.msra.mxu0 %v4940
    %4949 = vmatprep.subr.mxu0 0.0
    %4950 = vmatpush1.msra.mxu0 %v4941
    %4951 = vmatprep.subr.mxu0 0.0
    %4952 = vmatpush1.msra.mxu0 %v4942
    %4953 = vmatprep.subr.mxu0 0.0
    %4954 = vmatpush1.msra.mxu0 %v4943
    %4955 = vmatprep.subr.mxu0 0.0
    %4956 = vmatpush1.msra.mxu0 0.0
    %4957 = vmatprep.subr.mxu0 0.0
    %4958 = vmatpush1.msra.mxu0 0.0
    %4959 = vmatprep.subr.mxu0 0.0
    %4960 = vmatpush1.msra.mxu0 0.0
    %4961 = vmatprep.subr.mxu0 0.0
    %4962 = vmatpush1.msra.mxu0 0.0
    %4963 = vmatprep.subr.mxu0 0.0
    %4964 = vmatpush1.msra.mxu0 0.0
    %4965 = vmatprep.subr.mxu0 0.0
    %4966 = vmatpush1.msra.mxu0 0.0
    %4967 = vmatprep.subr.mxu0 0.0
    %4968 = vmatpush1.msra.mxu0 0.0
    %4969 = vmatprep.subr.mxu0 0.0
    %4970 = vmatpush1.msra.mxu0 0.0
    %4971 = vmatprep.subr.mxu0 0.0
    %4972 = vmatpush1.msra.mxu0 0.0
    %4973 = vmatprep.subr.mxu0 0.0
    %4974 = vmatpush1.msra.mxu0 0.0
    %4975 = vmatprep.subr.mxu0 0.0
    %4976 = vmatpush1.msra.mxu0 0.0
    %4977 = vmatprep.subr.mxu0 0.0
    %4978 = vmatpush1.msra.mxu0 0.0
    %4979 = vmatprep.subr.mxu0 0.0
    %4980 = vmatpush1.msra.mxu0 0.0
    %4981 = vmatprep.subr.mxu0 0.0
    %4982 = vmatpush1.msra.mxu0 0.0
    %4983 = vmatprep.subr.mxu0 0.0
    %4984 = vmatpush1.msra.mxu0 0.0
    %4985 = vmatprep.subr.mxu0 0.0
    %4986 = vmatpush1.msra.mxu0 0.0
    %4987 = vmatprep.subr.mxu0 0.0
    %4988 = vmatpush1.msra.mxu0 0.0
    %4989 = vmatprep.subr.mxu0 0.0
    %4990 = vmatpush1.msra.mxu0 0.0
    %4991 = vmatprep.subr.mxu0 0.0
    %4992 = vmatpush1.msra.mxu0 0.0
    %4993 = vmatprep.subr.mxu0 0.0
    %4994 = vmatpush1.msra.mxu0 0.0
    %4995 = vmatprep.subr.mxu0 0.0
    %4996 = vmatpush1.msra.mxu0 0.0
    %4997 = vmatprep.subr.mxu0 0.0
    %4998 = vmatpush1.msra.mxu0 0.0
    %4999 = vmatprep.subr.mxu0 0.0
    %5000 = vmatpush1.msra.mxu0 0.0
    %5001 = vmatprep.subr.mxu0 0.0
    %5002 = vmatpush1.msra.mxu0 0.0
    %5003 = vmatprep.subr.mxu0 0.0
    %5004 = vmatpush1.msra.mxu0 0.0
    %5005 = vmatprep.subr.mxu0 0.0
    %5006 = vmatpush1.msra.mxu0 0.0
    %5007 = vmatprep.subr.mxu0 0.0
    %5008 = vmatpush1.msra.mxu0 0.0
    %5009 = vmatprep.subr.mxu0 0.0
    %5010 = vmatpush1.msra.mxu0 0.0
    %5011 = vmatprep.mubr.f32.mxu0 0.0
    %5012 = vmatmul.mubr.f32.gmra.mrb[0].mxu0 %v4945
    %v5013 = vpop.f32.mrb[0].mxu0
    %v5014 = vadd.f32 0.0, %v5013
    %v5015 = vpop.f32.mrb[0].mxu0
    %5016 = vdwg.mxu0
    %v5018 = vsel %vm2903, %v4111, 0
    %5020 = vmatprep.subr.mxu0 0.0
    %5021 = vmatpush1.msra.mxu0 %v4936
    %5022 = vmatprep.subr.mxu0 0.0
    %5023 = vmatpush1.msra.mxu0 %v4937
    %5024 = vmatprep.subr.mxu0 0.0
    %5025 = vmatpush1.msra.mxu0 %v4938
    %5026 = vmatprep.subr.mxu0 0.0
    %5027 = vmatpush1.msra.mxu0 %v4939
    %5028 = vmatprep.subr.mxu0 0.0
    %5029 = vmatpush1.msra.mxu0 0.0
    %5030 = vmatprep.subr.mxu0 0.0
    %5031 = vmatpush1.msra.mxu0 0.0
    %5032 = vmatprep.subr.mxu0 0.0
    %5033 = vmatpush1.msra.mxu0 0.0
    %5034 = vmatprep.subr.mxu0 0.0
    %5035 = vmatpush1.msra.mxu0 0.0
    %5036 = vmatprep.subr.mxu0 0.0
    %5037 = vmatpush1.msra.mxu0 0.0
    %5038 = vmatprep.subr.mxu0 0.0
    %5039 = vmatpush1.msra.mxu0 0.0
    %5040 = vmatprep.subr.mxu0 0.0
    %5041 = vmatpush1.msra.mxu0 0.0
    %5042 = vmatprep.subr.mxu0 0.0
    %5043 = vmatpush1.msra.mxu0 0.0
    %5044 = vmatprep.subr.mxu0 0.0
    %5045 = vmatpush1.msra.mxu0 0.0
    %5046 = vmatprep.subr.mxu0 0.0
    %5047 = vmatpush1.msra.mxu0 0.0
    %5048 = vmatprep.subr.mxu0 0.0
    %5049 = vmatpush1.msra.mxu0 0.0
    %5050 = vmatprep.subr.mxu0 0.0
    %5051 = vmatpush1.msra.mxu0 0.0
    %5052 = vmatprep.subr.mxu0 0.0
    %5053 = vmatpush1.msra.mxu0 0.0
    %5054 = vmatprep.subr.mxu0 0.0
    %5055 = vmatpush1.msra.mxu0 0.0
    %5056 = vmatprep.subr.mxu0 0.0
    %5057 = vmatpush1.msra.mxu0 0.0
    %5058 = vmatprep.subr.mxu0 0.0
    %5059 = vmatpush1.msra.mxu0 0.0
    %5060 = vmatprep.subr.mxu0 0.0
    %5061 = vmatpush1.msra.mxu0 0.0
    %5062 = vmatprep.subr.mxu0 0.0
    %5063 = vmatpush1.msra.mxu0 0.0
    %5064 = vmatprep.subr.mxu0 0.0
    %5065 = vmatpush1.msra.mxu0 0.0
    %5066 = vmatprep.subr.mxu0 0.0
    %5067 = vmatpush1.msra.mxu0 0.0
    %5068 = vmatprep.subr.mxu0 0.0
    %5069 = vmatpush1.msra.mxu0 0.0
    %5070 = vmatprep.subr.mxu0 0.0
    %5071 = vmatpush1.msra.mxu0 0.0
    %5072 = vmatprep.subr.mxu0 0.0
    %5073 = vmatpush1.msra.mxu0 0.0
    %5074 = vmatprep.subr.mxu0 0.0
    %5075 = vmatpush1.msra.mxu0 0.0
    %5076 = vmatprep.subr.mxu0 0.0
    %5077 = vmatpush1.msra.mxu0 0.0
    %5078 = vmatprep.subr.mxu0 0.0
    %5079 = vmatpush1.msra.mxu0 0.0
    %5080 = vmatprep.subr.mxu0 0.0
    %5081 = vmatpush1.msra.mxu0 0.0
    %5082 = vmatprep.subr.mxu0 0.0
    %5083 = vmatpush1.msra.mxu0 0.0
    %5084 = vmatprep.mubr.f32.mxu0 0.0
    %5085 = vmatmul.mubr.f32.gmra.mrb[0].mxu0 %v5018
    %v5086 = vpop.f32.mrb[0].mxu0
    %v5087 = vadd.f32 %v5014, %v5086
    %v5088 = vpop.f32.mrb[0].mxu0
    %5089 = vdwg.mxu0
    %v5090 = vld [vmem:[%s21] sm:$0x1]
    %v5092 = vlaneseq
    %v5093 = vshrl.u32 %v5092, 7
    %v5094 = vsub.s32 0, %v5093
    %v5095 = vrot.slane %v5090, %v5094
    %v5097 = vmul.f32 %v4935, %v5095
    %v5098 = vsub.f32 %v5087, %v5097
    %v5099 = vtanh.pop %v5098
    %5100 = vst.msk [vmem:[#allocation2] sm:$0xf] %vm4927, %v5099
    // Predicated region
    $region90: #{fused_forward.1} parent=1 // pred_check
      _
    $region91: #{fused_forward.1} parent=1 // pred_check_branch
      %5102 = sbr.rel (0) target = $region93
    $region92: #{fused_forward.1} parent=1 // pred_region
      %s5104 = ssub.s32 64, 64
      %5105 = vsyncadd [#allocation3], %s5104
      %s5107 = sshll.u32 [#allocation2], 4
      %s5108 = int_to_ptr.vmem [resolvable:$true] %s5107
      %5110 = dma.vmem_to_hbm [thread:$0]  %s5108, 64, %s22, [#allocation3]
    $region93: #{fused_forward.1} parent=1 // pred_fallthru
      _
    // Predicated region
    $region94: #{fused_forward.1} parent=1 // pred_check
      _
    $region95: #{fused_forward.1} parent=1 // pred_check_branch
      %5112 = sbr.rel (0) target = $region97
    $region96: #{fused_forward.1} parent=1 // pred_region
      %5113 = dma.done [#allocation3], 64
    $region97: #{fused_forward.1} parent=1 // pred_fallthru
      _
    %5114 = vsyncpa [#allocation3], 1

</llo_original>
